<compile_context>
chip_gen: v6e
topology: v6e:2x2x1
jax: 0.10.0
libtpu: 0.0.40
codegen_flags: <defaults>
</compile_context>

<pallas_src>
import numpy as np
import jax
import jax.numpy as jnp
from jax.experimental import pallas as pl
from jax.experimental.pallas import tpu as pltpu

# ------------------------------- model dimensions ----------------------------
ACTION_DIM = 8
STATE_DIM = 16
TIME_EMBED_DIM = 32                 # GuidanceQt default
HALF_EMBED = TIME_EMBED_DIM // 2    # 16 Fourier frequencies
HIDDEN = 256                        # MLP hidden_channels
OUT_PAD = 128                       # Linear(256,1) padded to 128 lanes
IN_DIM = ACTION_DIM + TIME_EMBED_DIM + STATE_DIM   # 56 (torch ats width)

# packed activation layout: [action(8) | t(1) | condition(16) | zero-pad(7)]
T_COL = ACTION_DIM
X_WIDTH = 32
PACK_USED = ACTION_DIM + 1 + STATE_DIM   # 25

BATCH = 256                         # multiple of TILE_B
TILE_B = 128                        # batch rows per grid step

# ---------------- packed bf16 weight-slab row offsets (multiples of 16) ------
R_GF = 0                                  # fused GF-features -> hidden   (32, 256)
R_AC = R_GF + TIME_EMBED_DIM              # packed-x -> hidden            (32, 256)
R_W2 = R_AC + X_WIDTH                     # qt Linear2                   (256, 256)
R_W3 = R_W2 + HIDDEN                      # qt Linear3                   (256, 256)
R_W4 = R_W3 + HIDDEN                      # qt Linear4 padded to 128 cols(256, 128)
W_ROWS = R_W4 + HIDDEN                    # 832


# ------------------------------ parameter building ---------------------------
def _linear(key, din, dout, scale=0.1):
    k1, k2 = jax.random.split(key)
    w = scale * jax.random.normal(k1, (din, dout), jnp.float32)
    b = scale * jax.random.normal(k2, (dout,), jnp.float32)
    return w, b


def make_params(key):
    """Returns (f32 param dict for the reference, bf16 weight slab, f32 scalar slab)."""
    k_gf, k_e, k_1, k_2, k_3, k_4 = jax.random.split(key, 6)
    p = {}
    p["gf_w"] = 30.0 * jax.random.normal(k_gf, (HALF_EMBED,), jnp.float32)
    p["w_e"], p["b_e"] = _linear(k_e, TIME_EMBED_DIM, TIME_EMBED_DIM)
    p["w1"], p["b1"] = _linear(k_1, IN_DIM, HIDDEN)
    p["w2"], p["b2"] = _linear(k_2, HIDDEN, HIDDEN)
    p["w3"], p["b3"] = _linear(k_3, HIDDEN, HIDDEN)
    p["w4"], p["b4"] = _linear(k_4, HIDDEN, 1)

    # split w1 by the cat([action, embed, condition], -1) column order
    w1_a = p["w1"][:ACTION_DIM]
    w1_e = p["w1"][ACTION_DIM:ACTION_DIM + TIME_EMBED_DIM]
    w1_c = p["w1"][ACTION_DIM + TIME_EMBED_DIM:]

    # fuse the embed Linear into qt Linear1 (pure linear composition, done in f32)
    w_gf2h = p["w_e"] @ w1_e                         # (32, 256)
    b1_fused = p["b1"] + p["b_e"] @ w1_e             # (256,)

    # ---- pack all matmul weights into one bf16 slab (single DMA) ------------
    wbuf = jnp.zeros((W_ROWS, HIDDEN), jnp.float32)
    wbuf = wbuf.at[R_GF:R_GF + TIME_EMBED_DIM, :].set(w_gf2h)
    wbuf = wbuf.at[R_AC:R_AC + ACTION_DIM, :].set(w1_a)          # x cols 0..7
    wbuf = wbuf.at[R_AC + T_COL + 1:R_AC + T_COL + 1 + STATE_DIM, :].set(w1_c)  # x cols 9..24
    # row R_AC+T_COL (the t column) and pad rows stay zero
    wbuf = wbuf.at[R_W2:R_W2 + HIDDEN, :].set(p["w2"])
    wbuf = wbuf.at[R_W3:R_W3 + HIDDEN, :].set(p["w3"])
    wbuf = wbuf.at[R_W4:R_W4 + HIDDEN, 0:1].set(p["w4"])         # cols 1:128 stay zero
    wbuf = wbuf.astype(jnp.bfloat16)

    # ---- pack GF frequencies/phases + all biases into one small f32 slab ----
    gfw2pi = jnp.concatenate([p["gf_w"], p["gf_w"]]) * (2.0 * np.pi)      # duplicated
    phase = jnp.concatenate([jnp.zeros((HALF_EMBED,), jnp.float32),
                             jnp.full((HALF_EMBED,), np.pi / 2.0, jnp.float32)])
    sbuf = jnp.zeros((8, HIDDEN), jnp.float32)
    sbuf = sbuf.at[0, :TIME_EMBED_DIM].set(gfw2pi)
    sbuf = sbuf.at[1, :TIME_EMBED_DIM].set(phase)
    sbuf = sbuf.at[2, :].set(b1_fused)
    sbuf = sbuf.at[3, :].set(p["b2"])
    sbuf = sbuf.at[4, :].set(p["b3"])
    sbuf = sbuf.at[5, 0].set(p["b4"][0])
    return p, wbuf, sbuf


# --------------------------------- reference ----------------------------------
def _silu_ref(a):
    return a * jax.nn.sigmoid(a)


def reference_forward(action, t, condition, p):
    """Pure-JAX f32 replica of GuidanceQt.forward (PyTorch semantics, with concats)."""
    x_proj = t[:, None] * p["gf_w"][None, :] * (2.0 * np.pi)
    gf = jnp.concatenate([jnp.sin(x_proj), jnp.cos(x_proj)], -1)
    embed = gf @ p["w_e"] + p["b_e"]
    ats = jnp.concatenate([action, embed, condition], -1)
    h = _silu_ref(ats @ p["w1"] + p["b1"])
    h = _silu_ref(h @ p["w2"] + p["b2"])
    h = _silu_ref(h @ p["w3"] + p["b3"])
    return h @ p["w4"] + p["b4"]                      # (B, 1)


# ------------------------------- Pallas kernel --------------------------------
def _silu_kernel(a):
    # SiLU; reciprocal goes to the EUP slot so the VPU stays clear.
    return a * pl.reciprocal(1.0 + jnp.exp(-a), approx=True)


def guidance_qt_kernel(x_ref, w_ref, s_ref, o_ref):
    x = x_ref[...]                                    # (TILE_B, 32) packed [a | t | c | 0]
    sb = s_ref[...]                                   # (8, HIDDEN) f32

    t = x[:, T_COL:T_COL + 1]                         # (TILE_B, 1)
    gfw = sb[0:1, :TIME_EMBED_DIM]                    # (1, 32)  freqs*2pi, duplicated
    phase = sb[1:2, :TIME_EMBED_DIM]                  # (1, 32)  [0..0, pi/2..pi/2]
    b1 = sb[2:3, :]                                   # (1, 256) fused Linear1 bias
    b2 = sb[3:4, :]
    b3 = sb[4:5, :]
    b4 = sb[5:6, :OUT_PAD]                            # (1, 128), only col 0 nonzero

    def bdot(u, w):                                   # bf16 MXU dot, f32 accumulate
        return jnp.dot(u.astype(jnp.bfloat16), w,
                       preferred_element_type=jnp.float32)

    # Gaussian Fourier features, concat-free:
    #   [sin(t*w*2pi), cos(t*w*2pi)] == sin(t*w*2pi + [0, pi/2])   (one transcendental)
    feats = jnp.sin(t * gfw + phase)                  # (TILE_B, 32)

    # Fused Linear1: GF-features @ (W_e@W1_e)  +  packed-x @ W1_[action|0|cond|0]  + b1'
    h = (bdot(feats, w_ref[R_GF:R_GF + TIME_EMBED_DIM, :])
         + bdot(x, w_ref[R_AC:R_AC + X_WIDTH, :])
         + b1)
    h = _silu_kernel(h)
    h = _silu_kernel(bdot(h, w_ref[R_W2:R_W2 + HIDDEN, :]) + b2)
    h = _silu_kernel(bdot(h, w_ref[R_W3:R_W3 + HIDDEN, :]) + b3)
    out = bdot(h, w_ref[R_W4:R_W4 + HIDDEN, :OUT_PAD]) + b4      # (TILE_B, 128)
    o_ref[...] = out.astype(o_ref.dtype)


def guidance_qt_forward(action, t, condition, wbuf, sbuf):
    b = action.shape[0]
    assert b % TILE_B == 0, "batch must be a multiple of TILE_B"
    t2 = t.reshape(-1, 1).astype(jnp.float32)
    # Pack [action | t | condition | zero-pad] into one lane-aligned activation slab.
    x = jnp.concatenate(
        [action.astype(jnp.float32), t2, condition.astype(jnp.float32),
         jnp.zeros((b, X_WIDTH - PACK_USED), jnp.float32)], axis=-1)

    flops = 2 * b * (TIME_EMBED_DIM * HIDDEN + X_WIDTH * HIDDEN
                     + 2 * HIDDEN * HIDDEN + HIDDEN * OUT_PAD)
    transcendentals = b * (TIME_EMBED_DIM + 3 * HIDDEN)
    bytes_accessed = (wbuf.size * 2 + sbuf.size * 4
                      + x.size * 4 + b * OUT_PAD * 4)

    out = pl.pallas_call(
        guidance_qt_kernel,
        out_shape=jax.ShapeDtypeStruct((b, OUT_PAD), jnp.float32),
        grid=(b // TILE_B,),
        in_specs=[
            pl.BlockSpec((TILE_B, X_WIDTH), lambda i: (i, 0)),
            # Weights / biases: constant block index -> DMA'd once, VMEM-resident.
            pl.BlockSpec((W_ROWS, HIDDEN), lambda i: (0, 0)),
            pl.BlockSpec((8, HIDDEN), lambda i: (0, 0)),
        ],
        out_specs=pl.BlockSpec((TILE_B, OUT_PAD), lambda i: (i, 0)),
        compiler_params=pltpu.CompilerParams(
            dimension_semantics=("parallel",),        # shard batch tiles over TCs
            vmem_limit_bytes=16 << 20,
        ),
        cost_estimate=pl.CostEstimate(
            flops=flops,
            transcendentals=transcendentals,
            bytes_accessed=bytes_accessed),
    )(x, wbuf, sbuf)
    return out[:, :1]                                 # real GuidanceQt output = column 0


# ------------------------------------ main ------------------------------------
if __name__ == "__main__":
    key = jax.random.PRNGKey(0)
    kp, ka, kt, kc = jax.random.split(key, 4)

    params, wbuf, sbuf = make_params(kp)
    action = jax.random.normal(ka, (BATCH, ACTION_DIM), jnp.float32)
    t = jax.random.uniform(kt, (BATCH,), jnp.float32, minval=0.01, maxval=1.0)
    condition = jax.random.normal(kc, (BATCH, STATE_DIM), jnp.float32)

    out = guidance_qt_forward(action, t, condition, wbuf, sbuf)
    out = jax.block_until_ready(out)

    ref = jax.block_until_ready(reference_forward(action, t, condition, params))

    assert out.shape == (BATCH, 1)
    # bf16 weights/activations in the kernel vs f32 reference -> loose tolerance.
    np.testing.assert_allclose(np.asarray(out), np.asarray(ref), rtol=3e-2, atol=3e-2)
    print("KERNEL_OK")
</pallas_src>

<mosaic_0001>
module attributes {stable_mosaic.version = 11 : i64} {
  func.func @guidance_qt_kernel(%arg0: i32, %arg1: memref<128x32xf32, #tpu.memory_space<vmem>>, %arg2: memref<832x256xbf16, #tpu.memory_space<vmem>>, %arg3: memref<8x256xf32, #tpu.memory_space<vmem>>, %arg4: memref<128x128xf32, #tpu.memory_space<vmem>>) attributes {dimension_semantics = [#tpu.dimension_semantics<parallel>], iteration_bounds = array<i64: 2>, scalar_prefetch = 0 : i64, scratch_operands = 0 : i64, tpu.core_type = #tpu.core_type<tc>, window_params = [{transform_indices = @transform_0, window_bounds = array<i64: 128, 32>}, {pipeline_mode = #tpu.pipeline_mode<synchronous>, transform_indices = @transform_1, window_bounds = array<i64: 832, 256>}, {pipeline_mode = #tpu.pipeline_mode<synchronous>, transform_indices = @transform_2, window_bounds = array<i64: 8, 256>}, {transform_indices = @transform_3, window_bounds = array<i64: 128, 128>}]} {
    %c0 = arith.constant 0 : index
    %c0_0 = arith.constant 0 : index
    %0 = vector.load %arg1[%c0, %c0_0] : memref<128x32xf32, #tpu.memory_space<vmem>>, vector<128x32xf32>
    %c0_1 = arith.constant 0 : index
    %c0_2 = arith.constant 0 : index
    %1 = vector.load %arg3[%c0_1, %c0_2] : memref<8x256xf32, #tpu.memory_space<vmem>>, vector<8x256xf32>
    %2 = vector.extract_strided_slice %0 {offsets = [0, 8], sizes = [128, 1], strides = [1, 1]} : vector<128x32xf32> to vector<128x1xf32>
    %3 = vector.extract_strided_slice %1 {offsets = [0, 0], sizes = [1, 32], strides = [1, 1]} : vector<8x256xf32> to vector<1x32xf32>
    %4 = vector.extract_strided_slice %1 {offsets = [1, 0], sizes = [1, 32], strides = [1, 1]} : vector<8x256xf32> to vector<1x32xf32>
    %5 = vector.extract_strided_slice %1 {offsets = [2, 0], sizes = [1, 256], strides = [1, 1]} : vector<8x256xf32> to vector<1x256xf32>
    %6 = vector.extract_strided_slice %1 {offsets = [3, 0], sizes = [1, 256], strides = [1, 1]} : vector<8x256xf32> to vector<1x256xf32>
    %7 = vector.extract_strided_slice %1 {offsets = [4, 0], sizes = [1, 256], strides = [1, 1]} : vector<8x256xf32> to vector<1x256xf32>
    %8 = vector.extract_strided_slice %1 {offsets = [5, 0], sizes = [1, 128], strides = [1, 1]} : vector<8x256xf32> to vector<1x128xf32>
    %9 = vector.broadcast %2 : vector<128x1xf32> to vector<128x32xf32>
    %10 = vector.broadcast %3 : vector<1x32xf32> to vector<128x32xf32>
    %11 = arith.mulf %9, %10 : vector<128x32xf32>
    %12 = vector.broadcast %4 : vector<1x32xf32> to vector<128x32xf32>
    %13 = arith.addf %11, %12 : vector<128x32xf32>
    %14 = math.sin %13 : vector<128x32xf32>
    %c0_3 = arith.constant 0 : index
    %c0_4 = arith.constant 0 : index
    %15 = vector.load %arg2[%c0_3, %c0_4] : memref<832x256xbf16, #tpu.memory_space<vmem>>, vector<32x256xbf16>
    %16 = arith.truncf %14 : vector<128x32xf32> to vector<128x32xbf16>
    %cst = arith.constant dense<0.000000e+00> : vector<128x256xf32>
    %17 = tpu.matmul %16, %15, %cst {dimension_numbers = #tpu.dot_dimension_numbers<[1], [0], [0], [1], [0, 0, 1, 1], [], []>} : vector<128x32xbf16>, vector<32x256xbf16>, vector<128x256xf32> -> vector<128x256xf32>
    %c32 = arith.constant 32 : index
    %c0_5 = arith.constant 0 : index
    %18 = vector.load %arg2[%c32, %c0_5] : memref<832x256xbf16, #tpu.memory_space<vmem>>, vector<32x256xbf16>
    %19 = arith.truncf %0 : vector<128x32xf32> to vector<128x32xbf16>
    %cst_6 = arith.constant dense<0.000000e+00> : vector<128x256xf32>
    %20 = tpu.matmul %19, %18, %cst_6 {dimension_numbers = #tpu.dot_dimension_numbers<[1], [0], [0], [1], [0, 0, 1, 1], [], []>} : vector<128x32xbf16>, vector<32x256xbf16>, vector<128x256xf32> -> vector<128x256xf32>
    %21 = arith.addf %17, %20 : vector<128x256xf32>
    %22 = vector.broadcast %5 : vector<1x256xf32> to vector<128x256xf32>
    %23 = arith.addf %21, %22 : vector<128x256xf32>
    %cst_7 = arith.constant 0.000000e+00 : f32
    %24 = vector.broadcast %cst_7 : f32 to vector<128x256xf32>
    %25 = arith.subf %24, %23 : vector<128x256xf32>
    %26 = math.exp %25 : vector<128x256xf32>
    %cst_8 = arith.constant 1.000000e+00 : f32
    %27 = vector.broadcast %cst_8 : f32 to vector<128x256xf32>
    %28 = arith.addf %27, %26 : vector<128x256xf32>
    %29 = tpu.reciprocal %28 {approx = true} : vector<128x256xf32> -> vector<128x256xf32>
    %30 = arith.mulf %23, %29 : vector<128x256xf32>
    %c64 = arith.constant 64 : index
    %c0_9 = arith.constant 0 : index
    %31 = vector.load %arg2[%c64, %c0_9] : memref<832x256xbf16, #tpu.memory_space<vmem>>, vector<256x256xbf16>
    %32 = arith.truncf %30 : vector<128x256xf32> to vector<128x256xbf16>
    %cst_10 = arith.constant dense<0.000000e+00> : vector<128x256xf32>
    %33 = tpu.matmul %32, %31, %cst_10 {dimension_numbers = #tpu.dot_dimension_numbers<[1], [0], [0], [1], [0, 0, 1, 1], [], []>} : vector<128x256xbf16>, vector<256x256xbf16>, vector<128x256xf32> -> vector<128x256xf32>
    %34 = vector.broadcast %6 : vector<1x256xf32> to vector<128x256xf32>
    %35 = arith.addf %33, %34 : vector<128x256xf32>
    %cst_11 = arith.constant 0.000000e+00 : f32
    %36 = vector.broadcast %cst_11 : f32 to vector<128x256xf32>
    %37 = arith.subf %36, %35 : vector<128x256xf32>
    %38 = math.exp %37 : vector<128x256xf32>
    %cst_12 = arith.constant 1.000000e+00 : f32
    %39 = vector.broadcast %cst_12 : f32 to vector<128x256xf32>
    %40 = arith.addf %39, %38 : vector<128x256xf32>
    %41 = tpu.reciprocal %40 {approx = true} : vector<128x256xf32> -> vector<128x256xf32>
    %42 = arith.mulf %35, %41 : vector<128x256xf32>
    %c320 = arith.constant 320 : index
    %c0_13 = arith.constant 0 : index
    %43 = vector.load %arg2[%c320, %c0_13] : memref<832x256xbf16, #tpu.memory_space<vmem>>, vector<256x256xbf16>
    %44 = arith.truncf %42 : vector<128x256xf32> to vector<128x256xbf16>
    %cst_14 = arith.constant dense<0.000000e+00> : vector<128x256xf32>
    %45 = tpu.matmul %44, %43, %cst_14 {dimension_numbers = #tpu.dot_dimension_numbers<[1], [0], [0], [1], [0, 0, 1, 1], [], []>} : vector<128x256xbf16>, vector<256x256xbf16>, vector<128x256xf32> -> vector<128x256xf32>
    %46 = vector.broadcast %7 : vector<1x256xf32> to vector<128x256xf32>
    %47 = arith.addf %45, %46 : vector<128x256xf32>
    %cst_15 = arith.constant 0.000000e+00 : f32
    %48 = vector.broadcast %cst_15 : f32 to vector<128x256xf32>
    %49 = arith.subf %48, %47 : vector<128x256xf32>
    %50 = math.exp %49 : vector<128x256xf32>
    %cst_16 = arith.constant 1.000000e+00 : f32
    %51 = vector.broadcast %cst_16 : f32 to vector<128x256xf32>
    %52 = arith.addf %51, %50 : vector<128x256xf32>
    %53 = tpu.reciprocal %52 {approx = true} : vector<128x256xf32> -> vector<128x256xf32>
    %54 = arith.mulf %47, %53 : vector<128x256xf32>
    %c576 = arith.constant 576 : index
    %c0_17 = arith.constant 0 : index
    %55 = vector.load %arg2[%c576, %c0_17] : memref<832x256xbf16, #tpu.memory_space<vmem>>, vector<256x128xbf16>
    %56 = arith.truncf %54 : vector<128x256xf32> to vector<128x256xbf16>
    %cst_18 = arith.constant dense<0.000000e+00> : vector<128x128xf32>
    %57 = tpu.matmul %56, %55, %cst_18 {dimension_numbers = #tpu.dot_dimension_numbers<[1], [0], [0], [1], [0, 0, 1, 1], [], []>} : vector<128x256xbf16>, vector<256x128xbf16>, vector<128x128xf32> -> vector<128x128xf32>
    %58 = vector.broadcast %8 : vector<1x128xf32> to vector<128x128xf32>
    %59 = arith.addf %57, %58 : vector<128x128xf32>
    %c0_19 = arith.constant 0 : index
    %c0_20 = arith.constant 0 : index
    %60 = vector.load %arg4[%c0_19, %c0_20] : memref<128x128xf32, #tpu.memory_space<vmem>>, vector<128x128xf32>
    tpu.vector_store %arg4[%c0_19, %c0_20], %59 {strides = array<i32>} : memref<128x128xf32, #tpu.memory_space<vmem>>, vector<128x128xf32>,
    return
  }
  func.func @transform_0(%arg0: i32) -> (i32, i32) {
    %c0_i32 = arith.constant 0 : i32
    %c0_i32_0 = arith.constant 0 : i32
    return %arg0, %c0_i32 : i32, i32
  }
  func.func @transform_1(%arg0: i32) -> (i32, i32) {
    %c0_i32 = arith.constant 0 : i32
    %c0_i32_0 = arith.constant 0 : i32
    %c0_i32_1 = arith.constant 0 : i32
    return %c0_i32, %c0_i32_0 : i32, i32
  }
  func.func @transform_2(%arg0: i32) -> (i32, i32) {
    %c0_i32 = arith.constant 0 : i32
    %c0_i32_0 = arith.constant 0 : i32
    %c0_i32_1 = arith.constant 0 : i32
    return %c0_i32, %c0_i32_0 : i32, i32
  }
  func.func @transform_3(%arg0: i32) -> (i32, i32) {
    %c0_i32 = arith.constant 0 : i32
    %c0_i32_0 = arith.constant 0 : i32
    return %arg0, %c0_i32 : i32, i32
  }
}

</mosaic_0001>

<llo_original>
// kernel: tpu_custom_call.1
$region0: #{tpu_custom_call.1}
  #allocation0 [shape = 'u32[]', space=smem, size = 0x4, offset = 0x4, fixed_abs, tag = 'smem constant byte address 0x4 - core index']
  #allocation1 [shape = 'u32[144,128]{1,0:T(1,128)}', space=vmem, size = 0x12000, scoped, tag = 'internal scratch']
  %s0 = inlined_call_operand.vmem [shape: f32[256,32], index: 0, kind: input, shape index: {}]
  %s1 = inlined_call_operand.hbm [shape: bf16[832,256], index: 1, kind: input, shape index: {}]
  %s2 = inlined_call_operand.vmem [shape: f32[8,256], index: 2, kind: input, shape index: {}]
  %s3 = inlined_call_operand.hbm [shape: f32[256,128], index: 3, kind: output, shape index: {}]
  %s4 = sld [smem:[#allocation0]]
  $region49: #{tpu_custom_call.1} parent=0
    _
  %s6 = ssub.s32 1, %s4
  %s7 = scalar_select 0, %s6, %s4
  $region1: #{tpu_custom_call.1} parent=0
    #allocation2 [shape = 'u8[425984]{0}', space=vmem, size = 0x68000, scoped, tag = 'input window, operand 1, single buffered']
    #allocation3 [shape = 's32[2]{0}', space=sflag, size = 0x8, scoped, tag = 'scoped memory for tpu_custom_call.1']
    #allocation4 [shape = 's32[2]{0}', space=sflag, size = 0x8, scoped, tag = 'scoped memory for tpu_custom_call.1']
    #allocation5 [shape = 'u8[131072]{0}', space=vmem, size = 0x20000, scoped, tag = 'output window, operand 0']
    %8 = vsyncpa [#allocation3], 0
    %9 = vsyncpa [#allocation4], 0
    %s10 = scalar_lea.sflag [#allocation4], 1
    %11 = vsyncpa %s10, 0
    loop: start=0, step=1, limit=4
    $region2: #{tpu_custom_call.1} parent=1 // loop_pre_header
      _
    $region3: #{tpu_custom_call.1} parent=1 // loop_header
      %s13 = sphi 0, %s17
      %p14 = scmp.ge.s32.totalorder %s13, 4
      %s23 = sphi 0, %s25
      %s26 = sphi 0, %s23
      %s27 = sphi 0, %s26
      %s43 = sphi 0, %s27
      %s47 = sphi 0, %s47
      %s49 = sphi 0, %s47
      %s50 = sphi 0, %s49
      %s64 = sphi 0, %s50
      %s68 = sphi 0, %s68
      %s70 = sphi 0, %s68
      %s71 = sphi 0, %s70
      %s85 = sphi 0, %s71
      %s91 = sphi 0, %s93
      %s94 = sphi 0, %s91
      %s95 = sphi 0, %s94
      %s111 = sphi 0, %s95
    $region4: #{tpu_custom_call.1} parent=1 // loop_header_branch
      %16 = sbr.rel (%p14) target = $region8
    $region5: #{tpu_custom_call.1} parent=1 // loop_body
      %s18 = ssub.s32 %s13, 1
      %s19 = ssub.s32 %s13, 2
      %s20 = sadd.s32 %s13, 1
      %s21 = ssub.s32 %s13, %s20
      %p22 = scmp.eq.s32.totalorder %s21, 0
      %s24 = sadd.s32 %s23, 1
      %s25 = scalar_select %p22, %s23, %s24
      %p28 = pneg %p22
      %p29 = scmp.eq.s32.totalorder %s13, 1
      %p30 = por %p28, %p29
      %p31 = scmp.ne.s32.totalorder %s23, %s26
      %p32 = scmp.eq.s32.totalorder %s13, 0
      %p33 = por %p31, %p32
      %p34 = scmp.ne.s32.totalorder %s23, %s26
      %p35 = scmp.eq.s32.totalorder %s18, 1
      %p36 = por %p34, %p35
      %p37 = scmp.ne.s32.totalorder %s26, %s27
      %p38 = scmp.eq.s32.totalorder %s18, 0
      %p39 = por %p37, %p38
      %p40 = scmp.ne.s32.totalorder %s26, %s27
      %p41 = scmp.eq.s32.totalorder %s19, 1
      %p42 = por %p40, %p41
      %p44 = scmp.ne.s32.totalorder %s27, %s43
      %p45 = scmp.eq.s32.totalorder %s19, 0
      %p46 = por %p44, %p45
      %s48 = sadd.s32 %s47, 1
      %p51 = scmp.eq.s32.totalorder %s13, 1
      %p52 = scmp.ne.s32.totalorder %s47, %s49
      %p53 = scmp.eq.s32.totalorder %s13, 0
      %p54 = por %p52, %p53
      %p55 = scmp.ne.s32.totalorder %s47, %s49
      %p56 = scmp.eq.s32.totalorder %s18, 1
      %p57 = por %p55, %p56
      %p58 = scmp.ne.s32.totalorder %s49, %s50
      %p59 = scmp.eq.s32.totalorder %s18, 0
      %p60 = por %p58, %p59
      %p61 = scmp.ne.s32.totalorder %s49, %s50
      %p62 = scmp.eq.s32.totalorder %s19, 1
      %p63 = por %p61, %p62
      %p65 = scmp.ne.s32.totalorder %s50, %s64
      %p66 = scmp.eq.s32.totalorder %s19, 0
      %p67 = por %p65, %p66
      %s69 = sadd.s32 %s68, 1
      %p72 = scmp.eq.s32.totalorder %s13, 1
      %p73 = scmp.ne.s32.totalorder %s68, %s70
      %p74 = scmp.eq.s32.totalorder %s13, 0
      %p75 = por %p73, %p74
      %p76 = scmp.ne.s32.totalorder %s68, %s70
      %p77 = scmp.eq.s32.totalorder %s18, 1
      %p78 = por %p76, %p77
      %p79 = scmp.ne.s32.totalorder %s70, %s71
      %p80 = scmp.eq.s32.totalorder %s18, 0
      %p81 = por %p79, %p80
      %p82 = scmp.ne.s32.totalorder %s70, %s71
      %p83 = scmp.eq.s32.totalorder %s19, 1
      %p84 = por %p82, %p83
      %p86 = scmp.ne.s32.totalorder %s71, %s85
      %p87 = scmp.eq.s32.totalorder %s19, 0
      %p88 = por %p86, %p87
      %s89 = ssub.s32 %s13, %s20
      %p90 = scmp.eq.s32.totalorder %s89, 0
      %s92 = sadd.s32 %s91, 1
      %s93 = scalar_select %p90, %s91, %s92
      %p96 = pneg %p90
      %p97 = scmp.eq.s32.totalorder %s13, 1
      %p98 = por %p96, %p97
      %p99 = scmp.ne.s32.totalorder %s91, %s94
      %p100 = scmp.eq.s32.totalorder %s13, 0
      %p101 = por %p99, %p100
      %p102 = scmp.ne.s32.totalorder %s91, %s94
      %p103 = scmp.eq.s32.totalorder %s18, 1
      %p104 = por %p102, %p103
      %p105 = scmp.ne.s32.totalorder %s94, %s95
      %p106 = scmp.eq.s32.totalorder %s18, 0
      %p107 = por %p105, %p106
      %p108 = scmp.ne.s32.totalorder %s94, %s95
      %p109 = scmp.eq.s32.totalorder %s19, 1
      %p110 = por %p108, %p109
      %p112 = scmp.ne.s32.totalorder %s95, %s111
      %p113 = scmp.eq.s32.totalorder %s19, 0
      %p114 = por %p112, %p113
      %p115 = scmp.le.s32.totalorder 1, %s13
      %p116 = scmp.lt.s32.totalorder %s13, 3
      %p117 = pnand %p115, %p116
      %p118 = pneg %p117
      // Predicated region
      $region9: #{tpu_custom_call.1} parent=5 // pred_check
        _
      $region10: #{tpu_custom_call.1} parent=5 // pred_check_branch
        %120 = sbr.rel (%p117) target = $region12
      $region11: #{tpu_custom_call.1} parent=5 // pred_region
        %s121 = ssub.s32 %s13, 1
        // Predicated region
        $region13: #{tpu_custom_call.1} parent=11 // pred_check
          %p122 = pneg %p60
        $region14: #{tpu_custom_call.1} parent=11 // pred_check_branch
          %124 = sbr.rel (%p122) target = $region16
        $region15: #{tpu_custom_call.1} parent=11 // pred_region
          %s126 = ssub.s32 13312, 13312
          %127 = vsyncadd [#allocation3], %s126
          %s128 = sshll.u32 [#allocation2], 4
          %s129 = int_to_ptr.vmem [resolvable:$true] %s128
          %134 = dma.hbm_to_vmem [thread:$0]  %s1, 13312, %s129, [#allocation3], 128, 128, 8
        $region16: #{tpu_custom_call.1} parent=11 // pred_fallthru
          _
        // Predicated region
        $region17: #{tpu_custom_call.1} parent=11 // pred_check
          %p135 = pneg %p81
        $region18: #{tpu_custom_call.1} parent=11 // pred_check_branch
          %137 = sbr.rel (%p135) target = $region20
        $region19: #{tpu_custom_call.1} parent=11 // pred_region
          _
        $region20: #{tpu_custom_call.1} parent=11 // pred_fallthru
          _
      $region12: #{tpu_custom_call.1} parent=5 // pred_fallthru
        _
      %p138 = scmp.lt.s32.totalorder %s13, 2
      // Predicated region
      $region21: #{tpu_custom_call.1} parent=5 // pred_check
        %p139 = pneg %p138
      $region22: #{tpu_custom_call.1} parent=5 // pred_check_branch
        %141 = sbr.rel (%p139) target = $region24
      $region23: #{tpu_custom_call.1} parent=5 // pred_region
        // Predicated region
        $region25: #{tpu_custom_call.1} parent=23 // pred_check
          %p142 = pneg %p33
        $region26: #{tpu_custom_call.1} parent=23 // pred_check_branch
          %144 = sbr.rel (%p142) target = $region28
        $region27: #{tpu_custom_call.1} parent=23 // pred_region
          %s145 = smul.u32 16, %s13
          %p146 = scmp.lt.s32.totalorder %s145, 31
          %s147 = scalar_select %p146, %s145, 31
          %s148 = smul.addr %s147, 8
          %s149 = scalar_lea.vmem %s0, %s148
          %s150 = smul.u32 16, %s13
        $region28: #{tpu_custom_call.1} parent=23 // pred_fallthru
          _
      $region24: #{tpu_custom_call.1} parent=5 // pred_fallthru
        _
      %p151 = scmp.le.s32.totalorder 1, %s13
      %p152 = scmp.lt.s32.totalorder %s13, 3
      %p153 = pnand %p151, %p152
      %p154 = pneg %p153
      // Predicated region
      $region29: #{tpu_custom_call.1} parent=5 // pred_check
        _
      $region30: #{tpu_custom_call.1} parent=5 // pred_check_branch
        %156 = sbr.rel (%p153) target = $region32
      $region31: #{tpu_custom_call.1} parent=5 // pred_region
        %s157 = ssub.s32 %s13, 1
        // Predicated region
        $region33: #{tpu_custom_call.1} parent=31 // pred_check
          %p158 = pneg %p60
        $region34: #{tpu_custom_call.1} parent=31 // pred_check_branch
          %160 = sbr.rel (%p158) target = $region36
        $region35: #{tpu_custom_call.1} parent=31 // pred_region
          %161 = dma.done [#allocation3], 13312
        $region36: #{tpu_custom_call.1} parent=31 // pred_fallthru
          _
        %s162 = smul.u32 16, %s18
        %p163 = scmp.lt.s32.totalorder %s162, 31
        %s164 = scalar_select %p163, %s162, 31
        %s165 = smul.addr %s164, 8
        %s166 = scalar_lea.vmem %s0, %s165
        %p167 = pneg %p39
        %p168 = pneg %p36
        %p169 = pneg %p60
        %p170 = pneg %p57
        %p171 = pneg %p81
        %p172 = pneg %p78
        %p173 = pneg %p107
        %p174 = pneg %p104
        %s175 = sand.u32 %s94, 1
        %s176 = scalar_lea.sflag [#allocation4], %s175
        %s177 = sand.u32 %s94, 1
        %s178 = smul.addr %s177, 128
        %s179 = scalar_lea.vmem [#allocation5], %s178
        %s180 = smul.u32 16, %s18
        %p181 = scmp.lt.s32.totalorder %s180, 31
        %s182 = scalar_select %p181, %s180, 31
        %s183 = smul.addr %s182, 8
        %s184 = scalar_lea.vmem %s0, %s183
        %s185 = smul.u32 16, %s18
        %s186 = smul.u32 16, %s18
        %v188 = vld [vmem:[%s184] sm:$0xff]
        %v189 = vld [vmem:[%s184 + $0x8] sm:$0xff]
        %v190 = vld [vmem:[%s184 + $0x10] sm:$0xff]
        %v191 = vld [vmem:[%s184 + $0x18] sm:$0xff]
        %v192 = vld [vmem:[%s184 + $0x20] sm:$0xff]
        %v193 = vld [vmem:[%s184 + $0x28] sm:$0xff]
        %v194 = vld [vmem:[%s184 + $0x30] sm:$0xff]
        %v195 = vld [vmem:[%s184 + $0x38] sm:$0xff]
        %v196 = vld [vmem:[%s184 + $0x40] sm:$0xff]
        %v197 = vld [vmem:[%s184 + $0x48] sm:$0xff]
        %v198 = vld [vmem:[%s184 + $0x50] sm:$0xff]
        %v199 = vld [vmem:[%s184 + $0x58] sm:$0xff]
        %v200 = vld [vmem:[%s184 + $0x60] sm:$0xff]
        %v201 = vld [vmem:[%s184 + $0x68] sm:$0xff]
        %v202 = vld [vmem:[%s184 + $0x70] sm:$0xff]
        %v203 = vld [vmem:[%s184 + $0x78] sm:$0xff]
        %v204 = vld [vmem:[%s2] sm:$0xff]
        %v205 = vld [vmem:[%s2 + $0x8] sm:$0xff]
        %207 = vset.pattern.permute.xlu0 8
        %208 = vperm.xlu0 %207, %v188
        %v209 = vpop.permute.xlu0 %208
        %212 = vset.pattern.permute.xlu0 8
        %213 = vperm.xlu0 %212, %v189
        %v214 = vpop.permute.xlu0 %213
        %217 = vset.pattern.permute.xlu0 8
        %218 = vperm.xlu0 %217, %v190
        %v219 = vpop.permute.xlu0 %218
        %222 = vset.pattern.permute.xlu0 8
        %223 = vperm.xlu0 %222, %v191
        %v224 = vpop.permute.xlu0 %223
        %227 = vset.pattern.permute.xlu0 8
        %228 = vperm.xlu0 %227, %v192
        %v229 = vpop.permute.xlu0 %228
        %232 = vset.pattern.permute.xlu0 8
        %233 = vperm.xlu0 %232, %v193
        %v234 = vpop.permute.xlu0 %233
        %237 = vset.pattern.permute.xlu0 8
        %238 = vperm.xlu0 %237, %v194
        %v239 = vpop.permute.xlu0 %238
        %242 = vset.pattern.permute.xlu0 8
        %243 = vperm.xlu0 %242, %v195
        %v244 = vpop.permute.xlu0 %243
        %247 = vset.pattern.permute.xlu0 8
        %248 = vperm.xlu0 %247, %v196
        %v249 = vpop.permute.xlu0 %248
        %252 = vset.pattern.permute.xlu0 8
        %253 = vperm.xlu0 %252, %v197
        %v254 = vpop.permute.xlu0 %253
        %257 = vset.pattern.permute.xlu0 8
        %258 = vperm.xlu0 %257, %v198
        %v259 = vpop.permute.xlu0 %258
        %262 = vset.pattern.permute.xlu0 8
        %263 = vperm.xlu0 %262, %v199
        %v264 = vpop.permute.xlu0 %263
        %267 = vset.pattern.permute.xlu0 8
        %268 = vperm.xlu0 %267, %v200
        %v269 = vpop.permute.xlu0 %268
        %272 = vset.pattern.permute.xlu0 8
        %273 = vperm.xlu0 %272, %v201
        %v274 = vpop.permute.xlu0 %273
        %277 = vset.pattern.permute.xlu0 8
        %278 = vperm.xlu0 %277, %v202
        %v279 = vpop.permute.xlu0 %278
        %282 = vset.pattern.permute.xlu0 8
        %283 = vperm.xlu0 %282, %v203
        %v284 = vpop.permute.xlu0 %283
        %v286 = vlaneseq
        %v287 = vshrl.u32 %v286, 7
        %v288 = vsub.s32 0, %v287
        %v289 = vrot.slane %v204, %v288
        %v290 = vmul.f32 %v209, %v289
        %v291 = vmul.f32 %v214, %v289
        %v292 = vmul.f32 %v219, %v289
        %v293 = vmul.f32 %v224, %v289
        %v294 = vmul.f32 %v229, %v289
        %v295 = vmul.f32 %v234, %v289
        %v296 = vmul.f32 %v239, %v289
        %v297 = vmul.f32 %v244, %v289
        %v298 = vmul.f32 %v249, %v289
        %v299 = vmul.f32 %v254, %v289
        %v300 = vmul.f32 %v259, %v289
        %v301 = vmul.f32 %v264, %v289
        %v302 = vmul.f32 %v269, %v289
        %v303 = vmul.f32 %v274, %v289
        %v304 = vmul.f32 %v279, %v289
        %v305 = vmul.f32 %v284, %v289
        %v306 = vlaneseq
        %v307 = vshrl.u32 %v306, 7
        %v308 = vsub.s32 1, %v307
        %v309 = vrot.slane %v204, %v308
        %v310 = vadd.f32 %v290, %v309
        %v311 = vadd.f32 %v291, %v309
        %v312 = vadd.f32 %v292, %v309
        %v313 = vadd.f32 %v293, %v309
        %v314 = vadd.f32 %v294, %v309
        %v315 = vadd.f32 %v295, %v309
        %v316 = vadd.f32 %v296, %v309
        %v317 = vadd.f32 %v297, %v309
        %v318 = vadd.f32 %v298, %v309
        %v319 = vadd.f32 %v299, %v309
        %v320 = vadd.f32 %v300, %v309
        %v321 = vadd.f32 %v301, %v309
        %v322 = vadd.f32 %v302, %v309
        %v323 = vadd.f32 %v303, %v309
        %v324 = vadd.f32 %v304, %v309
        %v325 = vadd.f32 %v305, %v309
        %v326 = vand.u32 2147483647, %v310
        %vm327 = vcmp.le.f32.partialorder %v326, 0.7853982
        %vm328 = vcmp.lt.s32.totalorder %v310, 0
        %v329 = vand.u32 %v310, 2139095040
        %v330 = vshrl.u32 %v329, 23
        %v331 = vsub.s32 %v330, 127
        %v332 = vand.u32 2147483647, %v310
        %v333 = vand.u32 %v332, 8388607
        %v334 = vor.u32 %v333, 8388608
        %v335 = vsub.s32 0, %v334
        %v336 = vadd.s32 %v331, 1
        %vm337 = vcmp.gt.s32.totalorder %v336, 0
        %v338 = vsel %vm337, %v336, 0
        %v339 = vshrl.u32 %v338, 5
        %v340 = vand.u32 %v338, 31
        %v341 = vsub.s32 32, %v340
        %v342 = vshrl.u32 683565275, %v341
        %v343 = vshll.u32 683565275, %v340
        %v344 = vshrl.u32 2475754826, %v341
        %v345 = vor.u32 %v343, %v344
        %v346 = vshll.u32 2475754826, %v340
        %v347 = vshrl.u32 2131351028, %v341
        %v348 = vor.u32 %v346, %v347
        %v349 = vshll.u32 2131351028, %v340
        %v350 = vshrl.u32 2102212464, %v341
        %v351 = vor.u32 %v349, %v350
        %v352 = vshll.u32 2102212464, %v340
        %v353 = vshrl.u32 920167782, %v341
        %v354 = vor.u32 %v352, %v353
        %v355 = vshll.u32 920167782, %v340
        %v356 = vshrl.u32 1326507024, %v341
        %v357 = vor.u32 %v355, %v356
        %vm358 = vcmp.lt.s32.totalorder %v339, 1
        %vm359 = vcmp.lt.s32.totalorder %v339, 2
        %vm360 = vcmp.lt.s32.totalorder %v339, 3
        %vm361 = vcmp.lt.s32.totalorder %v339, 4
        %v362 = vsel %vm358, %v342, %v345
        %v363 = vsel %vm361, %v351, 2102212464
        %v364 = vsel %vm360, %v348, %v363
        %v365 = vsel %vm359, %v362, %v364
        %v366 = vsel %vm358, %v345, %v348
        %v367 = vsel %vm361, %v354, 920167782
        %v368 = vsel %vm360, %v351, %v367
        %v369 = vsel %vm359, %v366, %v368
        %v370 = vsel %vm358, %v348, %v351
        %v371 = vsel %vm361, %v357, 1326507024
        %v372 = vsel %vm360, %v354, %v371
        %v373 = vsel %vm359, %v370, %v372
        %v374 = vshll.u32 %v334, 8
        %v375 = vmul.u32.u64.compose %v374, %v373
        %v376 = vextract.low.u32 %v375
        %v377 = vextract.high.u32 %v375
        %v378 = vmul.u32.u64.compose %v374, %v369
        %v379 = vextract.low.u32 %v378
        %v380 = vextract.high.u32 %v378
        %v381 = vmul.u32 %v374, %v365
        %v382 = vadd.s32 %v377, %v379
        %vm383 = vc.u32 %v377, %v379
        %v384 = vadd.s32 %v380, 1
        %v385 = vsel %vm383, %v384, %v380
        %v386 = vadd.s32 %v381, %v385
        %v387 = vadd.s32 %v386, 536870912
        %v388 = vshrl.u32 %v387, 30
        %v389 = vshll.u32 %v388, 30
        %v390 = vsub.s32 %v386, %v389
        %vm391 = vcmp.lt.s32.totalorder %v390, 0
        %v392 = vsub.s32 0, %v390
        %v393 = vsel %vm391, %v392, %v390
        %v394 = vclz %v393
        %v395 = vsub.s32 %v394, 2
        %vm396 = vcmp.gt.s32.totalorder 0, %v395
        %v397 = vsel %vm396, 0, %v395
        %v398 = vsub.s32 32, %v397
        %v399 = vshll.u32 %v390, %v397
        %v400 = vshrl.u32 %v382, %v398
        %v401 = vor.u32 %v399, %v400
        %v402 = vsub.s32 4294967266, %v397
        %v403 = vadd.s32 %v402, 127
        %v404 = vshll.u32 %v403, 23
        %v405 = vor.u32 4788187, %v404
        %v406 = vand.u32 2147483647, %v405
        %v408 = vcvt.s32.f32 %v401
        %v409 = vmul.f32 %v408, %v406
        %v410 = vxor.u32 %v409, 2147483648
        %v411 = vsel %vm328, %v410, %v409
        %v412 = vsub.s32 4, %v388
        %v413 = vsel %vm328, %v412, %v388
        %v414 = vsel %vm327, %v310, %v411
        %v415 = vsel %vm327, 0, %v413
        %v416 = vcosq.f32.pop %v414
        %v417 = vsinq.f32.pop %v414
        %vm418 = vweird.f32 %v310
        %v419 = vadd.s32 %v415, 3
        %v420 = vand.u32 %v419, 3
        %vm421 = vcmp.lt.s32.totalorder %v420, 2
        %vm422 = vcmp.eq.s32.totalorder %v420, 0
        %v423 = vxor.u32 %v417, 2147483648
        %v424 = vsel %vm422, %v416, %v423
        %vm425 = vcmp.eq.s32.totalorder %v420, 2
        %v426 = vxor.u32 %v416, 2147483648
        %v427 = vsel %vm425, %v426, %v417
        %v428 = vsel %vm421, %v424, %v427
        %v429 = vsel %vm418, nan, %v428
        %v430 = vand.u32 2147483647, %v311
        %vm431 = vcmp.le.f32.partialorder %v430, 0.7853982
        %vm432 = vcmp.lt.s32.totalorder %v311, 0
        %v433 = vand.u32 %v311, 2139095040
        %v434 = vshrl.u32 %v433, 23
        %v435 = vsub.s32 %v434, 127
        %v436 = vand.u32 2147483647, %v311
        %v437 = vand.u32 %v436, 8388607
        %v438 = vor.u32 %v437, 8388608
        %v439 = vsub.s32 0, %v438
        %v440 = vadd.s32 %v435, 1
        %vm441 = vcmp.gt.s32.totalorder %v440, 0
        %v442 = vsel %vm441, %v440, 0
        %v443 = vshrl.u32 %v442, 5
        %v444 = vand.u32 %v442, 31
        %v445 = vsub.s32 32, %v444
        %v446 = vshrl.u32 683565275, %v445
        %v447 = vshll.u32 683565275, %v444
        %v448 = vshrl.u32 2475754826, %v445
        %v449 = vor.u32 %v447, %v448
        %v450 = vshll.u32 2475754826, %v444
        %v451 = vshrl.u32 2131351028, %v445
        %v452 = vor.u32 %v450, %v451
        %v453 = vshll.u32 2131351028, %v444
        %v454 = vshrl.u32 2102212464, %v445
        %v455 = vor.u32 %v453, %v454
        %v456 = vshll.u32 2102212464, %v444
        %v457 = vshrl.u32 920167782, %v445
        %v458 = vor.u32 %v456, %v457
        %v459 = vshll.u32 920167782, %v444
        %v460 = vshrl.u32 1326507024, %v445
        %v461 = vor.u32 %v459, %v460
        %vm462 = vcmp.lt.s32.totalorder %v443, 1
        %vm463 = vcmp.lt.s32.totalorder %v443, 2
        %vm464 = vcmp.lt.s32.totalorder %v443, 3
        %vm465 = vcmp.lt.s32.totalorder %v443, 4
        %v466 = vsel %vm462, %v446, %v449
        %v467 = vsel %vm465, %v455, 2102212464
        %v468 = vsel %vm464, %v452, %v467
        %v469 = vsel %vm463, %v466, %v468
        %v470 = vsel %vm462, %v449, %v452
        %v471 = vsel %vm465, %v458, 920167782
        %v472 = vsel %vm464, %v455, %v471
        %v473 = vsel %vm463, %v470, %v472
        %v474 = vsel %vm462, %v452, %v455
        %v475 = vsel %vm465, %v461, 1326507024
        %v476 = vsel %vm464, %v458, %v475
        %v477 = vsel %vm463, %v474, %v476
        %v478 = vshll.u32 %v438, 8
        %v479 = vmul.u32.u64.compose %v478, %v477
        %v480 = vextract.low.u32 %v479
        %v481 = vextract.high.u32 %v479
        %v482 = vmul.u32.u64.compose %v478, %v473
        %v483 = vextract.low.u32 %v482
        %v484 = vextract.high.u32 %v482
        %v485 = vmul.u32 %v478, %v469
        %v486 = vadd.s32 %v481, %v483
        %vm487 = vc.u32 %v481, %v483
        %v488 = vadd.s32 %v484, 1
        %v489 = vsel %vm487, %v488, %v484
        %v490 = vadd.s32 %v485, %v489
        %v491 = vadd.s32 %v490, 536870912
        %v492 = vshrl.u32 %v491, 30
        %v493 = vshll.u32 %v492, 30
        %v494 = vsub.s32 %v490, %v493
        %vm495 = vcmp.lt.s32.totalorder %v494, 0
        %v496 = vsub.s32 0, %v494
        %v497 = vsel %vm495, %v496, %v494
        %v498 = vclz %v497
        %v499 = vsub.s32 %v498, 2
        %vm500 = vcmp.gt.s32.totalorder 0, %v499
        %v501 = vsel %vm500, 0, %v499
        %v502 = vsub.s32 32, %v501
        %v503 = vshll.u32 %v494, %v501
        %v504 = vshrl.u32 %v486, %v502
        %v505 = vor.u32 %v503, %v504
        %v506 = vsub.s32 4294967266, %v501
        %v507 = vadd.s32 %v506, 127
        %v508 = vshll.u32 %v507, 23
        %v509 = vor.u32 4788187, %v508
        %v510 = vand.u32 2147483647, %v509
        %v512 = vcvt.s32.f32 %v505
        %v513 = vmul.f32 %v512, %v510
        %v514 = vxor.u32 %v513, 2147483648
        %v515 = vsel %vm432, %v514, %v513
        %v516 = vsub.s32 4, %v492
        %v517 = vsel %vm432, %v516, %v492
        %v518 = vsel %vm431, %v311, %v515
        %v519 = vsel %vm431, 0, %v517
        %v520 = vcosq.f32.pop %v518
        %v521 = vsinq.f32.pop %v518
        %vm522 = vweird.f32 %v311
        %v523 = vadd.s32 %v519, 3
        %v524 = vand.u32 %v523, 3
        %vm525 = vcmp.lt.s32.totalorder %v524, 2
        %vm526 = vcmp.eq.s32.totalorder %v524, 0
        %v527 = vxor.u32 %v521, 2147483648
        %v528 = vsel %vm526, %v520, %v527
        %vm529 = vcmp.eq.s32.totalorder %v524, 2
        %v530 = vxor.u32 %v520, 2147483648
        %v531 = vsel %vm529, %v530, %v521
        %v532 = vsel %vm525, %v528, %v531
        %v533 = vsel %vm522, nan, %v532
        %v534 = vand.u32 2147483647, %v312
        %vm535 = vcmp.le.f32.partialorder %v534, 0.7853982
        %vm536 = vcmp.lt.s32.totalorder %v312, 0
        %v537 = vand.u32 %v312, 2139095040
        %v538 = vshrl.u32 %v537, 23
        %v539 = vsub.s32 %v538, 127
        %v540 = vand.u32 2147483647, %v312
        %v541 = vand.u32 %v540, 8388607
        %v542 = vor.u32 %v541, 8388608
        %v543 = vsub.s32 0, %v542
        %v544 = vadd.s32 %v539, 1
        %vm545 = vcmp.gt.s32.totalorder %v544, 0
        %v546 = vsel %vm545, %v544, 0
        %v547 = vshrl.u32 %v546, 5
        %v548 = vand.u32 %v546, 31
        %v549 = vsub.s32 32, %v548
        %v550 = vshrl.u32 683565275, %v549
        %v551 = vshll.u32 683565275, %v548
        %v552 = vshrl.u32 2475754826, %v549
        %v553 = vor.u32 %v551, %v552
        %v554 = vshll.u32 2475754826, %v548
        %v555 = vshrl.u32 2131351028, %v549
        %v556 = vor.u32 %v554, %v555
        %v557 = vshll.u32 2131351028, %v548
        %v558 = vshrl.u32 2102212464, %v549
        %v559 = vor.u32 %v557, %v558
        %v560 = vshll.u32 2102212464, %v548
        %v561 = vshrl.u32 920167782, %v549
        %v562 = vor.u32 %v560, %v561
        %v563 = vshll.u32 920167782, %v548
        %v564 = vshrl.u32 1326507024, %v549
        %v565 = vor.u32 %v563, %v564
        %vm566 = vcmp.lt.s32.totalorder %v547, 1
        %vm567 = vcmp.lt.s32.totalorder %v547, 2
        %vm568 = vcmp.lt.s32.totalorder %v547, 3
        %vm569 = vcmp.lt.s32.totalorder %v547, 4
        %v570 = vsel %vm566, %v550, %v553
        %v571 = vsel %vm569, %v559, 2102212464
        %v572 = vsel %vm568, %v556, %v571
        %v573 = vsel %vm567, %v570, %v572
        %v574 = vsel %vm566, %v553, %v556
        %v575 = vsel %vm569, %v562, 920167782
        %v576 = vsel %vm568, %v559, %v575
        %v577 = vsel %vm567, %v574, %v576
        %v578 = vsel %vm566, %v556, %v559
        %v579 = vsel %vm569, %v565, 1326507024
        %v580 = vsel %vm568, %v562, %v579
        %v581 = vsel %vm567, %v578, %v580
        %v582 = vshll.u32 %v542, 8
        %v583 = vmul.u32.u64.compose %v582, %v581
        %v584 = vextract.low.u32 %v583
        %v585 = vextract.high.u32 %v583
        %v586 = vmul.u32.u64.compose %v582, %v577
        %v587 = vextract.low.u32 %v586
        %v588 = vextract.high.u32 %v586
        %v589 = vmul.u32 %v582, %v573
        %v590 = vadd.s32 %v585, %v587
        %vm591 = vc.u32 %v585, %v587
        %v592 = vadd.s32 %v588, 1
        %v593 = vsel %vm591, %v592, %v588
        %v594 = vadd.s32 %v589, %v593
        %v595 = vadd.s32 %v594, 536870912
        %v596 = vshrl.u32 %v595, 30
        %v597 = vshll.u32 %v596, 30
        %v598 = vsub.s32 %v594, %v597
        %vm599 = vcmp.lt.s32.totalorder %v598, 0
        %v600 = vsub.s32 0, %v598
        %v601 = vsel %vm599, %v600, %v598
        %v602 = vclz %v601
        %v603 = vsub.s32 %v602, 2
        %vm604 = vcmp.gt.s32.totalorder 0, %v603
        %v605 = vsel %vm604, 0, %v603
        %v606 = vsub.s32 32, %v605
        %v607 = vshll.u32 %v598, %v605
        %v608 = vshrl.u32 %v590, %v606
        %v609 = vor.u32 %v607, %v608
        %v610 = vsub.s32 4294967266, %v605
        %v611 = vadd.s32 %v610, 127
        %v612 = vshll.u32 %v611, 23
        %v613 = vor.u32 4788187, %v612
        %v614 = vand.u32 2147483647, %v613
        %v616 = vcvt.s32.f32 %v609
        %v617 = vmul.f32 %v616, %v614
        %v618 = vxor.u32 %v617, 2147483648
        %v619 = vsel %vm536, %v618, %v617
        %v620 = vsub.s32 4, %v596
        %v621 = vsel %vm536, %v620, %v596
        %v622 = vsel %vm535, %v312, %v619
        %v623 = vsel %vm535, 0, %v621
        %v624 = vcosq.f32.pop %v622
        %v625 = vsinq.f32.pop %v622
        %vm626 = vweird.f32 %v312
        %v627 = vadd.s32 %v623, 3
        %v628 = vand.u32 %v627, 3
        %vm629 = vcmp.lt.s32.totalorder %v628, 2
        %vm630 = vcmp.eq.s32.totalorder %v628, 0
        %v631 = vxor.u32 %v625, 2147483648
        %v632 = vsel %vm630, %v624, %v631
        %vm633 = vcmp.eq.s32.totalorder %v628, 2
        %v634 = vxor.u32 %v624, 2147483648
        %v635 = vsel %vm633, %v634, %v625
        %v636 = vsel %vm629, %v632, %v635
        %v637 = vsel %vm626, nan, %v636
        %v638 = vand.u32 2147483647, %v313
        %vm639 = vcmp.le.f32.partialorder %v638, 0.7853982
        %vm640 = vcmp.lt.s32.totalorder %v313, 0
        %v641 = vand.u32 %v313, 2139095040
        %v642 = vshrl.u32 %v641, 23
        %v643 = vsub.s32 %v642, 127
        %v644 = vand.u32 2147483647, %v313
        %v645 = vand.u32 %v644, 8388607
        %v646 = vor.u32 %v645, 8388608
        %v647 = vsub.s32 0, %v646
        %v648 = vadd.s32 %v643, 1
        %vm649 = vcmp.gt.s32.totalorder %v648, 0
        %v650 = vsel %vm649, %v648, 0
        %v651 = vshrl.u32 %v650, 5
        %v652 = vand.u32 %v650, 31
        %v653 = vsub.s32 32, %v652
        %v654 = vshrl.u32 683565275, %v653
        %v655 = vshll.u32 683565275, %v652
        %v656 = vshrl.u32 2475754826, %v653
        %v657 = vor.u32 %v655, %v656
        %v658 = vshll.u32 2475754826, %v652
        %v659 = vshrl.u32 2131351028, %v653
        %v660 = vor.u32 %v658, %v659
        %v661 = vshll.u32 2131351028, %v652
        %v662 = vshrl.u32 2102212464, %v653
        %v663 = vor.u32 %v661, %v662
        %v664 = vshll.u32 2102212464, %v652
        %v665 = vshrl.u32 920167782, %v653
        %v666 = vor.u32 %v664, %v665
        %v667 = vshll.u32 920167782, %v652
        %v668 = vshrl.u32 1326507024, %v653
        %v669 = vor.u32 %v667, %v668
        %vm670 = vcmp.lt.s32.totalorder %v651, 1
        %vm671 = vcmp.lt.s32.totalorder %v651, 2
        %vm672 = vcmp.lt.s32.totalorder %v651, 3
        %vm673 = vcmp.lt.s32.totalorder %v651, 4
        %v674 = vsel %vm670, %v654, %v657
        %v675 = vsel %vm673, %v663, 2102212464
        %v676 = vsel %vm672, %v660, %v675
        %v677 = vsel %vm671, %v674, %v676
        %v678 = vsel %vm670, %v657, %v660
        %v679 = vsel %vm673, %v666, 920167782
        %v680 = vsel %vm672, %v663, %v679
        %v681 = vsel %vm671, %v678, %v680
        %v682 = vsel %vm670, %v660, %v663
        %v683 = vsel %vm673, %v669, 1326507024
        %v684 = vsel %vm672, %v666, %v683
        %v685 = vsel %vm671, %v682, %v684
        %v686 = vshll.u32 %v646, 8
        %v687 = vmul.u32.u64.compose %v686, %v685
        %v688 = vextract.low.u32 %v687
        %v689 = vextract.high.u32 %v687
        %v690 = vmul.u32.u64.compose %v686, %v681
        %v691 = vextract.low.u32 %v690
        %v692 = vextract.high.u32 %v690
        %v693 = vmul.u32 %v686, %v677
        %v694 = vadd.s32 %v689, %v691
        %vm695 = vc.u32 %v689, %v691
        %v696 = vadd.s32 %v692, 1
        %v697 = vsel %vm695, %v696, %v692
        %v698 = vadd.s32 %v693, %v697
        %v699 = vadd.s32 %v698, 536870912
        %v700 = vshrl.u32 %v699, 30
        %v701 = vshll.u32 %v700, 30
        %v702 = vsub.s32 %v698, %v701
        %vm703 = vcmp.lt.s32.totalorder %v702, 0
        %v704 = vsub.s32 0, %v702
        %v705 = vsel %vm703, %v704, %v702
        %v706 = vclz %v705
        %v707 = vsub.s32 %v706, 2
        %vm708 = vcmp.gt.s32.totalorder 0, %v707
        %v709 = vsel %vm708, 0, %v707
        %v710 = vsub.s32 32, %v709
        %v711 = vshll.u32 %v702, %v709
        %v712 = vshrl.u32 %v694, %v710
        %v713 = vor.u32 %v711, %v712
        %v714 = vsub.s32 4294967266, %v709
        %v715 = vadd.s32 %v714, 127
        %v716 = vshll.u32 %v715, 23
        %v717 = vor.u32 4788187, %v716
        %v718 = vand.u32 2147483647, %v717
        %v720 = vcvt.s32.f32 %v713
        %v721 = vmul.f32 %v720, %v718
        %v722 = vxor.u32 %v721, 2147483648
        %v723 = vsel %vm640, %v722, %v721
        %v724 = vsub.s32 4, %v700
        %v725 = vsel %vm640, %v724, %v700
        %v726 = vsel %vm639, %v313, %v723
        %v727 = vsel %vm639, 0, %v725
        %v728 = vcosq.f32.pop %v726
        %v729 = vsinq.f32.pop %v726
        %vm730 = vweird.f32 %v313
        %v731 = vadd.s32 %v727, 3
        %v732 = vand.u32 %v731, 3
        %vm733 = vcmp.lt.s32.totalorder %v732, 2
        %vm734 = vcmp.eq.s32.totalorder %v732, 0
        %v735 = vxor.u32 %v729, 2147483648
        %v736 = vsel %vm734, %v728, %v735
        %vm737 = vcmp.eq.s32.totalorder %v732, 2
        %v738 = vxor.u32 %v728, 2147483648
        %v739 = vsel %vm737, %v738, %v729
        %v740 = vsel %vm733, %v736, %v739
        %v741 = vsel %vm730, nan, %v740
        %v742 = vand.u32 2147483647, %v314
        %vm743 = vcmp.le.f32.partialorder %v742, 0.7853982
        %vm744 = vcmp.lt.s32.totalorder %v314, 0
        %v745 = vand.u32 %v314, 2139095040
        %v746 = vshrl.u32 %v745, 23
        %v747 = vsub.s32 %v746, 127
        %v748 = vand.u32 2147483647, %v314
        %v749 = vand.u32 %v748, 8388607
        %v750 = vor.u32 %v749, 8388608
        %v751 = vsub.s32 0, %v750
        %v752 = vadd.s32 %v747, 1
        %vm753 = vcmp.gt.s32.totalorder %v752, 0
        %v754 = vsel %vm753, %v752, 0
        %v755 = vshrl.u32 %v754, 5
        %v756 = vand.u32 %v754, 31
        %v757 = vsub.s32 32, %v756
        %v758 = vshrl.u32 683565275, %v757
        %v759 = vshll.u32 683565275, %v756
        %v760 = vshrl.u32 2475754826, %v757
        %v761 = vor.u32 %v759, %v760
        %v762 = vshll.u32 2475754826, %v756
        %v763 = vshrl.u32 2131351028, %v757
        %v764 = vor.u32 %v762, %v763
        %v765 = vshll.u32 2131351028, %v756
        %v766 = vshrl.u32 2102212464, %v757
        %v767 = vor.u32 %v765, %v766
        %v768 = vshll.u32 2102212464, %v756
        %v769 = vshrl.u32 920167782, %v757
        %v770 = vor.u32 %v768, %v769
        %v771 = vshll.u32 920167782, %v756
        %v772 = vshrl.u32 1326507024, %v757
        %v773 = vor.u32 %v771, %v772
        %vm774 = vcmp.lt.s32.totalorder %v755, 1
        %vm775 = vcmp.lt.s32.totalorder %v755, 2
        %vm776 = vcmp.lt.s32.totalorder %v755, 3
        %vm777 = vcmp.lt.s32.totalorder %v755, 4
        %v778 = vsel %vm774, %v758, %v761
        %v779 = vsel %vm777, %v767, 2102212464
        %v780 = vsel %vm776, %v764, %v779
        %v781 = vsel %vm775, %v778, %v780
        %v782 = vsel %vm774, %v761, %v764
        %v783 = vsel %vm777, %v770, 920167782
        %v784 = vsel %vm776, %v767, %v783
        %v785 = vsel %vm775, %v782, %v784
        %v786 = vsel %vm774, %v764, %v767
        %v787 = vsel %vm777, %v773, 1326507024
        %v788 = vsel %vm776, %v770, %v787
        %v789 = vsel %vm775, %v786, %v788
        %v790 = vshll.u32 %v750, 8
        %v791 = vmul.u32.u64.compose %v790, %v789
        %v792 = vextract.low.u32 %v791
        %v793 = vextract.high.u32 %v791
        %v794 = vmul.u32.u64.compose %v790, %v785
        %v795 = vextract.low.u32 %v794
        %v796 = vextract.high.u32 %v794
        %v797 = vmul.u32 %v790, %v781
        %v798 = vadd.s32 %v793, %v795
        %vm799 = vc.u32 %v793, %v795
        %v800 = vadd.s32 %v796, 1
        %v801 = vsel %vm799, %v800, %v796
        %v802 = vadd.s32 %v797, %v801
        %v803 = vadd.s32 %v802, 536870912
        %v804 = vshrl.u32 %v803, 30
        %v805 = vshll.u32 %v804, 30
        %v806 = vsub.s32 %v802, %v805
        %vm807 = vcmp.lt.s32.totalorder %v806, 0
        %v808 = vsub.s32 0, %v806
        %v809 = vsel %vm807, %v808, %v806
        %v810 = vclz %v809
        %v811 = vsub.s32 %v810, 2
        %vm812 = vcmp.gt.s32.totalorder 0, %v811
        %v813 = vsel %vm812, 0, %v811
        %v814 = vsub.s32 32, %v813
        %v815 = vshll.u32 %v806, %v813
        %v816 = vshrl.u32 %v798, %v814
        %v817 = vor.u32 %v815, %v816
        %v818 = vsub.s32 4294967266, %v813
        %v819 = vadd.s32 %v818, 127
        %v820 = vshll.u32 %v819, 23
        %v821 = vor.u32 4788187, %v820
        %v822 = vand.u32 2147483647, %v821
        %v824 = vcvt.s32.f32 %v817
        %v825 = vmul.f32 %v824, %v822
        %v826 = vxor.u32 %v825, 2147483648
        %v827 = vsel %vm744, %v826, %v825
        %v828 = vsub.s32 4, %v804
        %v829 = vsel %vm744, %v828, %v804
        %v830 = vsel %vm743, %v314, %v827
        %v831 = vsel %vm743, 0, %v829
        %v832 = vcosq.f32.pop %v830
        %v833 = vsinq.f32.pop %v830
        %vm834 = vweird.f32 %v314
        %v835 = vadd.s32 %v831, 3
        %v836 = vand.u32 %v835, 3
        %vm837 = vcmp.lt.s32.totalorder %v836, 2
        %vm838 = vcmp.eq.s32.totalorder %v836, 0
        %v839 = vxor.u32 %v833, 2147483648
        %v840 = vsel %vm838, %v832, %v839
        %vm841 = vcmp.eq.s32.totalorder %v836, 2
        %v842 = vxor.u32 %v832, 2147483648
        %v843 = vsel %vm841, %v842, %v833
        %v844 = vsel %vm837, %v840, %v843
        %v845 = vsel %vm834, nan, %v844
        %v846 = vand.u32 2147483647, %v315
        %vm847 = vcmp.le.f32.partialorder %v846, 0.7853982
        %vm848 = vcmp.lt.s32.totalorder %v315, 0
        %v849 = vand.u32 %v315, 2139095040
        %v850 = vshrl.u32 %v849, 23
        %v851 = vsub.s32 %v850, 127
        %v852 = vand.u32 2147483647, %v315
        %v853 = vand.u32 %v852, 8388607
        %v854 = vor.u32 %v853, 8388608
        %v855 = vsub.s32 0, %v854
        %v856 = vadd.s32 %v851, 1
        %vm857 = vcmp.gt.s32.totalorder %v856, 0
        %v858 = vsel %vm857, %v856, 0
        %v859 = vshrl.u32 %v858, 5
        %v860 = vand.u32 %v858, 31
        %v861 = vsub.s32 32, %v860
        %v862 = vshrl.u32 683565275, %v861
        %v863 = vshll.u32 683565275, %v860
        %v864 = vshrl.u32 2475754826, %v861
        %v865 = vor.u32 %v863, %v864
        %v866 = vshll.u32 2475754826, %v860
        %v867 = vshrl.u32 2131351028, %v861
        %v868 = vor.u32 %v866, %v867
        %v869 = vshll.u32 2131351028, %v860
        %v870 = vshrl.u32 2102212464, %v861
        %v871 = vor.u32 %v869, %v870
        %v872 = vshll.u32 2102212464, %v860
        %v873 = vshrl.u32 920167782, %v861
        %v874 = vor.u32 %v872, %v873
        %v875 = vshll.u32 920167782, %v860
        %v876 = vshrl.u32 1326507024, %v861
        %v877 = vor.u32 %v875, %v876
        %vm878 = vcmp.lt.s32.totalorder %v859, 1
        %vm879 = vcmp.lt.s32.totalorder %v859, 2
        %vm880 = vcmp.lt.s32.totalorder %v859, 3
        %vm881 = vcmp.lt.s32.totalorder %v859, 4
        %v882 = vsel %vm878, %v862, %v865
        %v883 = vsel %vm881, %v871, 2102212464
        %v884 = vsel %vm880, %v868, %v883
        %v885 = vsel %vm879, %v882, %v884
        %v886 = vsel %vm878, %v865, %v868
        %v887 = vsel %vm881, %v874, 920167782
        %v888 = vsel %vm880, %v871, %v887
        %v889 = vsel %vm879, %v886, %v888
        %v890 = vsel %vm878, %v868, %v871
        %v891 = vsel %vm881, %v877, 1326507024
        %v892 = vsel %vm880, %v874, %v891
        %v893 = vsel %vm879, %v890, %v892
        %v894 = vshll.u32 %v854, 8
        %v895 = vmul.u32.u64.compose %v894, %v893
        %v896 = vextract.low.u32 %v895
        %v897 = vextract.high.u32 %v895
        %v898 = vmul.u32.u64.compose %v894, %v889
        %v899 = vextract.low.u32 %v898
        %v900 = vextract.high.u32 %v898
        %v901 = vmul.u32 %v894, %v885
        %v902 = vadd.s32 %v897, %v899
        %vm903 = vc.u32 %v897, %v899
        %v904 = vadd.s32 %v900, 1
        %v905 = vsel %vm903, %v904, %v900
        %v906 = vadd.s32 %v901, %v905
        %v907 = vadd.s32 %v906, 536870912
        %v908 = vshrl.u32 %v907, 30
        %v909 = vshll.u32 %v908, 30
        %v910 = vsub.s32 %v906, %v909
        %vm911 = vcmp.lt.s32.totalorder %v910, 0
        %v912 = vsub.s32 0, %v910
        %v913 = vsel %vm911, %v912, %v910
        %v914 = vclz %v913
        %v915 = vsub.s32 %v914, 2
        %vm916 = vcmp.gt.s32.totalorder 0, %v915
        %v917 = vsel %vm916, 0, %v915
        %v918 = vsub.s32 32, %v917
        %v919 = vshll.u32 %v910, %v917
        %v920 = vshrl.u32 %v902, %v918
        %v921 = vor.u32 %v919, %v920
        %v922 = vsub.s32 4294967266, %v917
        %v923 = vadd.s32 %v922, 127
        %v924 = vshll.u32 %v923, 23
        %v925 = vor.u32 4788187, %v924
        %v926 = vand.u32 2147483647, %v925
        %v928 = vcvt.s32.f32 %v921
        %v929 = vmul.f32 %v928, %v926
        %v930 = vxor.u32 %v929, 2147483648
        %v931 = vsel %vm848, %v930, %v929
        %v932 = vsub.s32 4, %v908
        %v933 = vsel %vm848, %v932, %v908
        %v934 = vsel %vm847, %v315, %v931
        %v935 = vsel %vm847, 0, %v933
        %v936 = vcosq.f32.pop %v934
        %v937 = vsinq.f32.pop %v934
        %vm938 = vweird.f32 %v315
        %v939 = vadd.s32 %v935, 3
        %v940 = vand.u32 %v939, 3
        %vm941 = vcmp.lt.s32.totalorder %v940, 2
        %vm942 = vcmp.eq.s32.totalorder %v940, 0
        %v943 = vxor.u32 %v937, 2147483648
        %v944 = vsel %vm942, %v936, %v943
        %vm945 = vcmp.eq.s32.totalorder %v940, 2
        %v946 = vxor.u32 %v936, 2147483648
        %v947 = vsel %vm945, %v946, %v937
        %v948 = vsel %vm941, %v944, %v947
        %v949 = vsel %vm938, nan, %v948
        %v950 = vand.u32 2147483647, %v316
        %vm951 = vcmp.le.f32.partialorder %v950, 0.7853982
        %vm952 = vcmp.lt.s32.totalorder %v316, 0
        %v953 = vand.u32 %v316, 2139095040
        %v954 = vshrl.u32 %v953, 23
        %v955 = vsub.s32 %v954, 127
        %v956 = vand.u32 2147483647, %v316
        %v957 = vand.u32 %v956, 8388607
        %v958 = vor.u32 %v957, 8388608
        %v959 = vsub.s32 0, %v958
        %v960 = vadd.s32 %v955, 1
        %vm961 = vcmp.gt.s32.totalorder %v960, 0
        %v962 = vsel %vm961, %v960, 0
        %v963 = vshrl.u32 %v962, 5
        %v964 = vand.u32 %v962, 31
        %v965 = vsub.s32 32, %v964
        %v966 = vshrl.u32 683565275, %v965
        %v967 = vshll.u32 683565275, %v964
        %v968 = vshrl.u32 2475754826, %v965
        %v969 = vor.u32 %v967, %v968
        %v970 = vshll.u32 2475754826, %v964
        %v971 = vshrl.u32 2131351028, %v965
        %v972 = vor.u32 %v970, %v971
        %v973 = vshll.u32 2131351028, %v964
        %v974 = vshrl.u32 2102212464, %v965
        %v975 = vor.u32 %v973, %v974
        %v976 = vshll.u32 2102212464, %v964
        %v977 = vshrl.u32 920167782, %v965
        %v978 = vor.u32 %v976, %v977
        %v979 = vshll.u32 920167782, %v964
        %v980 = vshrl.u32 1326507024, %v965
        %v981 = vor.u32 %v979, %v980
        %vm982 = vcmp.lt.s32.totalorder %v963, 1
        %vm983 = vcmp.lt.s32.totalorder %v963, 2
        %vm984 = vcmp.lt.s32.totalorder %v963, 3
        %vm985 = vcmp.lt.s32.totalorder %v963, 4
        %v986 = vsel %vm982, %v966, %v969
        %v987 = vsel %vm985, %v975, 2102212464
        %v988 = vsel %vm984, %v972, %v987
        %v989 = vsel %vm983, %v986, %v988
        %v990 = vsel %vm982, %v969, %v972
        %v991 = vsel %vm985, %v978, 920167782
        %v992 = vsel %vm984, %v975, %v991
        %v993 = vsel %vm983, %v990, %v992
        %v994 = vsel %vm982, %v972, %v975
        %v995 = vsel %vm985, %v981, 1326507024
        %v996 = vsel %vm984, %v978, %v995
        %v997 = vsel %vm983, %v994, %v996
        %v998 = vshll.u32 %v958, 8
        %v999 = vmul.u32.u64.compose %v998, %v997
        %v1000 = vextract.low.u32 %v999
        %v1001 = vextract.high.u32 %v999
        %v1002 = vmul.u32.u64.compose %v998, %v993
        %v1003 = vextract.low.u32 %v1002
        %v1004 = vextract.high.u32 %v1002
        %v1005 = vmul.u32 %v998, %v989
        %v1006 = vadd.s32 %v1001, %v1003
        %vm1007 = vc.u32 %v1001, %v1003
        %v1008 = vadd.s32 %v1004, 1
        %v1009 = vsel %vm1007, %v1008, %v1004
        %v1010 = vadd.s32 %v1005, %v1009
        %v1011 = vadd.s32 %v1010, 536870912
        %v1012 = vshrl.u32 %v1011, 30
        %v1013 = vshll.u32 %v1012, 30
        %v1014 = vsub.s32 %v1010, %v1013
        %vm1015 = vcmp.lt.s32.totalorder %v1014, 0
        %v1016 = vsub.s32 0, %v1014
        %v1017 = vsel %vm1015, %v1016, %v1014
        %v1018 = vclz %v1017
        %v1019 = vsub.s32 %v1018, 2
        %vm1020 = vcmp.gt.s32.totalorder 0, %v1019
        %v1021 = vsel %vm1020, 0, %v1019
        %v1022 = vsub.s32 32, %v1021
        %v1023 = vshll.u32 %v1014, %v1021
        %v1024 = vshrl.u32 %v1006, %v1022
        %v1025 = vor.u32 %v1023, %v1024
        %v1026 = vsub.s32 4294967266, %v1021
        %v1027 = vadd.s32 %v1026, 127
        %v1028 = vshll.u32 %v1027, 23
        %v1029 = vor.u32 4788187, %v1028
        %v1030 = vand.u32 2147483647, %v1029
        %v1032 = vcvt.s32.f32 %v1025
        %v1033 = vmul.f32 %v1032, %v1030
        %v1034 = vxor.u32 %v1033, 2147483648
        %v1035 = vsel %vm952, %v1034, %v1033
        %v1036 = vsub.s32 4, %v1012
        %v1037 = vsel %vm952, %v1036, %v1012
        %v1038 = vsel %vm951, %v316, %v1035
        %v1039 = vsel %vm951, 0, %v1037
        %v1040 = vcosq.f32.pop %v1038
        %v1041 = vsinq.f32.pop %v1038
        %vm1042 = vweird.f32 %v316
        %v1043 = vadd.s32 %v1039, 3
        %v1044 = vand.u32 %v1043, 3
        %vm1045 = vcmp.lt.s32.totalorder %v1044, 2
        %vm1046 = vcmp.eq.s32.totalorder %v1044, 0
        %v1047 = vxor.u32 %v1041, 2147483648
        %v1048 = vsel %vm1046, %v1040, %v1047
        %vm1049 = vcmp.eq.s32.totalorder %v1044, 2
        %v1050 = vxor.u32 %v1040, 2147483648
        %v1051 = vsel %vm1049, %v1050, %v1041
        %v1052 = vsel %vm1045, %v1048, %v1051
        %v1053 = vsel %vm1042, nan, %v1052
        %v1054 = vand.u32 2147483647, %v317
        %vm1055 = vcmp.le.f32.partialorder %v1054, 0.7853982
        %vm1056 = vcmp.lt.s32.totalorder %v317, 0
        %v1057 = vand.u32 %v317, 2139095040
        %v1058 = vshrl.u32 %v1057, 23
        %v1059 = vsub.s32 %v1058, 127
        %v1060 = vand.u32 2147483647, %v317
        %v1061 = vand.u32 %v1060, 8388607
        %v1062 = vor.u32 %v1061, 8388608
        %v1063 = vsub.s32 0, %v1062
        %v1064 = vadd.s32 %v1059, 1
        %vm1065 = vcmp.gt.s32.totalorder %v1064, 0
        %v1066 = vsel %vm1065, %v1064, 0
        %v1067 = vshrl.u32 %v1066, 5
        %v1068 = vand.u32 %v1066, 31
        %v1069 = vsub.s32 32, %v1068
        %v1070 = vshrl.u32 683565275, %v1069
        %v1071 = vshll.u32 683565275, %v1068
        %v1072 = vshrl.u32 2475754826, %v1069
        %v1073 = vor.u32 %v1071, %v1072
        %v1074 = vshll.u32 2475754826, %v1068
        %v1075 = vshrl.u32 2131351028, %v1069
        %v1076 = vor.u32 %v1074, %v1075
        %v1077 = vshll.u32 2131351028, %v1068
        %v1078 = vshrl.u32 2102212464, %v1069
        %v1079 = vor.u32 %v1077, %v1078
        %v1080 = vshll.u32 2102212464, %v1068
        %v1081 = vshrl.u32 920167782, %v1069
        %v1082 = vor.u32 %v1080, %v1081
        %v1083 = vshll.u32 920167782, %v1068
        %v1084 = vshrl.u32 1326507024, %v1069
        %v1085 = vor.u32 %v1083, %v1084
        %vm1086 = vcmp.lt.s32.totalorder %v1067, 1
        %vm1087 = vcmp.lt.s32.totalorder %v1067, 2
        %vm1088 = vcmp.lt.s32.totalorder %v1067, 3
        %vm1089 = vcmp.lt.s32.totalorder %v1067, 4
        %v1090 = vsel %vm1086, %v1070, %v1073
        %v1091 = vsel %vm1089, %v1079, 2102212464
        %v1092 = vsel %vm1088, %v1076, %v1091
        %v1093 = vsel %vm1087, %v1090, %v1092
        %v1094 = vsel %vm1086, %v1073, %v1076
        %v1095 = vsel %vm1089, %v1082, 920167782
        %v1096 = vsel %vm1088, %v1079, %v1095
        %v1097 = vsel %vm1087, %v1094, %v1096
        %v1098 = vsel %vm1086, %v1076, %v1079
        %v1099 = vsel %vm1089, %v1085, 1326507024
        %v1100 = vsel %vm1088, %v1082, %v1099
        %v1101 = vsel %vm1087, %v1098, %v1100
        %v1102 = vshll.u32 %v1062, 8
        %v1103 = vmul.u32.u64.compose %v1102, %v1101
        %v1104 = vextract.low.u32 %v1103
        %v1105 = vextract.high.u32 %v1103
        %v1106 = vmul.u32.u64.compose %v1102, %v1097
        %v1107 = vextract.low.u32 %v1106
        %v1108 = vextract.high.u32 %v1106
        %v1109 = vmul.u32 %v1102, %v1093
        %v1110 = vadd.s32 %v1105, %v1107
        %vm1111 = vc.u32 %v1105, %v1107
        %v1112 = vadd.s32 %v1108, 1
        %v1113 = vsel %vm1111, %v1112, %v1108
        %v1114 = vadd.s32 %v1109, %v1113
        %v1115 = vadd.s32 %v1114, 536870912
        %v1116 = vshrl.u32 %v1115, 30
        %v1117 = vshll.u32 %v1116, 30
        %v1118 = vsub.s32 %v1114, %v1117
        %vm1119 = vcmp.lt.s32.totalorder %v1118, 0
        %v1120 = vsub.s32 0, %v1118
        %v1121 = vsel %vm1119, %v1120, %v1118
        %v1122 = vclz %v1121
        %v1123 = vsub.s32 %v1122, 2
        %vm1124 = vcmp.gt.s32.totalorder 0, %v1123
        %v1125 = vsel %vm1124, 0, %v1123
        %v1126 = vsub.s32 32, %v1125
        %v1127 = vshll.u32 %v1118, %v1125
        %v1128 = vshrl.u32 %v1110, %v1126
        %v1129 = vor.u32 %v1127, %v1128
        %v1130 = vsub.s32 4294967266, %v1125
        %v1131 = vadd.s32 %v1130, 127
        %v1132 = vshll.u32 %v1131, 23
        %v1133 = vor.u32 4788187, %v1132
        %v1134 = vand.u32 2147483647, %v1133
        %v1136 = vcvt.s32.f32 %v1129
        %v1137 = vmul.f32 %v1136, %v1134
        %v1138 = vxor.u32 %v1137, 2147483648
        %v1139 = vsel %vm1056, %v1138, %v1137
        %v1140 = vsub.s32 4, %v1116
        %v1141 = vsel %vm1056, %v1140, %v1116
        %v1142 = vsel %vm1055, %v317, %v1139
        %v1143 = vsel %vm1055, 0, %v1141
        %v1144 = vcosq.f32.pop %v1142
        %v1145 = vsinq.f32.pop %v1142
        %vm1146 = vweird.f32 %v317
        %v1147 = vadd.s32 %v1143, 3
        %v1148 = vand.u32 %v1147, 3
        %vm1149 = vcmp.lt.s32.totalorder %v1148, 2
        %vm1150 = vcmp.eq.s32.totalorder %v1148, 0
        %v1151 = vxor.u32 %v1145, 2147483648
        %v1152 = vsel %vm1150, %v1144, %v1151
        %vm1153 = vcmp.eq.s32.totalorder %v1148, 2
        %v1154 = vxor.u32 %v1144, 2147483648
        %v1155 = vsel %vm1153, %v1154, %v1145
        %v1156 = vsel %vm1149, %v1152, %v1155
        %v1157 = vsel %vm1146, nan, %v1156
        %v1158 = vand.u32 2147483647, %v318
        %vm1159 = vcmp.le.f32.partialorder %v1158, 0.7853982
        %vm1160 = vcmp.lt.s32.totalorder %v318, 0
        %v1161 = vand.u32 %v318, 2139095040
        %v1162 = vshrl.u32 %v1161, 23
        %v1163 = vsub.s32 %v1162, 127
        %v1164 = vand.u32 2147483647, %v318
        %v1165 = vand.u32 %v1164, 8388607
        %v1166 = vor.u32 %v1165, 8388608
        %v1167 = vsub.s32 0, %v1166
        %v1168 = vadd.s32 %v1163, 1
        %vm1169 = vcmp.gt.s32.totalorder %v1168, 0
        %v1170 = vsel %vm1169, %v1168, 0
        %v1171 = vshrl.u32 %v1170, 5
        %v1172 = vand.u32 %v1170, 31
        %v1173 = vsub.s32 32, %v1172
        %v1174 = vshrl.u32 683565275, %v1173
        %v1175 = vshll.u32 683565275, %v1172
        %v1176 = vshrl.u32 2475754826, %v1173
        %v1177 = vor.u32 %v1175, %v1176
        %v1178 = vshll.u32 2475754826, %v1172
        %v1179 = vshrl.u32 2131351028, %v1173
        %v1180 = vor.u32 %v1178, %v1179
        %v1181 = vshll.u32 2131351028, %v1172
        %v1182 = vshrl.u32 2102212464, %v1173
        %v1183 = vor.u32 %v1181, %v1182
        %v1184 = vshll.u32 2102212464, %v1172
        %v1185 = vshrl.u32 920167782, %v1173
        %v1186 = vor.u32 %v1184, %v1185
        %v1187 = vshll.u32 920167782, %v1172
        %v1188 = vshrl.u32 1326507024, %v1173
        %v1189 = vor.u32 %v1187, %v1188
        %vm1190 = vcmp.lt.s32.totalorder %v1171, 1
        %vm1191 = vcmp.lt.s32.totalorder %v1171, 2
        %vm1192 = vcmp.lt.s32.totalorder %v1171, 3
        %vm1193 = vcmp.lt.s32.totalorder %v1171, 4
        %v1194 = vsel %vm1190, %v1174, %v1177
        %v1195 = vsel %vm1193, %v1183, 2102212464
        %v1196 = vsel %vm1192, %v1180, %v1195
        %v1197 = vsel %vm1191, %v1194, %v1196
        %v1198 = vsel %vm1190, %v1177, %v1180
        %v1199 = vsel %vm1193, %v1186, 920167782
        %v1200 = vsel %vm1192, %v1183, %v1199
        %v1201 = vsel %vm1191, %v1198, %v1200
        %v1202 = vsel %vm1190, %v1180, %v1183
        %v1203 = vsel %vm1193, %v1189, 1326507024
        %v1204 = vsel %vm1192, %v1186, %v1203
        %v1205 = vsel %vm1191, %v1202, %v1204
        %v1206 = vshll.u32 %v1166, 8
        %v1207 = vmul.u32.u64.compose %v1206, %v1205
        %v1208 = vextract.low.u32 %v1207
        %v1209 = vextract.high.u32 %v1207
        %v1210 = vmul.u32.u64.compose %v1206, %v1201
        %v1211 = vextract.low.u32 %v1210
        %v1212 = vextract.high.u32 %v1210
        %v1213 = vmul.u32 %v1206, %v1197
        %v1214 = vadd.s32 %v1209, %v1211
        %vm1215 = vc.u32 %v1209, %v1211
        %v1216 = vadd.s32 %v1212, 1
        %v1217 = vsel %vm1215, %v1216, %v1212
        %v1218 = vadd.s32 %v1213, %v1217
        %v1219 = vadd.s32 %v1218, 536870912
        %v1220 = vshrl.u32 %v1219, 30
        %v1221 = vshll.u32 %v1220, 30
        %v1222 = vsub.s32 %v1218, %v1221
        %vm1223 = vcmp.lt.s32.totalorder %v1222, 0
        %v1224 = vsub.s32 0, %v1222
        %v1225 = vsel %vm1223, %v1224, %v1222
        %v1226 = vclz %v1225
        %v1227 = vsub.s32 %v1226, 2
        %vm1228 = vcmp.gt.s32.totalorder 0, %v1227
        %v1229 = vsel %vm1228, 0, %v1227
        %v1230 = vsub.s32 32, %v1229
        %v1231 = vshll.u32 %v1222, %v1229
        %v1232 = vshrl.u32 %v1214, %v1230
        %v1233 = vor.u32 %v1231, %v1232
        %v1234 = vsub.s32 4294967266, %v1229
        %v1235 = vadd.s32 %v1234, 127
        %v1236 = vshll.u32 %v1235, 23
        %v1237 = vor.u32 4788187, %v1236
        %v1238 = vand.u32 2147483647, %v1237
        %v1240 = vcvt.s32.f32 %v1233
        %v1241 = vmul.f32 %v1240, %v1238
        %v1242 = vxor.u32 %v1241, 2147483648
        %v1243 = vsel %vm1160, %v1242, %v1241
        %v1244 = vsub.s32 4, %v1220
        %v1245 = vsel %vm1160, %v1244, %v1220
        %v1246 = vsel %vm1159, %v318, %v1243
        %v1247 = vsel %vm1159, 0, %v1245
        %v1248 = vcosq.f32.pop %v1246
        %v1249 = vsinq.f32.pop %v1246
        %vm1250 = vweird.f32 %v318
        %v1251 = vadd.s32 %v1247, 3
        %v1252 = vand.u32 %v1251, 3
        %vm1253 = vcmp.lt.s32.totalorder %v1252, 2
        %vm1254 = vcmp.eq.s32.totalorder %v1252, 0
        %v1255 = vxor.u32 %v1249, 2147483648
        %v1256 = vsel %vm1254, %v1248, %v1255
        %vm1257 = vcmp.eq.s32.totalorder %v1252, 2
        %v1258 = vxor.u32 %v1248, 2147483648
        %v1259 = vsel %vm1257, %v1258, %v1249
        %v1260 = vsel %vm1253, %v1256, %v1259
        %v1261 = vsel %vm1250, nan, %v1260
        %v1262 = vand.u32 2147483647, %v319
        %vm1263 = vcmp.le.f32.partialorder %v1262, 0.7853982
        %vm1264 = vcmp.lt.s32.totalorder %v319, 0
        %v1265 = vand.u32 %v319, 2139095040
        %v1266 = vshrl.u32 %v1265, 23
        %v1267 = vsub.s32 %v1266, 127
        %v1268 = vand.u32 2147483647, %v319
        %v1269 = vand.u32 %v1268, 8388607
        %v1270 = vor.u32 %v1269, 8388608
        %v1271 = vsub.s32 0, %v1270
        %v1272 = vadd.s32 %v1267, 1
        %vm1273 = vcmp.gt.s32.totalorder %v1272, 0
        %v1274 = vsel %vm1273, %v1272, 0
        %v1275 = vshrl.u32 %v1274, 5
        %v1276 = vand.u32 %v1274, 31
        %v1277 = vsub.s32 32, %v1276
        %v1278 = vshrl.u32 683565275, %v1277
        %v1279 = vshll.u32 683565275, %v1276
        %v1280 = vshrl.u32 2475754826, %v1277
        %v1281 = vor.u32 %v1279, %v1280
        %v1282 = vshll.u32 2475754826, %v1276
        %v1283 = vshrl.u32 2131351028, %v1277
        %v1284 = vor.u32 %v1282, %v1283
        %v1285 = vshll.u32 2131351028, %v1276
        %v1286 = vshrl.u32 2102212464, %v1277
        %v1287 = vor.u32 %v1285, %v1286
        %v1288 = vshll.u32 2102212464, %v1276
        %v1289 = vshrl.u32 920167782, %v1277
        %v1290 = vor.u32 %v1288, %v1289
        %v1291 = vshll.u32 920167782, %v1276
        %v1292 = vshrl.u32 1326507024, %v1277
        %v1293 = vor.u32 %v1291, %v1292
        %vm1294 = vcmp.lt.s32.totalorder %v1275, 1
        %vm1295 = vcmp.lt.s32.totalorder %v1275, 2
        %vm1296 = vcmp.lt.s32.totalorder %v1275, 3
        %vm1297 = vcmp.lt.s32.totalorder %v1275, 4
        %v1298 = vsel %vm1294, %v1278, %v1281
        %v1299 = vsel %vm1297, %v1287, 2102212464
        %v1300 = vsel %vm1296, %v1284, %v1299
        %v1301 = vsel %vm1295, %v1298, %v1300
        %v1302 = vsel %vm1294, %v1281, %v1284
        %v1303 = vsel %vm1297, %v1290, 920167782
        %v1304 = vsel %vm1296, %v1287, %v1303
        %v1305 = vsel %vm1295, %v1302, %v1304
        %v1306 = vsel %vm1294, %v1284, %v1287
        %v1307 = vsel %vm1297, %v1293, 1326507024
        %v1308 = vsel %vm1296, %v1290, %v1307
        %v1309 = vsel %vm1295, %v1306, %v1308
        %v1310 = vshll.u32 %v1270, 8
        %v1311 = vmul.u32.u64.compose %v1310, %v1309
        %v1312 = vextract.low.u32 %v1311
        %v1313 = vextract.high.u32 %v1311
        %v1314 = vmul.u32.u64.compose %v1310, %v1305
        %v1315 = vextract.low.u32 %v1314
        %v1316 = vextract.high.u32 %v1314
        %v1317 = vmul.u32 %v1310, %v1301
        %v1318 = vadd.s32 %v1313, %v1315
        %vm1319 = vc.u32 %v1313, %v1315
        %v1320 = vadd.s32 %v1316, 1
        %v1321 = vsel %vm1319, %v1320, %v1316
        %v1322 = vadd.s32 %v1317, %v1321
        %v1323 = vadd.s32 %v1322, 536870912
        %v1324 = vshrl.u32 %v1323, 30
        %v1325 = vshll.u32 %v1324, 30
        %v1326 = vsub.s32 %v1322, %v1325
        %vm1327 = vcmp.lt.s32.totalorder %v1326, 0
        %v1328 = vsub.s32 0, %v1326
        %v1329 = vsel %vm1327, %v1328, %v1326
        %v1330 = vclz %v1329
        %v1331 = vsub.s32 %v1330, 2
        %vm1332 = vcmp.gt.s32.totalorder 0, %v1331
        %v1333 = vsel %vm1332, 0, %v1331
        %v1334 = vsub.s32 32, %v1333
        %v1335 = vshll.u32 %v1326, %v1333
        %v1336 = vshrl.u32 %v1318, %v1334
        %v1337 = vor.u32 %v1335, %v1336
        %v1338 = vsub.s32 4294967266, %v1333
        %v1339 = vadd.s32 %v1338, 127
        %v1340 = vshll.u32 %v1339, 23
        %v1341 = vor.u32 4788187, %v1340
        %v1342 = vand.u32 2147483647, %v1341
        %v1344 = vcvt.s32.f32 %v1337
        %v1345 = vmul.f32 %v1344, %v1342
        %v1346 = vxor.u32 %v1345, 2147483648
        %v1347 = vsel %vm1264, %v1346, %v1345
        %v1348 = vsub.s32 4, %v1324
        %v1349 = vsel %vm1264, %v1348, %v1324
        %v1350 = vsel %vm1263, %v319, %v1347
        %v1351 = vsel %vm1263, 0, %v1349
        %v1352 = vcosq.f32.pop %v1350
        %v1353 = vsinq.f32.pop %v1350
        %vm1354 = vweird.f32 %v319
        %v1355 = vadd.s32 %v1351, 3
        %v1356 = vand.u32 %v1355, 3
        %vm1357 = vcmp.lt.s32.totalorder %v1356, 2
        %vm1358 = vcmp.eq.s32.totalorder %v1356, 0
        %v1359 = vxor.u32 %v1353, 2147483648
        %v1360 = vsel %vm1358, %v1352, %v1359
        %vm1361 = vcmp.eq.s32.totalorder %v1356, 2
        %v1362 = vxor.u32 %v1352, 2147483648
        %v1363 = vsel %vm1361, %v1362, %v1353
        %v1364 = vsel %vm1357, %v1360, %v1363
        %v1365 = vsel %vm1354, nan, %v1364
        %v1366 = vand.u32 2147483647, %v320
        %vm1367 = vcmp.le.f32.partialorder %v1366, 0.7853982
        %vm1368 = vcmp.lt.s32.totalorder %v320, 0
        %v1369 = vand.u32 %v320, 2139095040
        %v1370 = vshrl.u32 %v1369, 23
        %v1371 = vsub.s32 %v1370, 127
        %v1372 = vand.u32 2147483647, %v320
        %v1373 = vand.u32 %v1372, 8388607
        %v1374 = vor.u32 %v1373, 8388608
        %v1375 = vsub.s32 0, %v1374
        %v1376 = vadd.s32 %v1371, 1
        %vm1377 = vcmp.gt.s32.totalorder %v1376, 0
        %v1378 = vsel %vm1377, %v1376, 0
        %v1379 = vshrl.u32 %v1378, 5
        %v1380 = vand.u32 %v1378, 31
        %v1381 = vsub.s32 32, %v1380
        %v1382 = vshrl.u32 683565275, %v1381
        %v1383 = vshll.u32 683565275, %v1380
        %v1384 = vshrl.u32 2475754826, %v1381
        %v1385 = vor.u32 %v1383, %v1384
        %v1386 = vshll.u32 2475754826, %v1380
        %v1387 = vshrl.u32 2131351028, %v1381
        %v1388 = vor.u32 %v1386, %v1387
        %v1389 = vshll.u32 2131351028, %v1380
        %v1390 = vshrl.u32 2102212464, %v1381
        %v1391 = vor.u32 %v1389, %v1390
        %v1392 = vshll.u32 2102212464, %v1380
        %v1393 = vshrl.u32 920167782, %v1381
        %v1394 = vor.u32 %v1392, %v1393
        %v1395 = vshll.u32 920167782, %v1380
        %v1396 = vshrl.u32 1326507024, %v1381
        %v1397 = vor.u32 %v1395, %v1396
        %vm1398 = vcmp.lt.s32.totalorder %v1379, 1
        %vm1399 = vcmp.lt.s32.totalorder %v1379, 2
        %vm1400 = vcmp.lt.s32.totalorder %v1379, 3
        %vm1401 = vcmp.lt.s32.totalorder %v1379, 4
        %v1402 = vsel %vm1398, %v1382, %v1385
        %v1403 = vsel %vm1401, %v1391, 2102212464
        %v1404 = vsel %vm1400, %v1388, %v1403
        %v1405 = vsel %vm1399, %v1402, %v1404
        %v1406 = vsel %vm1398, %v1385, %v1388
        %v1407 = vsel %vm1401, %v1394, 920167782
        %v1408 = vsel %vm1400, %v1391, %v1407
        %v1409 = vsel %vm1399, %v1406, %v1408
        %v1410 = vsel %vm1398, %v1388, %v1391
        %v1411 = vsel %vm1401, %v1397, 1326507024
        %v1412 = vsel %vm1400, %v1394, %v1411
        %v1413 = vsel %vm1399, %v1410, %v1412
        %v1414 = vshll.u32 %v1374, 8
        %v1415 = vmul.u32.u64.compose %v1414, %v1413
        %v1416 = vextract.low.u32 %v1415
        %v1417 = vextract.high.u32 %v1415
        %v1418 = vmul.u32.u64.compose %v1414, %v1409
        %v1419 = vextract.low.u32 %v1418
        %v1420 = vextract.high.u32 %v1418
        %v1421 = vmul.u32 %v1414, %v1405
        %v1422 = vadd.s32 %v1417, %v1419
        %vm1423 = vc.u32 %v1417, %v1419
        %v1424 = vadd.s32 %v1420, 1
        %v1425 = vsel %vm1423, %v1424, %v1420
        %v1426 = vadd.s32 %v1421, %v1425
        %v1427 = vadd.s32 %v1426, 536870912
        %v1428 = vshrl.u32 %v1427, 30
        %v1429 = vshll.u32 %v1428, 30
        %v1430 = vsub.s32 %v1426, %v1429
        %vm1431 = vcmp.lt.s32.totalorder %v1430, 0
        %v1432 = vsub.s32 0, %v1430
        %v1433 = vsel %vm1431, %v1432, %v1430
        %v1434 = vclz %v1433
        %v1435 = vsub.s32 %v1434, 2
        %vm1436 = vcmp.gt.s32.totalorder 0, %v1435
        %v1437 = vsel %vm1436, 0, %v1435
        %v1438 = vsub.s32 32, %v1437
        %v1439 = vshll.u32 %v1430, %v1437
        %v1440 = vshrl.u32 %v1422, %v1438
        %v1441 = vor.u32 %v1439, %v1440
        %v1442 = vsub.s32 4294967266, %v1437
        %v1443 = vadd.s32 %v1442, 127
        %v1444 = vshll.u32 %v1443, 23
        %v1445 = vor.u32 4788187, %v1444
        %v1446 = vand.u32 2147483647, %v1445
        %v1448 = vcvt.s32.f32 %v1441
        %v1449 = vmul.f32 %v1448, %v1446
        %v1450 = vxor.u32 %v1449, 2147483648
        %v1451 = vsel %vm1368, %v1450, %v1449
        %v1452 = vsub.s32 4, %v1428
        %v1453 = vsel %vm1368, %v1452, %v1428
        %v1454 = vsel %vm1367, %v320, %v1451
        %v1455 = vsel %vm1367, 0, %v1453
        %v1456 = vcosq.f32.pop %v1454
        %v1457 = vsinq.f32.pop %v1454
        %vm1458 = vweird.f32 %v320
        %v1459 = vadd.s32 %v1455, 3
        %v1460 = vand.u32 %v1459, 3
        %vm1461 = vcmp.lt.s32.totalorder %v1460, 2
        %vm1462 = vcmp.eq.s32.totalorder %v1460, 0
        %v1463 = vxor.u32 %v1457, 2147483648
        %v1464 = vsel %vm1462, %v1456, %v1463
        %vm1465 = vcmp.eq.s32.totalorder %v1460, 2
        %v1466 = vxor.u32 %v1456, 2147483648
        %v1467 = vsel %vm1465, %v1466, %v1457
        %v1468 = vsel %vm1461, %v1464, %v1467
        %v1469 = vsel %vm1458, nan, %v1468
        %v1470 = vand.u32 2147483647, %v321
        %vm1471 = vcmp.le.f32.partialorder %v1470, 0.7853982
        %vm1472 = vcmp.lt.s32.totalorder %v321, 0
        %v1473 = vand.u32 %v321, 2139095040
        %v1474 = vshrl.u32 %v1473, 23
        %v1475 = vsub.s32 %v1474, 127
        %v1476 = vand.u32 2147483647, %v321
        %v1477 = vand.u32 %v1476, 8388607
        %v1478 = vor.u32 %v1477, 8388608
        %v1479 = vsub.s32 0, %v1478
        %v1480 = vadd.s32 %v1475, 1
        %vm1481 = vcmp.gt.s32.totalorder %v1480, 0
        %v1482 = vsel %vm1481, %v1480, 0
        %v1483 = vshrl.u32 %v1482, 5
        %v1484 = vand.u32 %v1482, 31
        %v1485 = vsub.s32 32, %v1484
        %v1486 = vshrl.u32 683565275, %v1485
        %v1487 = vshll.u32 683565275, %v1484
        %v1488 = vshrl.u32 2475754826, %v1485
        %v1489 = vor.u32 %v1487, %v1488
        %v1490 = vshll.u32 2475754826, %v1484
        %v1491 = vshrl.u32 2131351028, %v1485
        %v1492 = vor.u32 %v1490, %v1491
        %v1493 = vshll.u32 2131351028, %v1484
        %v1494 = vshrl.u32 2102212464, %v1485
        %v1495 = vor.u32 %v1493, %v1494
        %v1496 = vshll.u32 2102212464, %v1484
        %v1497 = vshrl.u32 920167782, %v1485
        %v1498 = vor.u32 %v1496, %v1497
        %v1499 = vshll.u32 920167782, %v1484
        %v1500 = vshrl.u32 1326507024, %v1485
        %v1501 = vor.u32 %v1499, %v1500
        %vm1502 = vcmp.lt.s32.totalorder %v1483, 1
        %vm1503 = vcmp.lt.s32.totalorder %v1483, 2
        %vm1504 = vcmp.lt.s32.totalorder %v1483, 3
        %vm1505 = vcmp.lt.s32.totalorder %v1483, 4
        %v1506 = vsel %vm1502, %v1486, %v1489
        %v1507 = vsel %vm1505, %v1495, 2102212464
        %v1508 = vsel %vm1504, %v1492, %v1507
        %v1509 = vsel %vm1503, %v1506, %v1508
        %v1510 = vsel %vm1502, %v1489, %v1492
        %v1511 = vsel %vm1505, %v1498, 920167782
        %v1512 = vsel %vm1504, %v1495, %v1511
        %v1513 = vsel %vm1503, %v1510, %v1512
        %v1514 = vsel %vm1502, %v1492, %v1495
        %v1515 = vsel %vm1505, %v1501, 1326507024
        %v1516 = vsel %vm1504, %v1498, %v1515
        %v1517 = vsel %vm1503, %v1514, %v1516
        %v1518 = vshll.u32 %v1478, 8
        %v1519 = vmul.u32.u64.compose %v1518, %v1517
        %v1520 = vextract.low.u32 %v1519
        %v1521 = vextract.high.u32 %v1519
        %v1522 = vmul.u32.u64.compose %v1518, %v1513
        %v1523 = vextract.low.u32 %v1522
        %v1524 = vextract.high.u32 %v1522
        %v1525 = vmul.u32 %v1518, %v1509
        %v1526 = vadd.s32 %v1521, %v1523
        %vm1527 = vc.u32 %v1521, %v1523
        %v1528 = vadd.s32 %v1524, 1
        %v1529 = vsel %vm1527, %v1528, %v1524
        %v1530 = vadd.s32 %v1525, %v1529
        %v1531 = vadd.s32 %v1530, 536870912
        %v1532 = vshrl.u32 %v1531, 30
        %v1533 = vshll.u32 %v1532, 30
        %v1534 = vsub.s32 %v1530, %v1533
        %vm1535 = vcmp.lt.s32.totalorder %v1534, 0
        %v1536 = vsub.s32 0, %v1534
        %v1537 = vsel %vm1535, %v1536, %v1534
        %v1538 = vclz %v1537
        %v1539 = vsub.s32 %v1538, 2
        %vm1540 = vcmp.gt.s32.totalorder 0, %v1539
        %v1541 = vsel %vm1540, 0, %v1539
        %v1542 = vsub.s32 32, %v1541
        %v1543 = vshll.u32 %v1534, %v1541
        %v1544 = vshrl.u32 %v1526, %v1542
        %v1545 = vor.u32 %v1543, %v1544
        %v1546 = vsub.s32 4294967266, %v1541
        %v1547 = vadd.s32 %v1546, 127
        %v1548 = vshll.u32 %v1547, 23
        %v1549 = vor.u32 4788187, %v1548
        %v1550 = vand.u32 2147483647, %v1549
        %v1552 = vcvt.s32.f32 %v1545
        %v1553 = vmul.f32 %v1552, %v1550
        %v1554 = vxor.u32 %v1553, 2147483648
        %v1555 = vsel %vm1472, %v1554, %v1553
        %v1556 = vsub.s32 4, %v1532
        %v1557 = vsel %vm1472, %v1556, %v1532
        %v1558 = vsel %vm1471, %v321, %v1555
        %v1559 = vsel %vm1471, 0, %v1557
        %v1560 = vcosq.f32.pop %v1558
        %v1561 = vsinq.f32.pop %v1558
        %vm1562 = vweird.f32 %v321
        %v1563 = vadd.s32 %v1559, 3
        %v1564 = vand.u32 %v1563, 3
        %vm1565 = vcmp.lt.s32.totalorder %v1564, 2
        %vm1566 = vcmp.eq.s32.totalorder %v1564, 0
        %v1567 = vxor.u32 %v1561, 2147483648
        %v1568 = vsel %vm1566, %v1560, %v1567
        %vm1569 = vcmp.eq.s32.totalorder %v1564, 2
        %v1570 = vxor.u32 %v1560, 2147483648
        %v1571 = vsel %vm1569, %v1570, %v1561
        %v1572 = vsel %vm1565, %v1568, %v1571
        %v1573 = vsel %vm1562, nan, %v1572
        %v1574 = vand.u32 2147483647, %v322
        %vm1575 = vcmp.le.f32.partialorder %v1574, 0.7853982
        %vm1576 = vcmp.lt.s32.totalorder %v322, 0
        %v1577 = vand.u32 %v322, 2139095040
        %v1578 = vshrl.u32 %v1577, 23
        %v1579 = vsub.s32 %v1578, 127
        %v1580 = vand.u32 2147483647, %v322
        %v1581 = vand.u32 %v1580, 8388607
        %v1582 = vor.u32 %v1581, 8388608
        %v1583 = vsub.s32 0, %v1582
        %v1584 = vadd.s32 %v1579, 1
        %vm1585 = vcmp.gt.s32.totalorder %v1584, 0
        %v1586 = vsel %vm1585, %v1584, 0
        %v1587 = vshrl.u32 %v1586, 5
        %v1588 = vand.u32 %v1586, 31
        %v1589 = vsub.s32 32, %v1588
        %v1590 = vshrl.u32 683565275, %v1589
        %v1591 = vshll.u32 683565275, %v1588
        %v1592 = vshrl.u32 2475754826, %v1589
        %v1593 = vor.u32 %v1591, %v1592
        %v1594 = vshll.u32 2475754826, %v1588
        %v1595 = vshrl.u32 2131351028, %v1589
        %v1596 = vor.u32 %v1594, %v1595
        %v1597 = vshll.u32 2131351028, %v1588
        %v1598 = vshrl.u32 2102212464, %v1589
        %v1599 = vor.u32 %v1597, %v1598
        %v1600 = vshll.u32 2102212464, %v1588
        %v1601 = vshrl.u32 920167782, %v1589
        %v1602 = vor.u32 %v1600, %v1601
        %v1603 = vshll.u32 920167782, %v1588
        %v1604 = vshrl.u32 1326507024, %v1589
        %v1605 = vor.u32 %v1603, %v1604
        %vm1606 = vcmp.lt.s32.totalorder %v1587, 1
        %vm1607 = vcmp.lt.s32.totalorder %v1587, 2
        %vm1608 = vcmp.lt.s32.totalorder %v1587, 3
        %vm1609 = vcmp.lt.s32.totalorder %v1587, 4
        %v1610 = vsel %vm1606, %v1590, %v1593
        %v1611 = vsel %vm1609, %v1599, 2102212464
        %v1612 = vsel %vm1608, %v1596, %v1611
        %v1613 = vsel %vm1607, %v1610, %v1612
        %v1614 = vsel %vm1606, %v1593, %v1596
        %v1615 = vsel %vm1609, %v1602, 920167782
        %v1616 = vsel %vm1608, %v1599, %v1615
        %v1617 = vsel %vm1607, %v1614, %v1616
        %v1618 = vsel %vm1606, %v1596, %v1599
        %v1619 = vsel %vm1609, %v1605, 1326507024
        %v1620 = vsel %vm1608, %v1602, %v1619
        %v1621 = vsel %vm1607, %v1618, %v1620
        %v1622 = vshll.u32 %v1582, 8
        %v1623 = vmul.u32.u64.compose %v1622, %v1621
        %v1624 = vextract.low.u32 %v1623
        %v1625 = vextract.high.u32 %v1623
        %v1626 = vmul.u32.u64.compose %v1622, %v1617
        %v1627 = vextract.low.u32 %v1626
        %v1628 = vextract.high.u32 %v1626
        %v1629 = vmul.u32 %v1622, %v1613
        %v1630 = vadd.s32 %v1625, %v1627
        %vm1631 = vc.u32 %v1625, %v1627
        %v1632 = vadd.s32 %v1628, 1
        %v1633 = vsel %vm1631, %v1632, %v1628
        %v1634 = vadd.s32 %v1629, %v1633
        %v1635 = vadd.s32 %v1634, 536870912
        %v1636 = vshrl.u32 %v1635, 30
        %v1637 = vshll.u32 %v1636, 30
        %v1638 = vsub.s32 %v1634, %v1637
        %vm1639 = vcmp.lt.s32.totalorder %v1638, 0
        %v1640 = vsub.s32 0, %v1638
        %v1641 = vsel %vm1639, %v1640, %v1638
        %v1642 = vclz %v1641
        %v1643 = vsub.s32 %v1642, 2
        %vm1644 = vcmp.gt.s32.totalorder 0, %v1643
        %v1645 = vsel %vm1644, 0, %v1643
        %v1646 = vsub.s32 32, %v1645
        %v1647 = vshll.u32 %v1638, %v1645
        %v1648 = vshrl.u32 %v1630, %v1646
        %v1649 = vor.u32 %v1647, %v1648
        %v1650 = vsub.s32 4294967266, %v1645
        %v1651 = vadd.s32 %v1650, 127
        %v1652 = vshll.u32 %v1651, 23
        %v1653 = vor.u32 4788187, %v1652
        %v1654 = vand.u32 2147483647, %v1653
        %v1656 = vcvt.s32.f32 %v1649
        %v1657 = vmul.f32 %v1656, %v1654
        %v1658 = vxor.u32 %v1657, 2147483648
        %v1659 = vsel %vm1576, %v1658, %v1657
        %v1660 = vsub.s32 4, %v1636
        %v1661 = vsel %vm1576, %v1660, %v1636
        %v1662 = vsel %vm1575, %v322, %v1659
        %v1663 = vsel %vm1575, 0, %v1661
        %v1664 = vcosq.f32.pop %v1662
        %v1665 = vsinq.f32.pop %v1662
        %vm1666 = vweird.f32 %v322
        %v1667 = vadd.s32 %v1663, 3
        %v1668 = vand.u32 %v1667, 3
        %vm1669 = vcmp.lt.s32.totalorder %v1668, 2
        %vm1670 = vcmp.eq.s32.totalorder %v1668, 0
        %v1671 = vxor.u32 %v1665, 2147483648
        %v1672 = vsel %vm1670, %v1664, %v1671
        %vm1673 = vcmp.eq.s32.totalorder %v1668, 2
        %v1674 = vxor.u32 %v1664, 2147483648
        %v1675 = vsel %vm1673, %v1674, %v1665
        %v1676 = vsel %vm1669, %v1672, %v1675
        %v1677 = vsel %vm1666, nan, %v1676
        %v1678 = vand.u32 2147483647, %v323
        %vm1679 = vcmp.le.f32.partialorder %v1678, 0.7853982
        %vm1680 = vcmp.lt.s32.totalorder %v323, 0
        %v1681 = vand.u32 %v323, 2139095040
        %v1682 = vshrl.u32 %v1681, 23
        %v1683 = vsub.s32 %v1682, 127
        %v1684 = vand.u32 2147483647, %v323
        %v1685 = vand.u32 %v1684, 8388607
        %v1686 = vor.u32 %v1685, 8388608
        %v1687 = vsub.s32 0, %v1686
        %v1688 = vadd.s32 %v1683, 1
        %vm1689 = vcmp.gt.s32.totalorder %v1688, 0
        %v1690 = vsel %vm1689, %v1688, 0
        %v1691 = vshrl.u32 %v1690, 5
        %v1692 = vand.u32 %v1690, 31
        %v1693 = vsub.s32 32, %v1692
        %v1694 = vshrl.u32 683565275, %v1693
        %v1695 = vshll.u32 683565275, %v1692
        %v1696 = vshrl.u32 2475754826, %v1693
        %v1697 = vor.u32 %v1695, %v1696
        %v1698 = vshll.u32 2475754826, %v1692
        %v1699 = vshrl.u32 2131351028, %v1693
        %v1700 = vor.u32 %v1698, %v1699
        %v1701 = vshll.u32 2131351028, %v1692
        %v1702 = vshrl.u32 2102212464, %v1693
        %v1703 = vor.u32 %v1701, %v1702
        %v1704 = vshll.u32 2102212464, %v1692
        %v1705 = vshrl.u32 920167782, %v1693
        %v1706 = vor.u32 %v1704, %v1705
        %v1707 = vshll.u32 920167782, %v1692
        %v1708 = vshrl.u32 1326507024, %v1693
        %v1709 = vor.u32 %v1707, %v1708
        %vm1710 = vcmp.lt.s32.totalorder %v1691, 1
        %vm1711 = vcmp.lt.s32.totalorder %v1691, 2
        %vm1712 = vcmp.lt.s32.totalorder %v1691, 3
        %vm1713 = vcmp.lt.s32.totalorder %v1691, 4
        %v1714 = vsel %vm1710, %v1694, %v1697
        %v1715 = vsel %vm1713, %v1703, 2102212464
        %v1716 = vsel %vm1712, %v1700, %v1715
        %v1717 = vsel %vm1711, %v1714, %v1716
        %v1718 = vsel %vm1710, %v1697, %v1700
        %v1719 = vsel %vm1713, %v1706, 920167782
        %v1720 = vsel %vm1712, %v1703, %v1719
        %v1721 = vsel %vm1711, %v1718, %v1720
        %v1722 = vsel %vm1710, %v1700, %v1703
        %v1723 = vsel %vm1713, %v1709, 1326507024
        %v1724 = vsel %vm1712, %v1706, %v1723
        %v1725 = vsel %vm1711, %v1722, %v1724
        %v1726 = vshll.u32 %v1686, 8
        %v1727 = vmul.u32.u64.compose %v1726, %v1725
        %v1728 = vextract.low.u32 %v1727
        %v1729 = vextract.high.u32 %v1727
        %v1730 = vmul.u32.u64.compose %v1726, %v1721
        %v1731 = vextract.low.u32 %v1730
        %v1732 = vextract.high.u32 %v1730
        %v1733 = vmul.u32 %v1726, %v1717
        %v1734 = vadd.s32 %v1729, %v1731
        %vm1735 = vc.u32 %v1729, %v1731
        %v1736 = vadd.s32 %v1732, 1
        %v1737 = vsel %vm1735, %v1736, %v1732
        %v1738 = vadd.s32 %v1733, %v1737
        %v1739 = vadd.s32 %v1738, 536870912
        %v1740 = vshrl.u32 %v1739, 30
        %v1741 = vshll.u32 %v1740, 30
        %v1742 = vsub.s32 %v1738, %v1741
        %vm1743 = vcmp.lt.s32.totalorder %v1742, 0
        %v1744 = vsub.s32 0, %v1742
        %v1745 = vsel %vm1743, %v1744, %v1742
        %v1746 = vclz %v1745
        %v1747 = vsub.s32 %v1746, 2
        %vm1748 = vcmp.gt.s32.totalorder 0, %v1747
        %v1749 = vsel %vm1748, 0, %v1747
        %v1750 = vsub.s32 32, %v1749
        %v1751 = vshll.u32 %v1742, %v1749
        %v1752 = vshrl.u32 %v1734, %v1750
        %v1753 = vor.u32 %v1751, %v1752
        %v1754 = vsub.s32 4294967266, %v1749
        %v1755 = vadd.s32 %v1754, 127
        %v1756 = vshll.u32 %v1755, 23
        %v1757 = vor.u32 4788187, %v1756
        %v1758 = vand.u32 2147483647, %v1757
        %v1760 = vcvt.s32.f32 %v1753
        %v1761 = vmul.f32 %v1760, %v1758
        %v1762 = vxor.u32 %v1761, 2147483648
        %v1763 = vsel %vm1680, %v1762, %v1761
        %v1764 = vsub.s32 4, %v1740
        %v1765 = vsel %vm1680, %v1764, %v1740
        %v1766 = vsel %vm1679, %v323, %v1763
        %v1767 = vsel %vm1679, 0, %v1765
        %v1768 = vcosq.f32.pop %v1766
        %v1769 = vsinq.f32.pop %v1766
        %vm1770 = vweird.f32 %v323
        %v1771 = vadd.s32 %v1767, 3
        %v1772 = vand.u32 %v1771, 3
        %vm1773 = vcmp.lt.s32.totalorder %v1772, 2
        %vm1774 = vcmp.eq.s32.totalorder %v1772, 0
        %v1775 = vxor.u32 %v1769, 2147483648
        %v1776 = vsel %vm1774, %v1768, %v1775
        %vm1777 = vcmp.eq.s32.totalorder %v1772, 2
        %v1778 = vxor.u32 %v1768, 2147483648
        %v1779 = vsel %vm1777, %v1778, %v1769
        %v1780 = vsel %vm1773, %v1776, %v1779
        %v1781 = vsel %vm1770, nan, %v1780
        %v1782 = vand.u32 2147483647, %v324
        %vm1783 = vcmp.le.f32.partialorder %v1782, 0.7853982
        %vm1784 = vcmp.lt.s32.totalorder %v324, 0
        %v1785 = vand.u32 %v324, 2139095040
        %v1786 = vshrl.u32 %v1785, 23
        %v1787 = vsub.s32 %v1786, 127
        %v1788 = vand.u32 2147483647, %v324
        %v1789 = vand.u32 %v1788, 8388607
        %v1790 = vor.u32 %v1789, 8388608
        %v1791 = vsub.s32 0, %v1790
        %v1792 = vadd.s32 %v1787, 1
        %vm1793 = vcmp.gt.s32.totalorder %v1792, 0
        %v1794 = vsel %vm1793, %v1792, 0
        %v1795 = vshrl.u32 %v1794, 5
        %v1796 = vand.u32 %v1794, 31
        %v1797 = vsub.s32 32, %v1796
        %v1798 = vshrl.u32 683565275, %v1797
        %v1799 = vshll.u32 683565275, %v1796
        %v1800 = vshrl.u32 2475754826, %v1797
        %v1801 = vor.u32 %v1799, %v1800
        %v1802 = vshll.u32 2475754826, %v1796
        %v1803 = vshrl.u32 2131351028, %v1797
        %v1804 = vor.u32 %v1802, %v1803
        %v1805 = vshll.u32 2131351028, %v1796
        %v1806 = vshrl.u32 2102212464, %v1797
        %v1807 = vor.u32 %v1805, %v1806
        %v1808 = vshll.u32 2102212464, %v1796
        %v1809 = vshrl.u32 920167782, %v1797
        %v1810 = vor.u32 %v1808, %v1809
        %v1811 = vshll.u32 920167782, %v1796
        %v1812 = vshrl.u32 1326507024, %v1797
        %v1813 = vor.u32 %v1811, %v1812
        %vm1814 = vcmp.lt.s32.totalorder %v1795, 1
        %vm1815 = vcmp.lt.s32.totalorder %v1795, 2
        %vm1816 = vcmp.lt.s32.totalorder %v1795, 3
        %vm1817 = vcmp.lt.s32.totalorder %v1795, 4
        %v1818 = vsel %vm1814, %v1798, %v1801
        %v1819 = vsel %vm1817, %v1807, 2102212464
        %v1820 = vsel %vm1816, %v1804, %v1819
        %v1821 = vsel %vm1815, %v1818, %v1820
        %v1822 = vsel %vm1814, %v1801, %v1804
        %v1823 = vsel %vm1817, %v1810, 920167782
        %v1824 = vsel %vm1816, %v1807, %v1823
        %v1825 = vsel %vm1815, %v1822, %v1824
        %v1826 = vsel %vm1814, %v1804, %v1807
        %v1827 = vsel %vm1817, %v1813, 1326507024
        %v1828 = vsel %vm1816, %v1810, %v1827
        %v1829 = vsel %vm1815, %v1826, %v1828
        %v1830 = vshll.u32 %v1790, 8
        %v1831 = vmul.u32.u64.compose %v1830, %v1829
        %v1832 = vextract.low.u32 %v1831
        %v1833 = vextract.high.u32 %v1831
        %v1834 = vmul.u32.u64.compose %v1830, %v1825
        %v1835 = vextract.low.u32 %v1834
        %v1836 = vextract.high.u32 %v1834
        %v1837 = vmul.u32 %v1830, %v1821
        %v1838 = vadd.s32 %v1833, %v1835
        %vm1839 = vc.u32 %v1833, %v1835
        %v1840 = vadd.s32 %v1836, 1
        %v1841 = vsel %vm1839, %v1840, %v1836
        %v1842 = vadd.s32 %v1837, %v1841
        %v1843 = vadd.s32 %v1842, 536870912
        %v1844 = vshrl.u32 %v1843, 30
        %v1845 = vshll.u32 %v1844, 30
        %v1846 = vsub.s32 %v1842, %v1845
        %vm1847 = vcmp.lt.s32.totalorder %v1846, 0
        %v1848 = vsub.s32 0, %v1846
        %v1849 = vsel %vm1847, %v1848, %v1846
        %v1850 = vclz %v1849
        %v1851 = vsub.s32 %v1850, 2
        %vm1852 = vcmp.gt.s32.totalorder 0, %v1851
        %v1853 = vsel %vm1852, 0, %v1851
        %v1854 = vsub.s32 32, %v1853
        %v1855 = vshll.u32 %v1846, %v1853
        %v1856 = vshrl.u32 %v1838, %v1854
        %v1857 = vor.u32 %v1855, %v1856
        %v1858 = vsub.s32 4294967266, %v1853
        %v1859 = vadd.s32 %v1858, 127
        %v1860 = vshll.u32 %v1859, 23
        %v1861 = vor.u32 4788187, %v1860
        %v1862 = vand.u32 2147483647, %v1861
        %v1864 = vcvt.s32.f32 %v1857
        %v1865 = vmul.f32 %v1864, %v1862
        %v1866 = vxor.u32 %v1865, 2147483648
        %v1867 = vsel %vm1784, %v1866, %v1865
        %v1868 = vsub.s32 4, %v1844
        %v1869 = vsel %vm1784, %v1868, %v1844
        %v1870 = vsel %vm1783, %v324, %v1867
        %v1871 = vsel %vm1783, 0, %v1869
        %v1872 = vcosq.f32.pop %v1870
        %v1873 = vsinq.f32.pop %v1870
        %vm1874 = vweird.f32 %v324
        %v1875 = vadd.s32 %v1871, 3
        %v1876 = vand.u32 %v1875, 3
        %vm1877 = vcmp.lt.s32.totalorder %v1876, 2
        %vm1878 = vcmp.eq.s32.totalorder %v1876, 0
        %v1879 = vxor.u32 %v1873, 2147483648
        %v1880 = vsel %vm1878, %v1872, %v1879
        %vm1881 = vcmp.eq.s32.totalorder %v1876, 2
        %v1882 = vxor.u32 %v1872, 2147483648
        %v1883 = vsel %vm1881, %v1882, %v1873
        %v1884 = vsel %vm1877, %v1880, %v1883
        %v1885 = vsel %vm1874, nan, %v1884
        %v1886 = vand.u32 2147483647, %v325
        %vm1887 = vcmp.le.f32.partialorder %v1886, 0.7853982
        %vm1888 = vcmp.lt.s32.totalorder %v325, 0
        %v1889 = vand.u32 %v325, 2139095040
        %v1890 = vshrl.u32 %v1889, 23
        %v1891 = vsub.s32 %v1890, 127
        %v1892 = vand.u32 2147483647, %v325
        %v1893 = vand.u32 %v1892, 8388607
        %v1894 = vor.u32 %v1893, 8388608
        %v1895 = vsub.s32 0, %v1894
        %v1896 = vadd.s32 %v1891, 1
        %vm1897 = vcmp.gt.s32.totalorder %v1896, 0
        %v1898 = vsel %vm1897, %v1896, 0
        %v1899 = vshrl.u32 %v1898, 5
        %v1900 = vand.u32 %v1898, 31
        %v1901 = vsub.s32 32, %v1900
        %v1902 = vshrl.u32 683565275, %v1901
        %v1903 = vshll.u32 683565275, %v1900
        %v1904 = vshrl.u32 2475754826, %v1901
        %v1905 = vor.u32 %v1903, %v1904
        %v1906 = vshll.u32 2475754826, %v1900
        %v1907 = vshrl.u32 2131351028, %v1901
        %v1908 = vor.u32 %v1906, %v1907
        %v1909 = vshll.u32 2131351028, %v1900
        %v1910 = vshrl.u32 2102212464, %v1901
        %v1911 = vor.u32 %v1909, %v1910
        %v1912 = vshll.u32 2102212464, %v1900
        %v1913 = vshrl.u32 920167782, %v1901
        %v1914 = vor.u32 %v1912, %v1913
        %v1915 = vshll.u32 920167782, %v1900
        %v1916 = vshrl.u32 1326507024, %v1901
        %v1917 = vor.u32 %v1915, %v1916
        %vm1918 = vcmp.lt.s32.totalorder %v1899, 1
        %vm1919 = vcmp.lt.s32.totalorder %v1899, 2
        %vm1920 = vcmp.lt.s32.totalorder %v1899, 3
        %vm1921 = vcmp.lt.s32.totalorder %v1899, 4
        %v1922 = vsel %vm1918, %v1902, %v1905
        %v1923 = vsel %vm1921, %v1911, 2102212464
        %v1924 = vsel %vm1920, %v1908, %v1923
        %v1925 = vsel %vm1919, %v1922, %v1924
        %v1926 = vsel %vm1918, %v1905, %v1908
        %v1927 = vsel %vm1921, %v1914, 920167782
        %v1928 = vsel %vm1920, %v1911, %v1927
        %v1929 = vsel %vm1919, %v1926, %v1928
        %v1930 = vsel %vm1918, %v1908, %v1911
        %v1931 = vsel %vm1921, %v1917, 1326507024
        %v1932 = vsel %vm1920, %v1914, %v1931
        %v1933 = vsel %vm1919, %v1930, %v1932
        %v1934 = vshll.u32 %v1894, 8
        %v1935 = vmul.u32.u64.compose %v1934, %v1933
        %v1936 = vextract.low.u32 %v1935
        %v1937 = vextract.high.u32 %v1935
        %v1938 = vmul.u32.u64.compose %v1934, %v1929
        %v1939 = vextract.low.u32 %v1938
        %v1940 = vextract.high.u32 %v1938
        %v1941 = vmul.u32 %v1934, %v1925
        %v1942 = vadd.s32 %v1937, %v1939
        %vm1943 = vc.u32 %v1937, %v1939
        %v1944 = vadd.s32 %v1940, 1
        %v1945 = vsel %vm1943, %v1944, %v1940
        %v1946 = vadd.s32 %v1941, %v1945
        %v1947 = vadd.s32 %v1946, 536870912
        %v1948 = vshrl.u32 %v1947, 30
        %v1949 = vshll.u32 %v1948, 30
        %v1950 = vsub.s32 %v1946, %v1949
        %vm1951 = vcmp.lt.s32.totalorder %v1950, 0
        %v1952 = vsub.s32 0, %v1950
        %v1953 = vsel %vm1951, %v1952, %v1950
        %v1954 = vclz %v1953
        %v1955 = vsub.s32 %v1954, 2
        %vm1956 = vcmp.gt.s32.totalorder 0, %v1955
        %v1957 = vsel %vm1956, 0, %v1955
        %v1958 = vsub.s32 32, %v1957
        %v1959 = vshll.u32 %v1950, %v1957
        %v1960 = vshrl.u32 %v1942, %v1958
        %v1961 = vor.u32 %v1959, %v1960
        %v1962 = vsub.s32 4294967266, %v1957
        %v1963 = vadd.s32 %v1962, 127
        %v1964 = vshll.u32 %v1963, 23
        %v1965 = vor.u32 4788187, %v1964
        %v1966 = vand.u32 2147483647, %v1965
        %v1968 = vcvt.s32.f32 %v1961
        %v1969 = vmul.f32 %v1968, %v1966
        %v1970 = vxor.u32 %v1969, 2147483648
        %v1971 = vsel %vm1888, %v1970, %v1969
        %v1972 = vsub.s32 4, %v1948
        %v1973 = vsel %vm1888, %v1972, %v1948
        %v1974 = vsel %vm1887, %v325, %v1971
        %v1975 = vsel %vm1887, 0, %v1973
        %v1976 = vcosq.f32.pop %v1974
        %v1977 = vsinq.f32.pop %v1974
        %vm1978 = vweird.f32 %v325
        %v1979 = vadd.s32 %v1975, 3
        %v1980 = vand.u32 %v1979, 3
        %vm1981 = vcmp.lt.s32.totalorder %v1980, 2
        %vm1982 = vcmp.eq.s32.totalorder %v1980, 0
        %v1983 = vxor.u32 %v1977, 2147483648
        %v1984 = vsel %vm1982, %v1976, %v1983
        %vm1985 = vcmp.eq.s32.totalorder %v1980, 2
        %v1986 = vxor.u32 %v1976, 2147483648
        %v1987 = vsel %vm1985, %v1986, %v1977
        %v1988 = vsel %vm1981, %v1984, %v1987
        %v1989 = vsel %vm1978, nan, %v1988
        %v1990 = vld [vmem:[#allocation2] sm:$0xff]
        %v1991 = vld [vmem:[#allocation2 + $0x8] sm:$0xff]
        %v1992 = vld [vmem:[#allocation2 + $0x10] sm:$0xff]
        %v1993 = vld [vmem:[#allocation2 + $0x18] sm:$0xff]
        %v1994 = vpack.c.bf16 %v533, %v429
        %v1995 = vpack.c.bf16 %v741, %v637
        %v1996 = vpack.c.bf16 %v949, %v845
        %v1997 = vpack.c.bf16 %v1157, %v1053
        %v1998 = vpack.c.bf16 %v1365, %v1261
        %v1999 = vpack.c.bf16 %v1573, %v1469
        %v2000 = vpack.c.bf16 %v1781, %v1677
        %v2001 = vpack.c.bf16 %v1989, %v1885
        %v2002 = vld [vmem:[#allocation2 + $0x20] sm:$0xff]
        %v2003 = vld [vmem:[#allocation2 + $0x28] sm:$0xff]
        %v2004 = vld [vmem:[#allocation2 + $0x30] sm:$0xff]
        %v2005 = vld [vmem:[#allocation2 + $0x38] sm:$0xff]
        %v2006 = vpack.c.bf16 %v189, %v188
        %v2007 = vpack.c.bf16 %v191, %v190
        %v2008 = vpack.c.bf16 %v193, %v192
        %v2009 = vpack.c.bf16 %v195, %v194
        %v2010 = vpack.c.bf16 %v197, %v196
        %v2011 = vpack.c.bf16 %v199, %v198
        %v2012 = vpack.c.bf16 %v201, %v200
        %v2013 = vpack.c.bf16 %v203, %v202
        %v2018 = vunpack.c.l.b16 %v2002
        %v2019 = vunpack.c.h.b16 %v2002
        %v2020 = vunpack.c.l.b16 %v2003
        %v2021 = vunpack.c.h.b16 %v2003
        %v2022 = vunpack.c.l.b16 %v2004
        %v2023 = vunpack.c.h.b16 %v2004
        %v2024 = vunpack.c.l.b16 %v2005
        %v2025 = vunpack.c.h.b16 %v2005
        %v2026 = vpack.c.b16 %v2020, %v2018
        %v2027 = vpack.c.b16 %v2021, %v2019
        %v2028 = vpack.c.b16 %v2024, %v2022
        %v2029 = vpack.c.b16 %v2025, %v2023
        %vm2034 = vcmask 261120
        %v2036 = vsel %vm2034, %v2006, 0
        %v2039 = vsel %vm2034, %v2007, 0
        %v2042 = vsel %vm2034, %v2008, 0
        %v2045 = vsel %vm2034, %v2009, 0
        %v2048 = vsel %vm2034, %v2010, 0
        %v2051 = vsel %vm2034, %v2011, 0
        %v2054 = vsel %vm2034, %v2012, 0
        %v2057 = vsel %vm2034, %v2013, 0
        %2059 = vmatprep.subr.bf16.mxu0 0
        %2060 = vmatpush1.bf16.msra.mxu0 0
        %2061 = vmatprep.subr.bf16.mxu0 0
        %2062 = vmatpush1.bf16.msra.mxu0 0
        %2063 = vmatprep.subr.bf16.mxu0 0
        %2064 = vmatpush1.bf16.msra.mxu0 0
        %2065 = vmatprep.subr.bf16.mxu0 0
        %2066 = vmatpush1.bf16.msra.mxu0 0
        %2067 = vmatprep.subr.bf16.mxu0 0
        %2068 = vmatpush1.bf16.msra.mxu0 0
        %2069 = vmatprep.subr.bf16.mxu0 0
        %2070 = vmatpush1.bf16.msra.mxu0 0
        %2071 = vmatprep.subr.bf16.mxu0 %v2029
        %2072 = vmatpush1.bf16.msra.mxu0 %v2028
        %2073 = vmatprep.subr.bf16.mxu0 %v2027
        %2074 = vmatpush1.bf16.msra.mxu0 %v2026
        %2075 = vmatprep.subr.bf16.mxu0 0
        %2076 = vmatpush2.bf16.msra.mxu0 0
        %2077 = vmatprep.subr.bf16.mxu0 0
        %2078 = vmatpush2.bf16.msra.mxu0 0
        %2079 = vmatprep.subr.bf16.mxu0 0
        %2080 = vmatpush2.bf16.msra.mxu0 0
        %2081 = vmatprep.subr.bf16.mxu0 0
        %2082 = vmatpush2.bf16.msra.mxu0 0
        %2083 = vmatprep.subr.bf16.mxu0 0
        %2084 = vmatpush2.bf16.msra.mxu0 0
        %2085 = vmatprep.subr.bf16.mxu0 0
        %2086 = vmatpush2.bf16.msra.mxu0 0
        %2087 = vmatprep.subr.bf16.mxu0 0
        %2088 = vmatpush2.bf16.msra.mxu0 0
        %2089 = vmatprep.subr.bf16.mxu0 0
        %2090 = vmatpush2.bf16.msra.mxu0 0
        %2091 = vmatprep.mubr.bf16.mxu0 0
        %2092 = vmatmul.mubr.bf16.gmra.mxu0 %v2036
        %v2093 = vpop.f32.mrf.mxu0
        %v2094 = vadd.f32 0.0, %v2093
        %v2095 = vpop.f32.mrf.mxu0
        %v2096 = vadd.f32 0.0, %v2095
        %v2097 = vpop.f32.mrf.mxu0
        %v2098 = vadd.f32 0.0, %v2097
        %v2099 = vpop.f32.mrf.mxu0
        %v2100 = vadd.f32 0.0, %v2099
        %2101 = vmatprep.mubr.bf16.mxu0 0
        %2102 = vmatmul.mubr.bf16.gmra.mxu0 %v2039
        %v2103 = vpop.f32.mrf.mxu0
        %v2104 = vadd.f32 0.0, %v2103
        %v2105 = vpop.f32.mrf.mxu0
        %v2106 = vadd.f32 0.0, %v2105
        %v2107 = vpop.f32.mrf.mxu0
        %v2108 = vadd.f32 0.0, %v2107
        %v2109 = vpop.f32.mrf.mxu0
        %v2110 = vadd.f32 0.0, %v2109
        %2111 = vmatprep.mubr.bf16.mxu0 0
        %2112 = vmatmul.mubr.bf16.gmra.mxu0 %v2042
        %v2113 = vpop.f32.mrf.mxu0
        %v2114 = vadd.f32 0.0, %v2113
        %v2115 = vpop.f32.mrf.mxu0
        %v2116 = vadd.f32 0.0, %v2115
        %v2117 = vpop.f32.mrf.mxu0
        %v2118 = vadd.f32 0.0, %v2117
        %v2119 = vpop.f32.mrf.mxu0
        %v2120 = vadd.f32 0.0, %v2119
        %2121 = vmatprep.mubr.bf16.mxu0 0
        %2122 = vmatmul.mubr.bf16.gmra.mxu0 %v2045
        %v2123 = vpop.f32.mrf.mxu0
        %v2124 = vadd.f32 0.0, %v2123
        %v2125 = vpop.f32.mrf.mxu0
        %v2126 = vadd.f32 0.0, %v2125
        %v2127 = vpop.f32.mrf.mxu0
        %v2128 = vadd.f32 0.0, %v2127
        %v2129 = vpop.f32.mrf.mxu0
        %v2130 = vadd.f32 0.0, %v2129
        %2131 = vmatprep.mubr.bf16.mxu0 0
        %2132 = vmatmul.mubr.bf16.gmra.mxu0 %v2048
        %v2133 = vpop.f32.mrf.mxu0
        %v2134 = vadd.f32 0.0, %v2133
        %v2135 = vpop.f32.mrf.mxu0
        %v2136 = vadd.f32 0.0, %v2135
        %v2137 = vpop.f32.mrf.mxu0
        %v2138 = vadd.f32 0.0, %v2137
        %v2139 = vpop.f32.mrf.mxu0
        %v2140 = vadd.f32 0.0, %v2139
        %2141 = vmatprep.mubr.bf16.mxu0 0
        %2142 = vmatmul.mubr.bf16.gmra.mxu0 %v2051
        %v2143 = vpop.f32.mrf.mxu0
        %v2144 = vadd.f32 0.0, %v2143
        %v2145 = vpop.f32.mrf.mxu0
        %v2146 = vadd.f32 0.0, %v2145
        %v2147 = vpop.f32.mrf.mxu0
        %v2148 = vadd.f32 0.0, %v2147
        %v2149 = vpop.f32.mrf.mxu0
        %v2150 = vadd.f32 0.0, %v2149
        %2151 = vmatprep.mubr.bf16.mxu0 0
        %2152 = vmatmul.mubr.bf16.gmra.mxu0 %v2054
        %v2153 = vpop.f32.mrf.mxu0
        %v2154 = vadd.f32 0.0, %v2153
        %v2155 = vpop.f32.mrf.mxu0
        %v2156 = vadd.f32 0.0, %v2155
        %v2157 = vpop.f32.mrf.mxu0
        %v2158 = vadd.f32 0.0, %v2157
        %v2159 = vpop.f32.mrf.mxu0
        %v2160 = vadd.f32 0.0, %v2159
        %2161 = vmatprep.mubr.bf16.mxu0 0
        %2162 = vmatmul.mubr.bf16.gmra.mxu0 %v2057
        %v2163 = vpop.f32.mrf.mxu0
        %v2164 = vadd.f32 0.0, %v2163
        %v2165 = vpop.f32.mrf.mxu0
        %v2166 = vadd.f32 0.0, %v2165
        %v2167 = vpop.f32.mrf.mxu0
        %v2168 = vadd.f32 0.0, %v2167
        %v2169 = vpop.f32.mrf.mxu0
        %v2170 = vadd.f32 0.0, %v2169
        %2171 = vdwg.mxu0
        %v2176 = vunpack.c.l.b16 %v1990
        %v2177 = vunpack.c.h.b16 %v1990
        %v2178 = vunpack.c.l.b16 %v1991
        %v2179 = vunpack.c.h.b16 %v1991
        %v2180 = vunpack.c.l.b16 %v1992
        %v2181 = vunpack.c.h.b16 %v1992
        %v2182 = vunpack.c.l.b16 %v1993
        %v2183 = vunpack.c.h.b16 %v1993
        %v2184 = vpack.c.b16 %v2178, %v2176
        %v2185 = vpack.c.b16 %v2179, %v2177
        %v2186 = vpack.c.b16 %v2182, %v2180
        %v2187 = vpack.c.b16 %v2183, %v2181
        %v2193 = vsel %vm2034, %v1994, 0
        %v2196 = vsel %vm2034, %v1995, 0
        %v2199 = vsel %vm2034, %v1996, 0
        %v2202 = vsel %vm2034, %v1997, 0
        %v2205 = vsel %vm2034, %v1998, 0
        %v2208 = vsel %vm2034, %v1999, 0
        %v2211 = vsel %vm2034, %v2000, 0
        %v2214 = vsel %vm2034, %v2001, 0
        %2216 = vmatprep.subr.bf16.mxu0 0
        %2217 = vmatpush1.bf16.msra.mxu0 0
        %2218 = vmatprep.subr.bf16.mxu0 0
        %2219 = vmatpush1.bf16.msra.mxu0 0
        %2220 = vmatprep.subr.bf16.mxu0 0
        %2221 = vmatpush1.bf16.msra.mxu0 0
        %2222 = vmatprep.subr.bf16.mxu0 0
        %2223 = vmatpush1.bf16.msra.mxu0 0
        %2224 = vmatprep.subr.bf16.mxu0 0
        %2225 = vmatpush1.bf16.msra.mxu0 0
        %2226 = vmatprep.subr.bf16.mxu0 0
        %2227 = vmatpush1.bf16.msra.mxu0 0
        %2228 = vmatprep.subr.bf16.mxu0 %v2187
        %2229 = vmatpush1.bf16.msra.mxu0 %v2186
        %2230 = vmatprep.subr.bf16.mxu0 %v2185
        %2231 = vmatpush1.bf16.msra.mxu0 %v2184
        %2232 = vmatprep.subr.bf16.mxu0 0
        %2233 = vmatpush2.bf16.msra.mxu0 0
        %2234 = vmatprep.subr.bf16.mxu0 0
        %2235 = vmatpush2.bf16.msra.mxu0 0
        %2236 = vmatprep.subr.bf16.mxu0 0
        %2237 = vmatpush2.bf16.msra.mxu0 0
        %2238 = vmatprep.subr.bf16.mxu0 0
        %2239 = vmatpush2.bf16.msra.mxu0 0
        %2240 = vmatprep.subr.bf16.mxu0 0
        %2241 = vmatpush2.bf16.msra.mxu0 0
        %2242 = vmatprep.subr.bf16.mxu0 0
        %2243 = vmatpush2.bf16.msra.mxu0 0
        %2244 = vmatprep.subr.bf16.mxu0 0
        %2245 = vmatpush2.bf16.msra.mxu0 0
        %2246 = vmatprep.subr.bf16.mxu0 0
        %2247 = vmatpush2.bf16.msra.mxu0 0
        %2248 = vmatprep.mubr.bf16.mxu0 0
        %2249 = vmatmul.mubr.bf16.gmra.mxu0 %v2193
        %v2250 = vpop.f32.mrf.mxu0
        %v2251 = vadd.f32 %v2094, %v2250
        %v2252 = vpop.f32.mrf.mxu0
        %v2253 = vadd.f32 %v2096, %v2252
        %v2254 = vpop.f32.mrf.mxu0
        %v2255 = vadd.f32 %v2098, %v2254
        %v2256 = vpop.f32.mrf.mxu0
        %v2257 = vadd.f32 %v2100, %v2256
        %2258 = vmatprep.mubr.bf16.mxu0 0
        %2259 = vmatmul.mubr.bf16.gmra.mxu0 %v2196
        %v2260 = vpop.f32.mrf.mxu0
        %v2261 = vadd.f32 %v2104, %v2260
        %v2262 = vpop.f32.mrf.mxu0
        %v2263 = vadd.f32 %v2106, %v2262
        %v2264 = vpop.f32.mrf.mxu0
        %v2265 = vadd.f32 %v2108, %v2264
        %v2266 = vpop.f32.mrf.mxu0
        %v2267 = vadd.f32 %v2110, %v2266
        %2268 = vmatprep.mubr.bf16.mxu0 0
        %2269 = vmatmul.mubr.bf16.gmra.mxu0 %v2199
        %v2270 = vpop.f32.mrf.mxu0
        %v2271 = vadd.f32 %v2114, %v2270
        %v2272 = vpop.f32.mrf.mxu0
        %v2273 = vadd.f32 %v2116, %v2272
        %v2274 = vpop.f32.mrf.mxu0
        %v2275 = vadd.f32 %v2118, %v2274
        %v2276 = vpop.f32.mrf.mxu0
        %v2277 = vadd.f32 %v2120, %v2276
        %2278 = vmatprep.mubr.bf16.mxu0 0
        %2279 = vmatmul.mubr.bf16.gmra.mxu0 %v2202
        %v2280 = vpop.f32.mrf.mxu0
        %v2281 = vadd.f32 %v2124, %v2280
        %v2282 = vpop.f32.mrf.mxu0
        %v2283 = vadd.f32 %v2126, %v2282
        %v2284 = vpop.f32.mrf.mxu0
        %v2285 = vadd.f32 %v2128, %v2284
        %v2286 = vpop.f32.mrf.mxu0
        %v2287 = vadd.f32 %v2130, %v2286
        %2288 = vmatprep.mubr.bf16.mxu0 0
        %2289 = vmatmul.mubr.bf16.gmra.mxu0 %v2205
        %v2290 = vpop.f32.mrf.mxu0
        %v2291 = vadd.f32 %v2134, %v2290
        %v2292 = vpop.f32.mrf.mxu0
        %v2293 = vadd.f32 %v2136, %v2292
        %v2294 = vpop.f32.mrf.mxu0
        %v2295 = vadd.f32 %v2138, %v2294
        %v2296 = vpop.f32.mrf.mxu0
        %v2297 = vadd.f32 %v2140, %v2296
        %2298 = vmatprep.mubr.bf16.mxu0 0
        %2299 = vmatmul.mubr.bf16.gmra.mxu0 %v2208
        %v2300 = vpop.f32.mrf.mxu0
        %v2301 = vadd.f32 %v2144, %v2300
        %v2302 = vpop.f32.mrf.mxu0
        %v2303 = vadd.f32 %v2146, %v2302
        %v2304 = vpop.f32.mrf.mxu0
        %v2305 = vadd.f32 %v2148, %v2304
        %v2306 = vpop.f32.mrf.mxu0
        %v2307 = vadd.f32 %v2150, %v2306
        %2308 = vmatprep.mubr.bf16.mxu0 0
        %2309 = vmatmul.mubr.bf16.gmra.mxu0 %v2211
        %v2310 = vpop.f32.mrf.mxu0
        %v2311 = vadd.f32 %v2154, %v2310
        %v2312 = vpop.f32.mrf.mxu0
        %v2313 = vadd.f32 %v2156, %v2312
        %v2314 = vpop.f32.mrf.mxu0
        %v2315 = vadd.f32 %v2158, %v2314
        %v2316 = vpop.f32.mrf.mxu0
        %v2317 = vadd.f32 %v2160, %v2316
        %2318 = vmatprep.mubr.bf16.mxu0 0
        %2319 = vmatmul.mubr.bf16.gmra.mxu0 %v2214
        %v2320 = vpop.f32.mrf.mxu0
        %v2321 = vadd.f32 %v2164, %v2320
        %v2322 = vpop.f32.mrf.mxu0
        %v2323 = vadd.f32 %v2166, %v2322
        %v2324 = vpop.f32.mrf.mxu0
        %v2325 = vadd.f32 %v2168, %v2324
        %v2326 = vpop.f32.mrf.mxu0
        %v2327 = vadd.f32 %v2170, %v2326
        %2328 = vdwg.mxu0
        %v2329 = vlaneseq
        %v2330 = vshrl.u32 %v2329, 7
        %v2331 = vsub.s32 2, %v2330
        %v2332 = vrot.slane %v204, %v2331
        %v2333 = vlaneseq
        %v2334 = vshrl.u32 %v2333, 7
        %v2335 = vsub.s32 2, %v2334
        %v2336 = vrot.slane %v205, %v2335
        %v2337 = vadd.f32 %v2251, %v2332
        %v2338 = vadd.f32 %v2253, %v2336
        %v2339 = vadd.f32 %v2255, %v2332
        %v2340 = vadd.f32 %v2257, %v2336
        %v2341 = vadd.f32 %v2261, %v2332
        %v2342 = vadd.f32 %v2263, %v2336
        %v2343 = vadd.f32 %v2265, %v2332
        %v2344 = vadd.f32 %v2267, %v2336
        %v2345 = vadd.f32 %v2271, %v2332
        %v2346 = vadd.f32 %v2273, %v2336
        %v2347 = vadd.f32 %v2275, %v2332
        %v2348 = vadd.f32 %v2277, %v2336
        %v2349 = vadd.f32 %v2281, %v2332
        %v2350 = vadd.f32 %v2283, %v2336
        %v2351 = vadd.f32 %v2285, %v2332
        %v2352 = vadd.f32 %v2287, %v2336
        %v2353 = vadd.f32 %v2291, %v2332
        %v2354 = vadd.f32 %v2293, %v2336
        %v2355 = vadd.f32 %v2295, %v2332
        %v2356 = vadd.f32 %v2297, %v2336
        %v2357 = vadd.f32 %v2301, %v2332
        %v2358 = vadd.f32 %v2303, %v2336
        %v2359 = vadd.f32 %v2305, %v2332
        %v2360 = vadd.f32 %v2307, %v2336
        %v2361 = vadd.f32 %v2311, %v2332
        %v2362 = vadd.f32 %v2313, %v2336
        %v2363 = vadd.f32 %v2315, %v2332
        %v2364 = vadd.f32 %v2317, %v2336
        %v2365 = vadd.f32 %v2321, %v2332
        %v2366 = vadd.f32 %v2323, %v2336
        %v2367 = vadd.f32 %v2325, %v2332
        %v2368 = vadd.f32 %v2327, %v2336
        %v2369 = vsub.f32 0.0, %v2337
        %v2370 = vsub.f32 0.0, %v2338
        %v2371 = vsub.f32 0.0, %v2339
        %v2372 = vsub.f32 0.0, %v2340
        %v2373 = vsub.f32 0.0, %v2341
        %v2374 = vsub.f32 0.0, %v2342
        %v2375 = vsub.f32 0.0, %v2343
        %v2376 = vsub.f32 0.0, %v2344
        %v2377 = vsub.f32 0.0, %v2345
        %v2378 = vsub.f32 0.0, %v2346
        %v2379 = vsub.f32 0.0, %v2347
        %v2380 = vsub.f32 0.0, %v2348
        %v2381 = vsub.f32 0.0, %v2349
        %v2382 = vsub.f32 0.0, %v2350
        %v2383 = vsub.f32 0.0, %v2351
        %v2384 = vsub.f32 0.0, %v2352
        %v2385 = vsub.f32 0.0, %v2353
        %v2386 = vsub.f32 0.0, %v2354
        %v2387 = vsub.f32 0.0, %v2355
        %v2388 = vsub.f32 0.0, %v2356
        %v2389 = vsub.f32 0.0, %v2357
        %v2390 = vsub.f32 0.0, %v2358
        %v2391 = vsub.f32 0.0, %v2359
        %v2392 = vsub.f32 0.0, %v2360
        %v2393 = vsub.f32 0.0, %v2361
        %v2394 = vsub.f32 0.0, %v2362
        %v2395 = vsub.f32 0.0, %v2363
        %v2396 = vsub.f32 0.0, %v2364
        %v2397 = vsub.f32 0.0, %v2365
        %v2398 = vsub.f32 0.0, %v2366
        %v2399 = vsub.f32 0.0, %v2367
        %v2400 = vsub.f32 0.0, %v2368
        %v2401 = vmul.f32 %v2369, 1.442695
        %v2402 = vpow.pop %v2401
        %v2403 = vmul.f32 %v2370, 1.442695
        %v2404 = vpow.pop %v2403
        %v2405 = vmul.f32 %v2371, 1.442695
        %v2406 = vpow.pop %v2405
        %v2407 = vmul.f32 %v2372, 1.442695
        %v2408 = vpow.pop %v2407
        %v2409 = vmul.f32 %v2373, 1.442695
        %v2410 = vpow.pop %v2409
        %v2411 = vmul.f32 %v2374, 1.442695
        %v2412 = vpow.pop %v2411
        %v2413 = vmul.f32 %v2375, 1.442695
        %v2414 = vpow.pop %v2413
        %v2415 = vmul.f32 %v2376, 1.442695
        %v2416 = vpow.pop %v2415
        %v2417 = vmul.f32 %v2377, 1.442695
        %v2418 = vpow.pop %v2417
        %v2419 = vmul.f32 %v2378, 1.442695
        %v2420 = vpow.pop %v2419
        %v2421 = vmul.f32 %v2379, 1.442695
        %v2422 = vpow.pop %v2421
        %v2423 = vmul.f32 %v2380, 1.442695
        %v2424 = vpow.pop %v2423
        %v2425 = vmul.f32 %v2381, 1.442695
        %v2426 = vpow.pop %v2425
        %v2427 = vmul.f32 %v2382, 1.442695
        %v2428 = vpow.pop %v2427
        %v2429 = vmul.f32 %v2383, 1.442695
        %v2430 = vpow.pop %v2429
        %v2431 = vmul.f32 %v2384, 1.442695
        %v2432 = vpow.pop %v2431
        %v2433 = vmul.f32 %v2385, 1.442695
        %v2434 = vpow.pop %v2433
        %v2435 = vmul.f32 %v2386, 1.442695
        %v2436 = vpow.pop %v2435
        %v2437 = vmul.f32 %v2387, 1.442695
        %v2438 = vpow.pop %v2437
        %v2439 = vmul.f32 %v2388, 1.442695
        %v2440 = vpow.pop %v2439
        %v2441 = vmul.f32 %v2389, 1.442695
        %v2442 = vpow.pop %v2441
        %v2443 = vmul.f32 %v2390, 1.442695
        %v2444 = vpow.pop %v2443
        %v2445 = vmul.f32 %v2391, 1.442695
        %v2446 = vpow.pop %v2445
        %v2447 = vmul.f32 %v2392, 1.442695
        %v2448 = vpow.pop %v2447
        %v2449 = vmul.f32 %v2393, 1.442695
        %v2450 = vpow.pop %v2449
        %v2451 = vmul.f32 %v2394, 1.442695
        %v2452 = vpow.pop %v2451
        %v2453 = vmul.f32 %v2395, 1.442695
        %v2454 = vpow.pop %v2453
        %v2455 = vmul.f32 %v2396, 1.442695
        %v2456 = vpow.pop %v2455
        %v2457 = vmul.f32 %v2397, 1.442695
        %v2458 = vpow.pop %v2457
        %v2459 = vmul.f32 %v2398, 1.442695
        %v2460 = vpow.pop %v2459
        %v2461 = vmul.f32 %v2399, 1.442695
        %v2462 = vpow.pop %v2461
        %v2463 = vmul.f32 %v2400, 1.442695
        %v2464 = vpow.pop %v2463
        %v2465 = vadd.f32 %v2402, 1.0
        %v2466 = vadd.f32 %v2404, 1.0
        %v2467 = vadd.f32 %v2406, 1.0
        %v2468 = vadd.f32 %v2408, 1.0
        %v2469 = vadd.f32 %v2410, 1.0
        %v2470 = vadd.f32 %v2412, 1.0
        %v2471 = vadd.f32 %v2414, 1.0
        %v2472 = vadd.f32 %v2416, 1.0
        %v2473 = vadd.f32 %v2418, 1.0
        %v2474 = vadd.f32 %v2420, 1.0
        %v2475 = vadd.f32 %v2422, 1.0
        %v2476 = vadd.f32 %v2424, 1.0
        %v2477 = vadd.f32 %v2426, 1.0
        %v2478 = vadd.f32 %v2428, 1.0
        %v2479 = vadd.f32 %v2430, 1.0
        %v2480 = vadd.f32 %v2432, 1.0
        %v2481 = vadd.f32 %v2434, 1.0
        %v2482 = vadd.f32 %v2436, 1.0
        %v2483 = vadd.f32 %v2438, 1.0
        %v2484 = vadd.f32 %v2440, 1.0
        %v2485 = vadd.f32 %v2442, 1.0
        %v2486 = vadd.f32 %v2444, 1.0
        %v2487 = vadd.f32 %v2446, 1.0
        %v2488 = vadd.f32 %v2448, 1.0
        %v2489 = vadd.f32 %v2450, 1.0
        %v2490 = vadd.f32 %v2452, 1.0
        %v2491 = vadd.f32 %v2454, 1.0
        %v2492 = vadd.f32 %v2456, 1.0
        %v2493 = vadd.f32 %v2458, 1.0
        %v2494 = vadd.f32 %v2460, 1.0
        %v2495 = vadd.f32 %v2462, 1.0
        %v2496 = vadd.f32 %v2464, 1.0
        %v2497 = vrcp.pop %v2465
        %v2498 = vrcp.pop %v2466
        %v2499 = vrcp.pop %v2467
        %v2500 = vrcp.pop %v2468
        %v2501 = vrcp.pop %v2469
        %v2502 = vrcp.pop %v2470
        %v2503 = vrcp.pop %v2471
        %v2504 = vrcp.pop %v2472
        %v2505 = vrcp.pop %v2473
        %v2506 = vrcp.pop %v2474
        %v2507 = vrcp.pop %v2475
        %v2508 = vrcp.pop %v2476
        %v2509 = vrcp.pop %v2477
        %v2510 = vrcp.pop %v2478
        %v2511 = vrcp.pop %v2479
        %v2512 = vrcp.pop %v2480
        %v2513 = vrcp.pop %v2481
        %v2514 = vrcp.pop %v2482
        %v2515 = vrcp.pop %v2483
        %v2516 = vrcp.pop %v2484
        %v2517 = vrcp.pop %v2485
        %v2518 = vrcp.pop %v2486
        %v2519 = vrcp.pop %v2487
        %v2520 = vrcp.pop %v2488
        %v2521 = vrcp.pop %v2489
        %v2522 = vrcp.pop %v2490
        %v2523 = vrcp.pop %v2491
        %v2524 = vrcp.pop %v2492
        %v2525 = vrcp.pop %v2493
        %v2526 = vrcp.pop %v2494
        %v2527 = vrcp.pop %v2495
        %v2528 = vrcp.pop %v2496
        %v2529 = vmul.f32 %v2337, %v2497
        %v2530 = vmul.f32 %v2338, %v2498
        %v2531 = vmul.f32 %v2339, %v2499
        %v2532 = vmul.f32 %v2340, %v2500
        %v2533 = vmul.f32 %v2341, %v2501
        %v2534 = vmul.f32 %v2342, %v2502
        %v2535 = vmul.f32 %v2343, %v2503
        %v2536 = vmul.f32 %v2344, %v2504
        %v2537 = vmul.f32 %v2345, %v2505
        %v2538 = vmul.f32 %v2346, %v2506
        %v2539 = vmul.f32 %v2347, %v2507
        %v2540 = vmul.f32 %v2348, %v2508
        %v2541 = vmul.f32 %v2349, %v2509
        %v2542 = vmul.f32 %v2350, %v2510
        %v2543 = vmul.f32 %v2351, %v2511
        %v2544 = vmul.f32 %v2352, %v2512
        %v2545 = vmul.f32 %v2353, %v2513
        %v2546 = vmul.f32 %v2354, %v2514
        %v2547 = vmul.f32 %v2355, %v2515
        %v2548 = vmul.f32 %v2356, %v2516
        %v2549 = vmul.f32 %v2357, %v2517
        %v2550 = vmul.f32 %v2358, %v2518
        %v2551 = vmul.f32 %v2359, %v2519
        %v2552 = vmul.f32 %v2360, %v2520
        %v2553 = vmul.f32 %v2361, %v2521
        %v2554 = vmul.f32 %v2362, %v2522
        %v2555 = vmul.f32 %v2363, %v2523
        %v2556 = vmul.f32 %v2364, %v2524
        %v2557 = vmul.f32 %v2365, %v2525
        %v2558 = vmul.f32 %v2366, %v2526
        %v2559 = vmul.f32 %v2367, %v2527
        %v2560 = vmul.f32 %v2368, %v2528
        %v2561 = vld [vmem:[#allocation2 + $0x40] sm:$0xff]
        %v2562 = vld [vmem:[#allocation2 + $0x48] sm:$0xff]
        %v2563 = vld [vmem:[#allocation2 + $0x50] sm:$0xff]
        %v2564 = vld [vmem:[#allocation2 + $0x58] sm:$0xff]
        %v2565 = vld [vmem:[#allocation2 + $0x60] sm:$0xff]
        %v2566 = vld [vmem:[#allocation2 + $0x68] sm:$0xff]
        %v2567 = vld [vmem:[#allocation2 + $0x70] sm:$0xff]
        %v2568 = vld [vmem:[#allocation2 + $0x78] sm:$0xff]
        %v2569 = vld [vmem:[#allocation2 + $0x80] sm:$0xff]
        %v2570 = vld [vmem:[#allocation2 + $0x88] sm:$0xff]
        %v2571 = vld [vmem:[#allocation2 + $0x90] sm:$0xff]
        %v2572 = vld [vmem:[#allocation2 + $0x98] sm:$0xff]
        %v2573 = vld [vmem:[#allocation2 + $0xa0] sm:$0xff]
        %v2574 = vld [vmem:[#allocation2 + $0xa8] sm:$0xff]
        %v2575 = vld [vmem:[#allocation2 + $0xb0] sm:$0xff]
        %v2576 = vld [vmem:[#allocation2 + $0xb8] sm:$0xff]
        %v2577 = vld [vmem:[#allocation2 + $0xc0] sm:$0xff]
        %v2578 = vld [vmem:[#allocation2 + $0xc8] sm:$0xff]
        %v2579 = vld [vmem:[#allocation2 + $0xd0] sm:$0xff]
        %v2580 = vld [vmem:[#allocation2 + $0xd8] sm:$0xff]
        %v2581 = vld [vmem:[#allocation2 + $0xe0] sm:$0xff]
        %v2582 = vld [vmem:[#allocation2 + $0xe8] sm:$0xff]
        %v2583 = vld [vmem:[#allocation2 + $0xf0] sm:$0xff]
        %v2584 = vld [vmem:[#allocation2 + $0xf8] sm:$0xff]
        %v2585 = vld [vmem:[#allocation2 + $0x100] sm:$0xff]
        %v2586 = vld [vmem:[#allocation2 + $0x108] sm:$0xff]
        %v2587 = vld [vmem:[#allocation2 + $0x110] sm:$0xff]
        %v2588 = vld [vmem:[#allocation2 + $0x118] sm:$0xff]
        %v2589 = vld [vmem:[#allocation2 + $0x120] sm:$0xff]
        %v2590 = vld [vmem:[#allocation2 + $0x128] sm:$0xff]
        %v2591 = vld [vmem:[#allocation2 + $0x130] sm:$0xff]
        %v2592 = vld [vmem:[#allocation2 + $0x138] sm:$0xff]
        %v2593 = vpack.c.bf16 %v2531, %v2529
        %v2594 = vpack.c.bf16 %v2532, %v2530
        %v2595 = vpack.c.bf16 %v2535, %v2533
        %v2596 = vpack.c.bf16 %v2536, %v2534
        %v2597 = vpack.c.bf16 %v2539, %v2537
        %v2598 = vpack.c.bf16 %v2540, %v2538
        %v2599 = vpack.c.bf16 %v2543, %v2541
        %v2600 = vpack.c.bf16 %v2544, %v2542
        %v2601 = vpack.c.bf16 %v2547, %v2545
        %v2602 = vpack.c.bf16 %v2548, %v2546
        %v2603 = vpack.c.bf16 %v2551, %v2549
        %v2604 = vpack.c.bf16 %v2552, %v2550
        %v2605 = vpack.c.bf16 %v2555, %v2553
        %v2606 = vpack.c.bf16 %v2556, %v2554
        %v2607 = vpack.c.bf16 %v2559, %v2557
        %v2608 = vpack.c.bf16 %v2560, %v2558
        %v2609 = vlaneseq
        %v2610 = vshrl.u32 %v2609, 7
        %v2611 = vsub.s32 3, %v2610
        %v2612 = vrot.slane %v204, %v2611
        %v2613 = vlaneseq
        %v2614 = vshrl.u32 %v2613, 7
        %v2615 = vsub.s32 3, %v2614
        %v2616 = vrot.slane %v205, %v2615
        %v2649 = vunpack.c.l.b16 %v2561
        %v2650 = vunpack.c.h.b16 %v2561
        %v2651 = vunpack.c.l.b16 %v2562
        %v2652 = vunpack.c.h.b16 %v2562
        %v2653 = vunpack.c.l.b16 %v2563
        %v2654 = vunpack.c.h.b16 %v2563
        %v2655 = vunpack.c.l.b16 %v2564
        %v2656 = vunpack.c.h.b16 %v2564
        %v2657 = vunpack.c.l.b16 %v2565
        %v2658 = vunpack.c.h.b16 %v2565
        %v2659 = vunpack.c.l.b16 %v2566
        %v2660 = vunpack.c.h.b16 %v2566
        %v2661 = vunpack.c.l.b16 %v2567
        %v2662 = vunpack.c.h.b16 %v2567
        %v2663 = vunpack.c.l.b16 %v2568
        %v2664 = vunpack.c.h.b16 %v2568
        %v2665 = vunpack.c.l.b16 %v2569
        %v2666 = vunpack.c.h.b16 %v2569
        %v2667 = vunpack.c.l.b16 %v2570
        %v2668 = vunpack.c.h.b16 %v2570
        %v2669 = vunpack.c.l.b16 %v2571
        %v2670 = vunpack.c.h.b16 %v2571
        %v2671 = vunpack.c.l.b16 %v2572
        %v2672 = vunpack.c.h.b16 %v2572
        %v2673 = vunpack.c.l.b16 %v2573
        %v2674 = vunpack.c.h.b16 %v2573
        %v2675 = vunpack.c.l.b16 %v2574
        %v2676 = vunpack.c.h.b16 %v2574
        %v2677 = vunpack.c.l.b16 %v2575
        %v2678 = vunpack.c.h.b16 %v2575
        %v2679 = vunpack.c.l.b16 %v2576
        %v2680 = vunpack.c.h.b16 %v2576
        %v2681 = vunpack.c.l.b16 %v2577
        %v2682 = vunpack.c.h.b16 %v2577
        %v2683 = vunpack.c.l.b16 %v2578
        %v2684 = vunpack.c.h.b16 %v2578
        %v2685 = vunpack.c.l.b16 %v2579
        %v2686 = vunpack.c.h.b16 %v2579
        %v2687 = vunpack.c.l.b16 %v2580
        %v2688 = vunpack.c.h.b16 %v2580
        %v2689 = vunpack.c.l.b16 %v2581
        %v2690 = vunpack.c.h.b16 %v2581
        %v2691 = vunpack.c.l.b16 %v2582
        %v2692 = vunpack.c.h.b16 %v2582
        %v2693 = vunpack.c.l.b16 %v2583
        %v2694 = vunpack.c.h.b16 %v2583
        %v2695 = vunpack.c.l.b16 %v2584
        %v2696 = vunpack.c.h.b16 %v2584
        %v2697 = vunpack.c.l.b16 %v2585
        %v2698 = vunpack.c.h.b16 %v2585
        %v2699 = vunpack.c.l.b16 %v2586
        %v2700 = vunpack.c.h.b16 %v2586
        %v2701 = vunpack.c.l.b16 %v2587
        %v2702 = vunpack.c.h.b16 %v2587
        %v2703 = vunpack.c.l.b16 %v2588
        %v2704 = vunpack.c.h.b16 %v2588
        %v2705 = vunpack.c.l.b16 %v2589
        %v2706 = vunpack.c.h.b16 %v2589
        %v2707 = vunpack.c.l.b16 %v2590
        %v2708 = vunpack.c.h.b16 %v2590
        %v2709 = vunpack.c.l.b16 %v2591
        %v2710 = vunpack.c.h.b16 %v2591
        %v2711 = vunpack.c.l.b16 %v2592
        %v2712 = vunpack.c.h.b16 %v2592
        %v2713 = vpack.c.b16 %v2651, %v2649
        %v2714 = vpack.c.b16 %v2652, %v2650
        %v2715 = vpack.c.b16 %v2655, %v2653
        %v2716 = vpack.c.b16 %v2656, %v2654
        %v2717 = vpack.c.b16 %v2659, %v2657
        %v2718 = vpack.c.b16 %v2660, %v2658
        %v2719 = vpack.c.b16 %v2663, %v2661
        %v2720 = vpack.c.b16 %v2664, %v2662
        %v2721 = vpack.c.b16 %v2667, %v2665
        %v2722 = vpack.c.b16 %v2668, %v2666
        %v2723 = vpack.c.b16 %v2671, %v2669
        %v2724 = vpack.c.b16 %v2672, %v2670
        %v2725 = vpack.c.b16 %v2675, %v2673
        %v2726 = vpack.c.b16 %v2676, %v2674
        %v2727 = vpack.c.b16 %v2679, %v2677
        %v2728 = vpack.c.b16 %v2680, %v2678
        %v2729 = vpack.c.b16 %v2683, %v2681
        %v2730 = vpack.c.b16 %v2684, %v2682
        %v2731 = vpack.c.b16 %v2687, %v2685
        %v2732 = vpack.c.b16 %v2688, %v2686
        %v2733 = vpack.c.b16 %v2691, %v2689
        %v2734 = vpack.c.b16 %v2692, %v2690
        %v2735 = vpack.c.b16 %v2695, %v2693
        %v2736 = vpack.c.b16 %v2696, %v2694
        %v2737 = vpack.c.b16 %v2699, %v2697
        %v2738 = vpack.c.b16 %v2700, %v2698
        %v2739 = vpack.c.b16 %v2703, %v2701
        %v2740 = vpack.c.b16 %v2704, %v2702
        %v2741 = vpack.c.b16 %v2707, %v2705
        %v2742 = vpack.c.b16 %v2708, %v2706
        %v2743 = vpack.c.b16 %v2711, %v2709
        %v2744 = vpack.c.b16 %v2712, %v2710
        %2777 = vmatprep.subr.bf16.mxu0 %v2728
        %2778 = vmatpush1.bf16.msra.mxu0 %v2727
        %2779 = vmatprep.subr.bf16.mxu0 %v2726
        %2780 = vmatpush1.bf16.msra.mxu0 %v2725
        %2781 = vmatprep.subr.bf16.mxu0 %v2724
        %2782 = vmatpush1.bf16.msra.mxu0 %v2723
        %2783 = vmatprep.subr.bf16.mxu0 %v2722
        %2784 = vmatpush1.bf16.msra.mxu0 %v2721
        %2785 = vmatprep.subr.bf16.mxu0 %v2720
        %2786 = vmatpush1.bf16.msra.mxu0 %v2719
        %2787 = vmatprep.subr.bf16.mxu0 %v2718
        %2788 = vmatpush1.bf16.msra.mxu0 %v2717
        %2789 = vmatprep.subr.bf16.mxu0 %v2716
        %2790 = vmatpush1.bf16.msra.mxu0 %v2715
        %2791 = vmatprep.subr.bf16.mxu0 %v2714
        %2792 = vmatpush1.bf16.msra.mxu0 %v2713
        %2793 = vmatprep.subr.bf16.mxu0 %v2744
        %2794 = vmatpush2.bf16.msra.mxu0 %v2743
        %2795 = vmatprep.subr.bf16.mxu0 %v2742
        %2796 = vmatpush2.bf16.msra.mxu0 %v2741
        %2797 = vmatprep.subr.bf16.mxu0 %v2740
        %2798 = vmatpush2.bf16.msra.mxu0 %v2739
        %2799 = vmatprep.subr.bf16.mxu0 %v2738
        %2800 = vmatpush2.bf16.msra.mxu0 %v2737
        %2801 = vmatprep.subr.bf16.mxu0 %v2736
        %2802 = vmatpush2.bf16.msra.mxu0 %v2735
        %2803 = vmatprep.subr.bf16.mxu0 %v2734
        %2804 = vmatpush2.bf16.msra.mxu0 %v2733
        %2805 = vmatprep.subr.bf16.mxu0 %v2732
        %2806 = vmatpush2.bf16.msra.mxu0 %v2731
        %2807 = vmatprep.subr.bf16.mxu0 %v2730
        %2808 = vmatpush2.bf16.msra.mxu0 %v2729
        %2809 = vmatprep.mubr.bf16.mxu0 %v2594
        %2810 = vmatmul.mubr.bf16.gmra.mxu0 %v2593
        %v2811 = vpop.f32.mrf.mxu0
        %v2812 = vadd.f32 %v2612, %v2811
        %v2813 = vpop.f32.mrf.mxu0
        %v2814 = vadd.f32 %v2616, %v2813
        %v2815 = vpop.f32.mrf.mxu0
        %v2816 = vadd.f32 %v2612, %v2815
        %v2817 = vpop.f32.mrf.mxu0
        %v2818 = vadd.f32 %v2616, %v2817
        %2819 = vmatprep.mubr.bf16.mxu0 %v2596
        %2820 = vmatmul.mubr.bf16.gmra.mxu0 %v2595
        %v2821 = vpop.f32.mrf.mxu0
        %v2822 = vadd.f32 %v2612, %v2821
        %v2823 = vpop.f32.mrf.mxu0
        %v2824 = vadd.f32 %v2616, %v2823
        %v2825 = vpop.f32.mrf.mxu0
        %v2826 = vadd.f32 %v2612, %v2825
        %v2827 = vpop.f32.mrf.mxu0
        %v2828 = vadd.f32 %v2616, %v2827
        %2829 = vmatprep.mubr.bf16.mxu0 %v2598
        %2830 = vmatmul.mubr.bf16.gmra.mxu0 %v2597
        %v2831 = vpop.f32.mrf.mxu0
        %v2832 = vadd.f32 %v2612, %v2831
        %v2833 = vpop.f32.mrf.mxu0
        %v2834 = vadd.f32 %v2616, %v2833
        %v2835 = vpop.f32.mrf.mxu0
        %v2836 = vadd.f32 %v2612, %v2835
        %v2837 = vpop.f32.mrf.mxu0
        %v2838 = vadd.f32 %v2616, %v2837
        %2839 = vmatprep.mubr.bf16.mxu0 %v2600
        %2840 = vmatmul.mubr.bf16.gmra.mxu0 %v2599
        %v2841 = vpop.f32.mrf.mxu0
        %v2842 = vadd.f32 %v2612, %v2841
        %v2843 = vpop.f32.mrf.mxu0
        %v2844 = vadd.f32 %v2616, %v2843
        %v2845 = vpop.f32.mrf.mxu0
        %v2846 = vadd.f32 %v2612, %v2845
        %v2847 = vpop.f32.mrf.mxu0
        %v2848 = vadd.f32 %v2616, %v2847
        %2849 = vmatprep.mubr.bf16.mxu0 %v2602
        %2850 = vmatmul.mubr.bf16.gmra.mxu0 %v2601
        %v2851 = vpop.f32.mrf.mxu0
        %v2852 = vadd.f32 %v2612, %v2851
        %v2853 = vpop.f32.mrf.mxu0
        %v2854 = vadd.f32 %v2616, %v2853
        %v2855 = vpop.f32.mrf.mxu0
        %v2856 = vadd.f32 %v2612, %v2855
        %v2857 = vpop.f32.mrf.mxu0
        %v2858 = vadd.f32 %v2616, %v2857
        %2859 = vmatprep.mubr.bf16.mxu0 %v2604
        %2860 = vmatmul.mubr.bf16.gmra.mxu0 %v2603
        %v2861 = vpop.f32.mrf.mxu0
        %v2862 = vadd.f32 %v2612, %v2861
        %v2863 = vpop.f32.mrf.mxu0
        %v2864 = vadd.f32 %v2616, %v2863
        %v2865 = vpop.f32.mrf.mxu0
        %v2866 = vadd.f32 %v2612, %v2865
        %v2867 = vpop.f32.mrf.mxu0
        %v2868 = vadd.f32 %v2616, %v2867
        %2869 = vmatprep.mubr.bf16.mxu0 %v2606
        %2870 = vmatmul.mubr.bf16.gmra.mxu0 %v2605
        %v2871 = vpop.f32.mrf.mxu0
        %v2872 = vadd.f32 %v2612, %v2871
        %v2873 = vpop.f32.mrf.mxu0
        %v2874 = vadd.f32 %v2616, %v2873
        %v2875 = vpop.f32.mrf.mxu0
        %v2876 = vadd.f32 %v2612, %v2875
        %v2877 = vpop.f32.mrf.mxu0
        %v2878 = vadd.f32 %v2616, %v2877
        %2879 = vmatprep.mubr.bf16.mxu0 %v2608
        %2880 = vmatmul.mubr.bf16.gmra.mxu0 %v2607
        %v2881 = vpop.f32.mrf.mxu0
        %v2882 = vadd.f32 %v2612, %v2881
        %v2883 = vpop.f32.mrf.mxu0
        %v2884 = vadd.f32 %v2616, %v2883
        %v2885 = vpop.f32.mrf.mxu0
        %v2886 = vadd.f32 %v2612, %v2885
        %v2887 = vpop.f32.mrf.mxu0
        %v2888 = vadd.f32 %v2616, %v2887
        %2889 = vdwg.mxu0
        %v2890 = vsub.f32 0.0, %v2812
        %v2891 = vsub.f32 0.0, %v2814
        %v2892 = vsub.f32 0.0, %v2816
        %v2893 = vsub.f32 0.0, %v2818
        %v2894 = vsub.f32 0.0, %v2822
        %v2895 = vsub.f32 0.0, %v2824
        %v2896 = vsub.f32 0.0, %v2826
        %v2897 = vsub.f32 0.0, %v2828
        %v2898 = vsub.f32 0.0, %v2832
        %v2899 = vsub.f32 0.0, %v2834
        %v2900 = vsub.f32 0.0, %v2836
        %v2901 = vsub.f32 0.0, %v2838
        %v2902 = vsub.f32 0.0, %v2842
        %v2903 = vsub.f32 0.0, %v2844
        %v2904 = vsub.f32 0.0, %v2846
        %v2905 = vsub.f32 0.0, %v2848
        %v2906 = vsub.f32 0.0, %v2852
        %v2907 = vsub.f32 0.0, %v2854
        %v2908 = vsub.f32 0.0, %v2856
        %v2909 = vsub.f32 0.0, %v2858
        %v2910 = vsub.f32 0.0, %v2862
        %v2911 = vsub.f32 0.0, %v2864
        %v2912 = vsub.f32 0.0, %v2866
        %v2913 = vsub.f32 0.0, %v2868
        %v2914 = vsub.f32 0.0, %v2872
        %v2915 = vsub.f32 0.0, %v2874
        %v2916 = vsub.f32 0.0, %v2876
        %v2917 = vsub.f32 0.0, %v2878
        %v2918 = vsub.f32 0.0, %v2882
        %v2919 = vsub.f32 0.0, %v2884
        %v2920 = vsub.f32 0.0, %v2886
        %v2921 = vsub.f32 0.0, %v2888
        %v2922 = vmul.f32 %v2890, 1.442695
        %v2923 = vpow.pop %v2922
        %v2924 = vmul.f32 %v2891, 1.442695
        %v2925 = vpow.pop %v2924
        %v2926 = vmul.f32 %v2892, 1.442695
        %v2927 = vpow.pop %v2926
        %v2928 = vmul.f32 %v2893, 1.442695
        %v2929 = vpow.pop %v2928
        %v2930 = vmul.f32 %v2894, 1.442695
        %v2931 = vpow.pop %v2930
        %v2932 = vmul.f32 %v2895, 1.442695
        %v2933 = vpow.pop %v2932
        %v2934 = vmul.f32 %v2896, 1.442695
        %v2935 = vpow.pop %v2934
        %v2936 = vmul.f32 %v2897, 1.442695
        %v2937 = vpow.pop %v2936
        %v2938 = vmul.f32 %v2898, 1.442695
        %v2939 = vpow.pop %v2938
        %v2940 = vmul.f32 %v2899, 1.442695
        %v2941 = vpow.pop %v2940
        %v2942 = vmul.f32 %v2900, 1.442695
        %v2943 = vpow.pop %v2942
        %v2944 = vmul.f32 %v2901, 1.442695
        %v2945 = vpow.pop %v2944
        %v2946 = vmul.f32 %v2902, 1.442695
        %v2947 = vpow.pop %v2946
        %v2948 = vmul.f32 %v2903, 1.442695
        %v2949 = vpow.pop %v2948
        %v2950 = vmul.f32 %v2904, 1.442695
        %v2951 = vpow.pop %v2950
        %v2952 = vmul.f32 %v2905, 1.442695
        %v2953 = vpow.pop %v2952
        %v2954 = vmul.f32 %v2906, 1.442695
        %v2955 = vpow.pop %v2954
        %v2956 = vmul.f32 %v2907, 1.442695
        %v2957 = vpow.pop %v2956
        %v2958 = vmul.f32 %v2908, 1.442695
        %v2959 = vpow.pop %v2958
        %v2960 = vmul.f32 %v2909, 1.442695
        %v2961 = vpow.pop %v2960
        %v2962 = vmul.f32 %v2910, 1.442695
        %v2963 = vpow.pop %v2962
        %v2964 = vmul.f32 %v2911, 1.442695
        %v2965 = vpow.pop %v2964
        %v2966 = vmul.f32 %v2912, 1.442695
        %v2967 = vpow.pop %v2966
        %v2968 = vmul.f32 %v2913, 1.442695
        %v2969 = vpow.pop %v2968
        %v2970 = vmul.f32 %v2914, 1.442695
        %v2971 = vpow.pop %v2970
        %v2972 = vmul.f32 %v2915, 1.442695
        %v2973 = vpow.pop %v2972
        %v2974 = vmul.f32 %v2916, 1.442695
        %v2975 = vpow.pop %v2974
        %v2976 = vmul.f32 %v2917, 1.442695
        %v2977 = vpow.pop %v2976
        %v2978 = vmul.f32 %v2918, 1.442695
        %v2979 = vpow.pop %v2978
        %v2980 = vmul.f32 %v2919, 1.442695
        %v2981 = vpow.pop %v2980
        %v2982 = vmul.f32 %v2920, 1.442695
        %v2983 = vpow.pop %v2982
        %v2984 = vmul.f32 %v2921, 1.442695
        %v2985 = vpow.pop %v2984
        %v2986 = vadd.f32 %v2923, 1.0
        %v2987 = vadd.f32 %v2925, 1.0
        %v2988 = vadd.f32 %v2927, 1.0
        %v2989 = vadd.f32 %v2929, 1.0
        %v2990 = vadd.f32 %v2931, 1.0
        %v2991 = vadd.f32 %v2933, 1.0
        %v2992 = vadd.f32 %v2935, 1.0
        %v2993 = vadd.f32 %v2937, 1.0
        %v2994 = vadd.f32 %v2939, 1.0
        %v2995 = vadd.f32 %v2941, 1.0
        %v2996 = vadd.f32 %v2943, 1.0
        %v2997 = vadd.f32 %v2945, 1.0
        %v2998 = vadd.f32 %v2947, 1.0
        %v2999 = vadd.f32 %v2949, 1.0
        %v3000 = vadd.f32 %v2951, 1.0
        %v3001 = vadd.f32 %v2953, 1.0
        %v3002 = vadd.f32 %v2955, 1.0
        %v3003 = vadd.f32 %v2957, 1.0
        %v3004 = vadd.f32 %v2959, 1.0
        %v3005 = vadd.f32 %v2961, 1.0
        %v3006 = vadd.f32 %v2963, 1.0
        %v3007 = vadd.f32 %v2965, 1.0
        %v3008 = vadd.f32 %v2967, 1.0
        %v3009 = vadd.f32 %v2969, 1.0
        %v3010 = vadd.f32 %v2971, 1.0
        %v3011 = vadd.f32 %v2973, 1.0
        %v3012 = vadd.f32 %v2975, 1.0
        %v3013 = vadd.f32 %v2977, 1.0
        %v3014 = vadd.f32 %v2979, 1.0
        %v3015 = vadd.f32 %v2981, 1.0
        %v3016 = vadd.f32 %v2983, 1.0
        %v3017 = vadd.f32 %v2985, 1.0
        %v3018 = vrcp.pop %v2986
        %v3019 = vrcp.pop %v2987
        %v3020 = vrcp.pop %v2988
        %v3021 = vrcp.pop %v2989
        %v3022 = vrcp.pop %v2990
        %v3023 = vrcp.pop %v2991
        %v3024 = vrcp.pop %v2992
        %v3025 = vrcp.pop %v2993
        %v3026 = vrcp.pop %v2994
        %v3027 = vrcp.pop %v2995
        %v3028 = vrcp.pop %v2996
        %v3029 = vrcp.pop %v2997
        %v3030 = vrcp.pop %v2998
        %v3031 = vrcp.pop %v2999
        %v3032 = vrcp.pop %v3000
        %v3033 = vrcp.pop %v3001
        %v3034 = vrcp.pop %v3002
        %v3035 = vrcp.pop %v3003
        %v3036 = vrcp.pop %v3004
        %v3037 = vrcp.pop %v3005
        %v3038 = vrcp.pop %v3006
        %v3039 = vrcp.pop %v3007
        %v3040 = vrcp.pop %v3008
        %v3041 = vrcp.pop %v3009
        %v3042 = vrcp.pop %v3010
        %v3043 = vrcp.pop %v3011
        %v3044 = vrcp.pop %v3012
        %v3045 = vrcp.pop %v3013
        %v3046 = vrcp.pop %v3014
        %v3047 = vrcp.pop %v3015
        %v3048 = vrcp.pop %v3016
        %v3049 = vrcp.pop %v3017
        %v3050 = vmul.f32 %v2812, %v3018
        %v3051 = vmul.f32 %v2814, %v3019
        %v3052 = vmul.f32 %v2816, %v3020
        %v3053 = vmul.f32 %v2818, %v3021
        %v3054 = vmul.f32 %v2822, %v3022
        %v3055 = vmul.f32 %v2824, %v3023
        %v3056 = vmul.f32 %v2826, %v3024
        %v3057 = vmul.f32 %v2828, %v3025
        %v3058 = vmul.f32 %v2832, %v3026
        %v3059 = vmul.f32 %v2834, %v3027
        %v3060 = vmul.f32 %v2836, %v3028
        %v3061 = vmul.f32 %v2838, %v3029
        %v3062 = vmul.f32 %v2842, %v3030
        %v3063 = vmul.f32 %v2844, %v3031
        %v3064 = vmul.f32 %v2846, %v3032
        %v3065 = vmul.f32 %v2848, %v3033
        %v3066 = vmul.f32 %v2852, %v3034
        %v3067 = vmul.f32 %v2854, %v3035
        %v3068 = vmul.f32 %v2856, %v3036
        %v3069 = vmul.f32 %v2858, %v3037
        %v3070 = vmul.f32 %v2862, %v3038
        %v3071 = vmul.f32 %v2864, %v3039
        %v3072 = vmul.f32 %v2866, %v3040
        %v3073 = vmul.f32 %v2868, %v3041
        %v3074 = vmul.f32 %v2872, %v3042
        %v3075 = vmul.f32 %v2874, %v3043
        %v3076 = vmul.f32 %v2876, %v3044
        %v3077 = vmul.f32 %v2878, %v3045
        %v3078 = vmul.f32 %v2882, %v3046
        %v3079 = vmul.f32 %v2884, %v3047
        %v3080 = vmul.f32 %v2886, %v3048
        %v3081 = vmul.f32 %v2888, %v3049
        %v3082 = vld [vmem:[#allocation2 + $0x140] sm:$0xff]
        %v3083 = vld [vmem:[#allocation2 + $0x148] sm:$0xff]
        %v3084 = vld [vmem:[#allocation2 + $0x150] sm:$0xff]
        %v3085 = vld [vmem:[#allocation2 + $0x158] sm:$0xff]
        %v3086 = vld [vmem:[#allocation2 + $0x160] sm:$0xff]
        %v3087 = vld [vmem:[#allocation2 + $0x168] sm:$0xff]
        %v3088 = vld [vmem:[#allocation2 + $0x170] sm:$0xff]
        %v3089 = vld [vmem:[#allocation2 + $0x178] sm:$0xff]
        %v3090 = vld [vmem:[#allocation2 + $0x180] sm:$0xff]
        %v3091 = vld [vmem:[#allocation2 + $0x188] sm:$0xff]
        %v3092 = vld [vmem:[#allocation2 + $0x190] sm:$0xff]
        %v3093 = vld [vmem:[#allocation2 + $0x198] sm:$0xff]
        %v3094 = vld [vmem:[#allocation2 + $0x1a0] sm:$0xff]
        %v3095 = vld [vmem:[#allocation2 + $0x1a8] sm:$0xff]
        %v3096 = vld [vmem:[#allocation2 + $0x1b0] sm:$0xff]
        %v3097 = vld [vmem:[#allocation2 + $0x1b8] sm:$0xff]
        %v3098 = vld [vmem:[#allocation2 + $0x1c0] sm:$0xff]
        %v3099 = vld [vmem:[#allocation2 + $0x1c8] sm:$0xff]
        %v3100 = vld [vmem:[#allocation2 + $0x1d0] sm:$0xff]
        %v3101 = vld [vmem:[#allocation2 + $0x1d8] sm:$0xff]
        %v3102 = vld [vmem:[#allocation2 + $0x1e0] sm:$0xff]
        %v3103 = vld [vmem:[#allocation2 + $0x1e8] sm:$0xff]
        %v3104 = vld [vmem:[#allocation2 + $0x1f0] sm:$0xff]
        %v3105 = vld [vmem:[#allocation2 + $0x1f8] sm:$0xff]
        %v3106 = vld [vmem:[#allocation2 + $0x200] sm:$0xff]
        %v3107 = vld [vmem:[#allocation2 + $0x208] sm:$0xff]
        %v3108 = vld [vmem:[#allocation2 + $0x210] sm:$0xff]
        %v3109 = vld [vmem:[#allocation2 + $0x218] sm:$0xff]
        %v3110 = vld [vmem:[#allocation2 + $0x220] sm:$0xff]
        %v3111 = vld [vmem:[#allocation2 + $0x228] sm:$0xff]
        %v3112 = vld [vmem:[#allocation2 + $0x230] sm:$0xff]
        %v3113 = vld [vmem:[#allocation2 + $0x238] sm:$0xff]
        %v3114 = vpack.c.bf16 %v3052, %v3050
        %v3115 = vpack.c.bf16 %v3053, %v3051
        %v3116 = vpack.c.bf16 %v3056, %v3054
        %v3117 = vpack.c.bf16 %v3057, %v3055
        %v3118 = vpack.c.bf16 %v3060, %v3058
        %v3119 = vpack.c.bf16 %v3061, %v3059
        %v3120 = vpack.c.bf16 %v3064, %v3062
        %v3121 = vpack.c.bf16 %v3065, %v3063
        %v3122 = vpack.c.bf16 %v3068, %v3066
        %v3123 = vpack.c.bf16 %v3069, %v3067
        %v3124 = vpack.c.bf16 %v3072, %v3070
        %v3125 = vpack.c.bf16 %v3073, %v3071
        %v3126 = vpack.c.bf16 %v3076, %v3074
        %v3127 = vpack.c.bf16 %v3077, %v3075
        %v3128 = vpack.c.bf16 %v3080, %v3078
        %v3129 = vpack.c.bf16 %v3081, %v3079
        %v3130 = vlaneseq
        %v3131 = vshrl.u32 %v3130, 7
        %v3132 = vsub.s32 4, %v3131
        %v3133 = vrot.slane %v204, %v3132
        %v3134 = vlaneseq
        %v3135 = vshrl.u32 %v3134, 7
        %v3136 = vsub.s32 4, %v3135
        %v3137 = vrot.slane %v205, %v3136
        %v3170 = vunpack.c.l.b16 %v3082
        %v3171 = vunpack.c.h.b16 %v3082
        %v3172 = vunpack.c.l.b16 %v3083
        %v3173 = vunpack.c.h.b16 %v3083
        %v3174 = vunpack.c.l.b16 %v3084
        %v3175 = vunpack.c.h.b16 %v3084
        %v3176 = vunpack.c.l.b16 %v3085
        %v3177 = vunpack.c.h.b16 %v3085
        %v3178 = vunpack.c.l.b16 %v3086
        %v3179 = vunpack.c.h.b16 %v3086
        %v3180 = vunpack.c.l.b16 %v3087
        %v3181 = vunpack.c.h.b16 %v3087
        %v3182 = vunpack.c.l.b16 %v3088
        %v3183 = vunpack.c.h.b16 %v3088
        %v3184 = vunpack.c.l.b16 %v3089
        %v3185 = vunpack.c.h.b16 %v3089
        %v3186 = vunpack.c.l.b16 %v3090
        %v3187 = vunpack.c.h.b16 %v3090
        %v3188 = vunpack.c.l.b16 %v3091
        %v3189 = vunpack.c.h.b16 %v3091
        %v3190 = vunpack.c.l.b16 %v3092
        %v3191 = vunpack.c.h.b16 %v3092
        %v3192 = vunpack.c.l.b16 %v3093
        %v3193 = vunpack.c.h.b16 %v3093
        %v3194 = vunpack.c.l.b16 %v3094
        %v3195 = vunpack.c.h.b16 %v3094
        %v3196 = vunpack.c.l.b16 %v3095
        %v3197 = vunpack.c.h.b16 %v3095
        %v3198 = vunpack.c.l.b16 %v3096
        %v3199 = vunpack.c.h.b16 %v3096
        %v3200 = vunpack.c.l.b16 %v3097
        %v3201 = vunpack.c.h.b16 %v3097
        %v3202 = vunpack.c.l.b16 %v3098
        %v3203 = vunpack.c.h.b16 %v3098
        %v3204 = vunpack.c.l.b16 %v3099
        %v3205 = vunpack.c.h.b16 %v3099
        %v3206 = vunpack.c.l.b16 %v3100
        %v3207 = vunpack.c.h.b16 %v3100
        %v3208 = vunpack.c.l.b16 %v3101
        %v3209 = vunpack.c.h.b16 %v3101
        %v3210 = vunpack.c.l.b16 %v3102
        %v3211 = vunpack.c.h.b16 %v3102
        %v3212 = vunpack.c.l.b16 %v3103
        %v3213 = vunpack.c.h.b16 %v3103
        %v3214 = vunpack.c.l.b16 %v3104
        %v3215 = vunpack.c.h.b16 %v3104
        %v3216 = vunpack.c.l.b16 %v3105
        %v3217 = vunpack.c.h.b16 %v3105
        %v3218 = vunpack.c.l.b16 %v3106
        %v3219 = vunpack.c.h.b16 %v3106
        %v3220 = vunpack.c.l.b16 %v3107
        %v3221 = vunpack.c.h.b16 %v3107
        %v3222 = vunpack.c.l.b16 %v3108
        %v3223 = vunpack.c.h.b16 %v3108
        %v3224 = vunpack.c.l.b16 %v3109
        %v3225 = vunpack.c.h.b16 %v3109
        %v3226 = vunpack.c.l.b16 %v3110
        %v3227 = vunpack.c.h.b16 %v3110
        %v3228 = vunpack.c.l.b16 %v3111
        %v3229 = vunpack.c.h.b16 %v3111
        %v3230 = vunpack.c.l.b16 %v3112
        %v3231 = vunpack.c.h.b16 %v3112
        %v3232 = vunpack.c.l.b16 %v3113
        %v3233 = vunpack.c.h.b16 %v3113
        %v3234 = vpack.c.b16 %v3172, %v3170
        %v3235 = vpack.c.b16 %v3173, %v3171
        %v3236 = vpack.c.b16 %v3176, %v3174
        %v3237 = vpack.c.b16 %v3177, %v3175
        %v3238 = vpack.c.b16 %v3180, %v3178
        %v3239 = vpack.c.b16 %v3181, %v3179
        %v3240 = vpack.c.b16 %v3184, %v3182
        %v3241 = vpack.c.b16 %v3185, %v3183
        %v3242 = vpack.c.b16 %v3188, %v3186
        %v3243 = vpack.c.b16 %v3189, %v3187
        %v3244 = vpack.c.b16 %v3192, %v3190
        %v3245 = vpack.c.b16 %v3193, %v3191
        %v3246 = vpack.c.b16 %v3196, %v3194
        %v3247 = vpack.c.b16 %v3197, %v3195
        %v3248 = vpack.c.b16 %v3200, %v3198
        %v3249 = vpack.c.b16 %v3201, %v3199
        %v3250 = vpack.c.b16 %v3204, %v3202
        %v3251 = vpack.c.b16 %v3205, %v3203
        %v3252 = vpack.c.b16 %v3208, %v3206
        %v3253 = vpack.c.b16 %v3209, %v3207
        %v3254 = vpack.c.b16 %v3212, %v3210
        %v3255 = vpack.c.b16 %v3213, %v3211
        %v3256 = vpack.c.b16 %v3216, %v3214
        %v3257 = vpack.c.b16 %v3217, %v3215
        %v3258 = vpack.c.b16 %v3220, %v3218
        %v3259 = vpack.c.b16 %v3221, %v3219
        %v3260 = vpack.c.b16 %v3224, %v3222
        %v3261 = vpack.c.b16 %v3225, %v3223
        %v3262 = vpack.c.b16 %v3228, %v3226
        %v3263 = vpack.c.b16 %v3229, %v3227
        %v3264 = vpack.c.b16 %v3232, %v3230
        %v3265 = vpack.c.b16 %v3233, %v3231
        %3298 = vmatprep.subr.bf16.mxu0 %v3249
        %3299 = vmatpush1.bf16.msra.mxu0 %v3248
        %3300 = vmatprep.subr.bf16.mxu0 %v3247
        %3301 = vmatpush1.bf16.msra.mxu0 %v3246
        %3302 = vmatprep.subr.bf16.mxu0 %v3245
        %3303 = vmatpush1.bf16.msra.mxu0 %v3244
        %3304 = vmatprep.subr.bf16.mxu0 %v3243
        %3305 = vmatpush1.bf16.msra.mxu0 %v3242
        %3306 = vmatprep.subr.bf16.mxu0 %v3241
        %3307 = vmatpush1.bf16.msra.mxu0 %v3240
        %3308 = vmatprep.subr.bf16.mxu0 %v3239
        %3309 = vmatpush1.bf16.msra.mxu0 %v3238
        %3310 = vmatprep.subr.bf16.mxu0 %v3237
        %3311 = vmatpush1.bf16.msra.mxu0 %v3236
        %3312 = vmatprep.subr.bf16.mxu0 %v3235
        %3313 = vmatpush1.bf16.msra.mxu0 %v3234
        %3314 = vmatprep.subr.bf16.mxu0 %v3265
        %3315 = vmatpush2.bf16.msra.mxu0 %v3264
        %3316 = vmatprep.subr.bf16.mxu0 %v3263
        %3317 = vmatpush2.bf16.msra.mxu0 %v3262
        %3318 = vmatprep.subr.bf16.mxu0 %v3261
        %3319 = vmatpush2.bf16.msra.mxu0 %v3260
        %3320 = vmatprep.subr.bf16.mxu0 %v3259
        %3321 = vmatpush2.bf16.msra.mxu0 %v3258
        %3322 = vmatprep.subr.bf16.mxu0 %v3257
        %3323 = vmatpush2.bf16.msra.mxu0 %v3256
        %3324 = vmatprep.subr.bf16.mxu0 %v3255
        %3325 = vmatpush2.bf16.msra.mxu0 %v3254
        %3326 = vmatprep.subr.bf16.mxu0 %v3253
        %3327 = vmatpush2.bf16.msra.mxu0 %v3252
        %3328 = vmatprep.subr.bf16.mxu0 %v3251
        %3329 = vmatpush2.bf16.msra.mxu0 %v3250
        %3330 = vmatprep.mubr.bf16.mxu0 %v3115
        %3331 = vmatmul.mubr.bf16.gmra.mxu0 %v3114
        %v3332 = vpop.f32.mrf.mxu0
        %v3333 = vadd.f32 %v3133, %v3332
        %v3334 = vpop.f32.mrf.mxu0
        %v3335 = vadd.f32 %v3137, %v3334
        %v3336 = vpop.f32.mrf.mxu0
        %v3337 = vadd.f32 %v3133, %v3336
        %v3338 = vpop.f32.mrf.mxu0
        %v3339 = vadd.f32 %v3137, %v3338
        %3340 = vmatprep.mubr.bf16.mxu0 %v3117
        %3341 = vmatmul.mubr.bf16.gmra.mxu0 %v3116
        %v3342 = vpop.f32.mrf.mxu0
        %v3343 = vadd.f32 %v3133, %v3342
        %v3344 = vpop.f32.mrf.mxu0
        %v3345 = vadd.f32 %v3137, %v3344
        %v3346 = vpop.f32.mrf.mxu0
        %v3347 = vadd.f32 %v3133, %v3346
        %v3348 = vpop.f32.mrf.mxu0
        %v3349 = vadd.f32 %v3137, %v3348
        %3350 = vmatprep.mubr.bf16.mxu0 %v3119
        %3351 = vmatmul.mubr.bf16.gmra.mxu0 %v3118
        %v3352 = vpop.f32.mrf.mxu0
        %v3353 = vadd.f32 %v3133, %v3352
        %v3354 = vpop.f32.mrf.mxu0
        %v3355 = vadd.f32 %v3137, %v3354
        %v3356 = vpop.f32.mrf.mxu0
        %v3357 = vadd.f32 %v3133, %v3356
        %v3358 = vpop.f32.mrf.mxu0
        %v3359 = vadd.f32 %v3137, %v3358
        %3360 = vmatprep.mubr.bf16.mxu0 %v3121
        %3361 = vmatmul.mubr.bf16.gmra.mxu0 %v3120
        %v3362 = vpop.f32.mrf.mxu0
        %v3363 = vadd.f32 %v3133, %v3362
        %v3364 = vpop.f32.mrf.mxu0
        %v3365 = vadd.f32 %v3137, %v3364
        %v3366 = vpop.f32.mrf.mxu0
        %v3367 = vadd.f32 %v3133, %v3366
        %v3368 = vpop.f32.mrf.mxu0
        %v3369 = vadd.f32 %v3137, %v3368
        %3370 = vmatprep.mubr.bf16.mxu0 %v3123
        %3371 = vmatmul.mubr.bf16.gmra.mxu0 %v3122
        %v3372 = vpop.f32.mrf.mxu0
        %v3373 = vadd.f32 %v3133, %v3372
        %v3374 = vpop.f32.mrf.mxu0
        %v3375 = vadd.f32 %v3137, %v3374
        %v3376 = vpop.f32.mrf.mxu0
        %v3377 = vadd.f32 %v3133, %v3376
        %v3378 = vpop.f32.mrf.mxu0
        %v3379 = vadd.f32 %v3137, %v3378
        %3380 = vmatprep.mubr.bf16.mxu0 %v3125
        %3381 = vmatmul.mubr.bf16.gmra.mxu0 %v3124
        %v3382 = vpop.f32.mrf.mxu0
        %v3383 = vadd.f32 %v3133, %v3382
        %v3384 = vpop.f32.mrf.mxu0
        %v3385 = vadd.f32 %v3137, %v3384
        %v3386 = vpop.f32.mrf.mxu0
        %v3387 = vadd.f32 %v3133, %v3386
        %v3388 = vpop.f32.mrf.mxu0
        %v3389 = vadd.f32 %v3137, %v3388
        %3390 = vmatprep.mubr.bf16.mxu0 %v3127
        %3391 = vmatmul.mubr.bf16.gmra.mxu0 %v3126
        %v3392 = vpop.f32.mrf.mxu0
        %v3393 = vadd.f32 %v3133, %v3392
        %v3394 = vpop.f32.mrf.mxu0
        %v3395 = vadd.f32 %v3137, %v3394
        %v3396 = vpop.f32.mrf.mxu0
        %v3397 = vadd.f32 %v3133, %v3396
        %v3398 = vpop.f32.mrf.mxu0
        %v3399 = vadd.f32 %v3137, %v3398
        %3400 = vmatprep.mubr.bf16.mxu0 %v3129
        %3401 = vmatmul.mubr.bf16.gmra.mxu0 %v3128
        %v3402 = vpop.f32.mrf.mxu0
        %v3403 = vadd.f32 %v3133, %v3402
        %v3404 = vpop.f32.mrf.mxu0
        %v3405 = vadd.f32 %v3137, %v3404
        %v3406 = vpop.f32.mrf.mxu0
        %v3407 = vadd.f32 %v3133, %v3406
        %v3408 = vpop.f32.mrf.mxu0
        %v3409 = vadd.f32 %v3137, %v3408
        %3410 = vdwg.mxu0
        %v3411 = vsub.f32 0.0, %v3333
        %v3412 = vsub.f32 0.0, %v3335
        %v3413 = vsub.f32 0.0, %v3337
        %v3414 = vsub.f32 0.0, %v3339
        %v3415 = vsub.f32 0.0, %v3343
        %v3416 = vsub.f32 0.0, %v3345
        %v3417 = vsub.f32 0.0, %v3347
        %v3418 = vsub.f32 0.0, %v3349
        %v3419 = vsub.f32 0.0, %v3353
        %v3420 = vsub.f32 0.0, %v3355
        %v3421 = vsub.f32 0.0, %v3357
        %v3422 = vsub.f32 0.0, %v3359
        %v3423 = vsub.f32 0.0, %v3363
        %v3424 = vsub.f32 0.0, %v3365
        %v3425 = vsub.f32 0.0, %v3367
        %v3426 = vsub.f32 0.0, %v3369
        %v3427 = vsub.f32 0.0, %v3373
        %v3428 = vsub.f32 0.0, %v3375
        %v3429 = vsub.f32 0.0, %v3377
        %v3430 = vsub.f32 0.0, %v3379
        %v3431 = vsub.f32 0.0, %v3383
        %v3432 = vsub.f32 0.0, %v3385
        %v3433 = vsub.f32 0.0, %v3387
        %v3434 = vsub.f32 0.0, %v3389
        %v3435 = vsub.f32 0.0, %v3393
        %v3436 = vsub.f32 0.0, %v3395
        %v3437 = vsub.f32 0.0, %v3397
        %v3438 = vsub.f32 0.0, %v3399
        %v3439 = vsub.f32 0.0, %v3403
        %v3440 = vsub.f32 0.0, %v3405
        %v3441 = vsub.f32 0.0, %v3407
        %v3442 = vsub.f32 0.0, %v3409
        %v3443 = vmul.f32 %v3411, 1.442695
        %v3444 = vpow.pop %v3443
        %v3445 = vmul.f32 %v3412, 1.442695
        %v3446 = vpow.pop %v3445
        %v3447 = vmul.f32 %v3413, 1.442695
        %v3448 = vpow.pop %v3447
        %v3449 = vmul.f32 %v3414, 1.442695
        %v3450 = vpow.pop %v3449
        %v3451 = vmul.f32 %v3415, 1.442695
        %v3452 = vpow.pop %v3451
        %v3453 = vmul.f32 %v3416, 1.442695
        %v3454 = vpow.pop %v3453
        %v3455 = vmul.f32 %v3417, 1.442695
        %v3456 = vpow.pop %v3455
        %v3457 = vmul.f32 %v3418, 1.442695
        %v3458 = vpow.pop %v3457
        %v3459 = vmul.f32 %v3419, 1.442695
        %v3460 = vpow.pop %v3459
        %v3461 = vmul.f32 %v3420, 1.442695
        %v3462 = vpow.pop %v3461
        %v3463 = vmul.f32 %v3421, 1.442695
        %v3464 = vpow.pop %v3463
        %v3465 = vmul.f32 %v3422, 1.442695
        %v3466 = vpow.pop %v3465
        %v3467 = vmul.f32 %v3423, 1.442695
        %v3468 = vpow.pop %v3467
        %v3469 = vmul.f32 %v3424, 1.442695
        %v3470 = vpow.pop %v3469
        %v3471 = vmul.f32 %v3425, 1.442695
        %v3472 = vpow.pop %v3471
        %v3473 = vmul.f32 %v3426, 1.442695
        %v3474 = vpow.pop %v3473
        %v3475 = vmul.f32 %v3427, 1.442695
        %v3476 = vpow.pop %v3475
        %v3477 = vmul.f32 %v3428, 1.442695
        %v3478 = vpow.pop %v3477
        %v3479 = vmul.f32 %v3429, 1.442695
        %v3480 = vpow.pop %v3479
        %v3481 = vmul.f32 %v3430, 1.442695
        %v3482 = vpow.pop %v3481
        %v3483 = vmul.f32 %v3431, 1.442695
        %v3484 = vpow.pop %v3483
        %v3485 = vmul.f32 %v3432, 1.442695
        %v3486 = vpow.pop %v3485
        %v3487 = vmul.f32 %v3433, 1.442695
        %v3488 = vpow.pop %v3487
        %v3489 = vmul.f32 %v3434, 1.442695
        %v3490 = vpow.pop %v3489
        %v3491 = vmul.f32 %v3435, 1.442695
        %v3492 = vpow.pop %v3491
        %v3493 = vmul.f32 %v3436, 1.442695
        %v3494 = vpow.pop %v3493
        %v3495 = vmul.f32 %v3437, 1.442695
        %v3496 = vpow.pop %v3495
        %v3497 = vmul.f32 %v3438, 1.442695
        %v3498 = vpow.pop %v3497
        %v3499 = vmul.f32 %v3439, 1.442695
        %v3500 = vpow.pop %v3499
        %v3501 = vmul.f32 %v3440, 1.442695
        %v3502 = vpow.pop %v3501
        %v3503 = vmul.f32 %v3441, 1.442695
        %v3504 = vpow.pop %v3503
        %v3505 = vmul.f32 %v3442, 1.442695
        %v3506 = vpow.pop %v3505
        %v3507 = vadd.f32 %v3444, 1.0
        %v3508 = vadd.f32 %v3446, 1.0
        %v3509 = vadd.f32 %v3448, 1.0
        %v3510 = vadd.f32 %v3450, 1.0
        %v3511 = vadd.f32 %v3452, 1.0
        %v3512 = vadd.f32 %v3454, 1.0
        %v3513 = vadd.f32 %v3456, 1.0
        %v3514 = vadd.f32 %v3458, 1.0
        %v3515 = vadd.f32 %v3460, 1.0
        %v3516 = vadd.f32 %v3462, 1.0
        %v3517 = vadd.f32 %v3464, 1.0
        %v3518 = vadd.f32 %v3466, 1.0
        %v3519 = vadd.f32 %v3468, 1.0
        %v3520 = vadd.f32 %v3470, 1.0
        %v3521 = vadd.f32 %v3472, 1.0
        %v3522 = vadd.f32 %v3474, 1.0
        %v3523 = vadd.f32 %v3476, 1.0
        %v3524 = vadd.f32 %v3478, 1.0
        %v3525 = vadd.f32 %v3480, 1.0
        %v3526 = vadd.f32 %v3482, 1.0
        %v3527 = vadd.f32 %v3484, 1.0
        %v3528 = vadd.f32 %v3486, 1.0
        %v3529 = vadd.f32 %v3488, 1.0
        %v3530 = vadd.f32 %v3490, 1.0
        %v3531 = vadd.f32 %v3492, 1.0
        %v3532 = vadd.f32 %v3494, 1.0
        %v3533 = vadd.f32 %v3496, 1.0
        %v3534 = vadd.f32 %v3498, 1.0
        %v3535 = vadd.f32 %v3500, 1.0
        %v3536 = vadd.f32 %v3502, 1.0
        %v3537 = vadd.f32 %v3504, 1.0
        %v3538 = vadd.f32 %v3506, 1.0
        %v3539 = vrcp.pop %v3507
        %v3540 = vrcp.pop %v3508
        %v3541 = vrcp.pop %v3509
        %v3542 = vrcp.pop %v3510
        %v3543 = vrcp.pop %v3511
        %v3544 = vrcp.pop %v3512
        %v3545 = vrcp.pop %v3513
        %v3546 = vrcp.pop %v3514
        %v3547 = vrcp.pop %v3515
        %v3548 = vrcp.pop %v3516
        %v3549 = vrcp.pop %v3517
        %v3550 = vrcp.pop %v3518
        %v3551 = vrcp.pop %v3519
        %v3552 = vrcp.pop %v3520
        %v3553 = vrcp.pop %v3521
        %v3554 = vrcp.pop %v3522
        %v3555 = vrcp.pop %v3523
        %v3556 = vrcp.pop %v3524
        %v3557 = vrcp.pop %v3525
        %v3558 = vrcp.pop %v3526
        %v3559 = vrcp.pop %v3527
        %v3560 = vrcp.pop %v3528
        %v3561 = vrcp.pop %v3529
        %v3562 = vrcp.pop %v3530
        %v3563 = vrcp.pop %v3531
        %v3564 = vrcp.pop %v3532
        %v3565 = vrcp.pop %v3533
        %v3566 = vrcp.pop %v3534
        %v3567 = vrcp.pop %v3535
        %v3568 = vrcp.pop %v3536
        %v3569 = vrcp.pop %v3537
        %v3570 = vrcp.pop %v3538
        %v3571 = vmul.f32 %v3333, %v3539
        %v3572 = vmul.f32 %v3335, %v3540
        %v3573 = vmul.f32 %v3337, %v3541
        %v3574 = vmul.f32 %v3339, %v3542
        %v3575 = vmul.f32 %v3343, %v3543
        %v3576 = vmul.f32 %v3345, %v3544
        %v3577 = vmul.f32 %v3347, %v3545
        %v3578 = vmul.f32 %v3349, %v3546
        %v3579 = vmul.f32 %v3353, %v3547
        %v3580 = vmul.f32 %v3355, %v3548
        %v3581 = vmul.f32 %v3357, %v3549
        %v3582 = vmul.f32 %v3359, %v3550
        %v3583 = vmul.f32 %v3363, %v3551
        %v3584 = vmul.f32 %v3365, %v3552
        %v3585 = vmul.f32 %v3367, %v3553
        %v3586 = vmul.f32 %v3369, %v3554
        %v3587 = vmul.f32 %v3373, %v3555
        %v3588 = vmul.f32 %v3375, %v3556
        %v3589 = vmul.f32 %v3377, %v3557
        %v3590 = vmul.f32 %v3379, %v3558
        %v3591 = vmul.f32 %v3383, %v3559
        %v3592 = vmul.f32 %v3385, %v3560
        %v3593 = vmul.f32 %v3387, %v3561
        %v3594 = vmul.f32 %v3389, %v3562
        %v3595 = vmul.f32 %v3393, %v3563
        %v3596 = vmul.f32 %v3395, %v3564
        %v3597 = vmul.f32 %v3397, %v3565
        %v3598 = vmul.f32 %v3399, %v3566
        %v3599 = vmul.f32 %v3403, %v3567
        %v3600 = vmul.f32 %v3405, %v3568
        %v3601 = vmul.f32 %v3407, %v3569
        %v3602 = vmul.f32 %v3409, %v3570
        %v3603 = vld [vmem:[#allocation2 + $0x240] sm:$0xf]
        %v3604 = vld [vmem:[#allocation2 + $0x248] sm:$0xf]
        %v3605 = vld [vmem:[#allocation2 + $0x250] sm:$0xf]
        %v3606 = vld [vmem:[#allocation2 + $0x258] sm:$0xf]
        %v3607 = vld [vmem:[#allocation2 + $0x260] sm:$0xf]
        %v3608 = vld [vmem:[#allocation2 + $0x268] sm:$0xf]
        %v3609 = vld [vmem:[#allocation2 + $0x270] sm:$0xf]
        %v3610 = vld [vmem:[#allocation2 + $0x278] sm:$0xf]
        %v3611 = vld [vmem:[#allocation2 + $0x280] sm:$0xf]
        %v3612 = vld [vmem:[#allocation2 + $0x288] sm:$0xf]
        %v3613 = vld [vmem:[#allocation2 + $0x290] sm:$0xf]
        %v3614 = vld [vmem:[#allocation2 + $0x298] sm:$0xf]
        %v3615 = vld [vmem:[#allocation2 + $0x2a0] sm:$0xf]
        %v3616 = vld [vmem:[#allocation2 + $0x2a8] sm:$0xf]
        %v3617 = vld [vmem:[#allocation2 + $0x2b0] sm:$0xf]
        %v3618 = vld [vmem:[#allocation2 + $0x2b8] sm:$0xf]
        %v3619 = vld [vmem:[#allocation2 + $0x2c0] sm:$0xf]
        %v3620 = vld [vmem:[#allocation2 + $0x2c8] sm:$0xf]
        %v3621 = vld [vmem:[#allocation2 + $0x2d0] sm:$0xf]
        %v3622 = vld [vmem:[#allocation2 + $0x2d8] sm:$0xf]
        %v3623 = vld [vmem:[#allocation2 + $0x2e0] sm:$0xf]
        %v3624 = vld [vmem:[#allocation2 + $0x2e8] sm:$0xf]
        %v3625 = vld [vmem:[#allocation2 + $0x2f0] sm:$0xf]
        %v3626 = vld [vmem:[#allocation2 + $0x2f8] sm:$0xf]
        %v3627 = vld [vmem:[#allocation2 + $0x300] sm:$0xf]
        %v3628 = vld [vmem:[#allocation2 + $0x308] sm:$0xf]
        %v3629 = vld [vmem:[#allocation2 + $0x310] sm:$0xf]
        %v3630 = vld [vmem:[#allocation2 + $0x318] sm:$0xf]
        %v3631 = vld [vmem:[#allocation2 + $0x320] sm:$0xf]
        %v3632 = vld [vmem:[#allocation2 + $0x328] sm:$0xf]
        %v3633 = vld [vmem:[#allocation2 + $0x330] sm:$0xf]
        %v3634 = vld [vmem:[#allocation2 + $0x338] sm:$0xf]
        %v3635 = vpack.c.bf16 %v3573, %v3571
        %v3636 = vpack.c.bf16 %v3574, %v3572
        %v3637 = vpack.c.bf16 %v3577, %v3575
        %v3638 = vpack.c.bf16 %v3578, %v3576
        %v3639 = vpack.c.bf16 %v3581, %v3579
        %v3640 = vpack.c.bf16 %v3582, %v3580
        %v3641 = vpack.c.bf16 %v3585, %v3583
        %v3642 = vpack.c.bf16 %v3586, %v3584
        %v3643 = vpack.c.bf16 %v3589, %v3587
        %v3644 = vpack.c.bf16 %v3590, %v3588
        %v3645 = vpack.c.bf16 %v3593, %v3591
        %v3646 = vpack.c.bf16 %v3594, %v3592
        %v3647 = vpack.c.bf16 %v3597, %v3595
        %v3648 = vpack.c.bf16 %v3598, %v3596
        %v3649 = vpack.c.bf16 %v3601, %v3599
        %v3650 = vpack.c.bf16 %v3602, %v3600
        %v3651 = vlaneseq
        %v3652 = vshrl.u32 %v3651, 7
        %v3653 = vsub.s32 5, %v3652
        %v3654 = vrot.slane %v204, %v3653
        %v3687 = vunpack.c.l.b16 %v3603
        %v3688 = vunpack.c.l.b16 %v3604
        %v3689 = vunpack.c.l.b16 %v3605
        %v3690 = vunpack.c.l.b16 %v3606
        %v3691 = vunpack.c.l.b16 %v3607
        %v3692 = vunpack.c.l.b16 %v3608
        %v3693 = vunpack.c.l.b16 %v3609
        %v3694 = vunpack.c.l.b16 %v3610
        %v3695 = vunpack.c.l.b16 %v3611
        %v3696 = vunpack.c.l.b16 %v3612
        %v3697 = vunpack.c.l.b16 %v3613
        %v3698 = vunpack.c.l.b16 %v3614
        %v3699 = vunpack.c.l.b16 %v3615
        %v3700 = vunpack.c.l.b16 %v3616
        %v3701 = vunpack.c.l.b16 %v3617
        %v3702 = vunpack.c.l.b16 %v3618
        %v3703 = vunpack.c.l.b16 %v3619
        %v3704 = vunpack.c.l.b16 %v3620
        %v3705 = vunpack.c.l.b16 %v3621
        %v3706 = vunpack.c.l.b16 %v3622
        %v3707 = vunpack.c.l.b16 %v3623
        %v3708 = vunpack.c.l.b16 %v3624
        %v3709 = vunpack.c.l.b16 %v3625
        %v3710 = vunpack.c.l.b16 %v3626
        %v3711 = vunpack.c.l.b16 %v3627
        %v3712 = vunpack.c.l.b16 %v3628
        %v3713 = vunpack.c.l.b16 %v3629
        %v3714 = vunpack.c.l.b16 %v3630
        %v3715 = vunpack.c.l.b16 %v3631
        %v3716 = vunpack.c.l.b16 %v3632
        %v3717 = vunpack.c.l.b16 %v3633
        %v3718 = vunpack.c.l.b16 %v3634
        %v3719 = vpack.c.b16 %v3688, %v3687
        %v3720 = vpack.c.b16 %v3690, %v3689
        %v3721 = vpack.c.b16 %v3692, %v3691
        %v3722 = vpack.c.b16 %v3694, %v3693
        %v3723 = vpack.c.b16 %v3696, %v3695
        %v3724 = vpack.c.b16 %v3698, %v3697
        %v3725 = vpack.c.b16 %v3700, %v3699
        %v3726 = vpack.c.b16 %v3702, %v3701
        %v3727 = vpack.c.b16 %v3704, %v3703
        %v3728 = vpack.c.b16 %v3706, %v3705
        %v3729 = vpack.c.b16 %v3708, %v3707
        %v3730 = vpack.c.b16 %v3710, %v3709
        %v3731 = vpack.c.b16 %v3712, %v3711
        %v3732 = vpack.c.b16 %v3714, %v3713
        %v3733 = vpack.c.b16 %v3716, %v3715
        %v3734 = vpack.c.b16 %v3718, %v3717
        %3751 = vmatprep.subr.bf16.mxu0 0
        %3752 = vmatpush1.bf16.msra.mxu0 %v3726
        %3753 = vmatprep.subr.bf16.mxu0 0
        %3754 = vmatpush1.bf16.msra.mxu0 %v3725
        %3755 = vmatprep.subr.bf16.mxu0 0
        %3756 = vmatpush1.bf16.msra.mxu0 %v3724
        %3757 = vmatprep.subr.bf16.mxu0 0
        %3758 = vmatpush1.bf16.msra.mxu0 %v3723
        %3759 = vmatprep.subr.bf16.mxu0 0
        %3760 = vmatpush1.bf16.msra.mxu0 %v3722
        %3761 = vmatprep.subr.bf16.mxu0 0
        %3762 = vmatpush1.bf16.msra.mxu0 %v3721
        %3763 = vmatprep.subr.bf16.mxu0 0
        %3764 = vmatpush1.bf16.msra.mxu0 %v3720
        %3765 = vmatprep.subr.bf16.mxu0 0
        %3766 = vmatpush1.bf16.msra.mxu0 %v3719
        %3767 = vmatprep.subr.bf16.mxu0 0
        %3768 = vmatpush2.bf16.msra.mxu0 %v3734
        %3769 = vmatprep.subr.bf16.mxu0 0
        %3770 = vmatpush2.bf16.msra.mxu0 %v3733
        %3771 = vmatprep.subr.bf16.mxu0 0
        %3772 = vmatpush2.bf16.msra.mxu0 %v3732
        %3773 = vmatprep.subr.bf16.mxu0 0
        %3774 = vmatpush2.bf16.msra.mxu0 %v3731
        %3775 = vmatprep.subr.bf16.mxu0 0
        %3776 = vmatpush2.bf16.msra.mxu0 %v3730
        %3777 = vmatprep.subr.bf16.mxu0 0
        %3778 = vmatpush2.bf16.msra.mxu0 %v3729
        %3779 = vmatprep.subr.bf16.mxu0 0
        %3780 = vmatpush2.bf16.msra.mxu0 %v3728
        %3781 = vmatprep.subr.bf16.mxu0 0
        %3782 = vmatpush2.bf16.msra.mxu0 %v3727
        %3783 = vmatprep.mubr.bf16.mxu0 %v3636
        %3784 = vmatmul.mubr.bf16.gmra.mxu0 %v3635
        %v3785 = vpop.f32.mrf.mxu0
        %v3786 = vadd.f32 %v3654, %v3785
        %v3787 = vpop.f32.mrf.mxu0
        %v3788 = vpop.f32.mrf.mxu0
        %v3789 = vadd.f32 %v3654, %v3788
        %v3790 = vpop.f32.mrf.mxu0
        %3791 = vmatprep.mubr.bf16.mxu0 %v3638
        %3792 = vmatmul.mubr.bf16.gmra.mxu0 %v3637
        %v3793 = vpop.f32.mrf.mxu0
        %v3794 = vadd.f32 %v3654, %v3793
        %v3795 = vpop.f32.mrf.mxu0
        %v3796 = vpop.f32.mrf.mxu0
        %v3797 = vadd.f32 %v3654, %v3796
        %v3798 = vpop.f32.mrf.mxu0
        %3799 = vmatprep.mubr.bf16.mxu0 %v3640
        %3800 = vmatmul.mubr.bf16.gmra.mxu0 %v3639
        %v3801 = vpop.f32.mrf.mxu0
        %v3802 = vadd.f32 %v3654, %v3801
        %v3803 = vpop.f32.mrf.mxu0
        %v3804 = vpop.f32.mrf.mxu0
        %v3805 = vadd.f32 %v3654, %v3804
        %v3806 = vpop.f32.mrf.mxu0
        %3807 = vmatprep.mubr.bf16.mxu0 %v3642
        %3808 = vmatmul.mubr.bf16.gmra.mxu0 %v3641
        %v3809 = vpop.f32.mrf.mxu0
        %v3810 = vadd.f32 %v3654, %v3809
        %v3811 = vpop.f32.mrf.mxu0
        %v3812 = vpop.f32.mrf.mxu0
        %v3813 = vadd.f32 %v3654, %v3812
        %v3814 = vpop.f32.mrf.mxu0
        %3815 = vmatprep.mubr.bf16.mxu0 %v3644
        %3816 = vmatmul.mubr.bf16.gmra.mxu0 %v3643
        %v3817 = vpop.f32.mrf.mxu0
        %v3818 = vadd.f32 %v3654, %v3817
        %v3819 = vpop.f32.mrf.mxu0
        %v3820 = vpop.f32.mrf.mxu0
        %v3821 = vadd.f32 %v3654, %v3820
        %v3822 = vpop.f32.mrf.mxu0
        %3823 = vmatprep.mubr.bf16.mxu0 %v3646
        %3824 = vmatmul.mubr.bf16.gmra.mxu0 %v3645
        %v3825 = vpop.f32.mrf.mxu0
        %v3826 = vadd.f32 %v3654, %v3825
        %v3827 = vpop.f32.mrf.mxu0
        %v3828 = vpop.f32.mrf.mxu0
        %v3829 = vadd.f32 %v3654, %v3828
        %v3830 = vpop.f32.mrf.mxu0
        %3831 = vmatprep.mubr.bf16.mxu0 %v3648
        %3832 = vmatmul.mubr.bf16.gmra.mxu0 %v3647
        %v3833 = vpop.f32.mrf.mxu0
        %v3834 = vadd.f32 %v3654, %v3833
        %v3835 = vpop.f32.mrf.mxu0
        %v3836 = vpop.f32.mrf.mxu0
        %v3837 = vadd.f32 %v3654, %v3836
        %v3838 = vpop.f32.mrf.mxu0
        %3839 = vmatprep.mubr.bf16.mxu0 %v3650
        %3840 = vmatmul.mubr.bf16.gmra.mxu0 %v3649
        %v3841 = vpop.f32.mrf.mxu0
        %v3842 = vadd.f32 %v3654, %v3841
        %v3843 = vpop.f32.mrf.mxu0
        %v3844 = vpop.f32.mrf.mxu0
        %v3845 = vadd.f32 %v3654, %v3844
        %v3846 = vpop.f32.mrf.mxu0
        %3847 = vdwg.mxu0
        %3848 = vst [vmem:[%s179] sm:$0xff] %v3786
        %3849 = vst [vmem:[%s179 + $0x8] sm:$0xff] %v3789
        %3850 = vst [vmem:[%s179 + $0x10] sm:$0xff] %v3794
        %3851 = vst [vmem:[%s179 + $0x18] sm:$0xff] %v3797
        %3852 = vst [vmem:[%s179 + $0x20] sm:$0xff] %v3802
        %3853 = vst [vmem:[%s179 + $0x28] sm:$0xff] %v3805
        %3854 = vst [vmem:[%s179 + $0x30] sm:$0xff] %v3810
        %3855 = vst [vmem:[%s179 + $0x38] sm:$0xff] %v3813
        %3856 = vst [vmem:[%s179 + $0x40] sm:$0xff] %v3818
        %3857 = vst [vmem:[%s179 + $0x48] sm:$0xff] %v3821
        %3858 = vst [vmem:[%s179 + $0x50] sm:$0xff] %v3826
        %3859 = vst [vmem:[%s179 + $0x58] sm:$0xff] %v3829
        %3860 = vst [vmem:[%s179 + $0x60] sm:$0xff] %v3834
        %3861 = vst [vmem:[%s179 + $0x68] sm:$0xff] %v3837
        %3862 = vst [vmem:[%s179 + $0x70] sm:$0xff] %v3842
        %3863 = vst [vmem:[%s179 + $0x78] sm:$0xff] %v3845
        %s3864 = sand.u32 %s94, 1
        %s3865 = scalar_lea.sflag [#allocation4], %s3864
        %s3866 = sand.u32 %s94, 1
        %s3867 = smul.addr %s3866, 128
        %s3868 = scalar_lea.vmem [#allocation5], %s3867
        // Predicated region
        $region37: #{tpu_custom_call.1} parent=31 // pred_check
          %p3869 = pneg %p104
        $region38: #{tpu_custom_call.1} parent=31 // pred_check_branch
          %3871 = sbr.rel (%p3869) target = $region40
        $region39: #{tpu_custom_call.1} parent=31 // pred_region
          %s3872 = smul.u32 16, %s18
          %s3874 = ssub.s32 2048, 2048
          %3875 = vsyncadd %s3865, %s3874
          %s3876 = smul.addr %s3872, 128
          %s3877 = scalar_lea.hbm %s3, %s3876
          %s3878 = sshll.u32 %s3868, 4
          %s3879 = int_to_ptr.vmem [resolvable:$true] %s3878
          %3884 = dma.vmem_to_hbm [thread:$0]  %s3879, 2048, %s3877, %s3865, 128, 128, 8
        $region40: #{tpu_custom_call.1} parent=31 // pred_fallthru
          _
      $region32: #{tpu_custom_call.1} parent=5 // pred_fallthru
        _
      %p3885 = scmp.le.s32.totalorder 2, %s13
      // Predicated region
      $region41: #{tpu_custom_call.1} parent=5 // pred_check
        %p3886 = pneg %p3885
      $region42: #{tpu_custom_call.1} parent=5 // pred_check_branch
        %3888 = sbr.rel (%p3886) target = $region44
      $region43: #{tpu_custom_call.1} parent=5 // pred_region
        %s3889 = ssub.s32 %s13, 2
        // Predicated region
        $region45: #{tpu_custom_call.1} parent=43 // pred_check
          %p3890 = pneg %p110
        $region46: #{tpu_custom_call.1} parent=43 // pred_check_branch
          %3892 = sbr.rel (%p3890) target = $region48
        $region47: #{tpu_custom_call.1} parent=43 // pred_region
          %s3893 = sand.u32 %s95, 1
          %s3894 = scalar_lea.sflag [#allocation4], %s3893
          %s3895 = sand.u32 %s95, 1
          %s3896 = smul.addr %s3895, 128
          %s3897 = scalar_lea.vmem [#allocation5], %s3896
          %3898 = dma.done %s3894, 2048
        $region48: #{tpu_custom_call.1} parent=43 // pred_fallthru
          _
      $region44: #{tpu_custom_call.1} parent=5 // pred_fallthru
        _
    $region6: #{tpu_custom_call.1} parent=1 // loop_footer
      %s17 = sadd.s32 1, %s13
    $region7: #{tpu_custom_call.1} parent=1 // loop_footer_branch
      %12 = sbr.rel target = $region3
    $region8: #{tpu_custom_call.1} parent=1 // loop_exit
      _
    %3899 = vsyncpa [#allocation3], 1
    %s3900 = scalar_lea.sflag [#allocation3], 1
    %3901 = vsyncpa %s3900, 1
    %3902 = vsyncpa [#allocation4], 1
    %s3903 = scalar_lea.sflag [#allocation4], 1
    %3904 = vsyncpa %s3903, 1

</llo_original>
